<compile_context>
chip_gen: v6e
topology: v6e:2x2x1
jax: 0.10.0
libtpu: 0.0.40
codegen_flags: <defaults>
</compile_context>

<pallas_src>
import functools

import numpy as np

import jax
import jax.numpy as jnp
from jax.experimental import pallas as pl
from jax.experimental.pallas import tpu as pltpu


# ------------------------------ fused kernel -------------------------------

def _lenet_kernel(x_ref, w1_ref, b1_ref, w2_ref, b2_ref,
                  wf1_ref, bf1_ref, wf2_ref, bf2_ref, wf3_ref, bf3_ref,
                  o_ref, p1_ref, *, B):
    """B samples per grid step.

    x_ref : (2*16*B, 32) f32, row index = s*16*B + r*B + b  <->  image row 2r+s
    o_ref : (B, 128)   f32, lanes 0..9 are the logits
    p1_ref: (14*B, 128) f32 scratch, row = hp*B + b, lane = ci*14 + wp (84 real)
    """
    cdt = jnp.bfloat16          # MXU input dtype; accumulate / epilogue in f32
    HB = 16 * B                 # rows per parity plane of x

    # ---- conv1 (1->6, 5x5) + ReLU + 2x2 max-pool ---------------------------
    # K-split over the 5 kernel rows; each tap's LHS is one contiguous,
    # sublane-aligned slice of the parity-de-interleaved input.
    # Computed in two hp-halves (pooled rows 0..6 and 7..13) to limit vregs.
    for h0 in (0, 7):
        def conv1_par(par, h0=h0):
            acc = None
            for i in range(5):
                src = par + i                       # input-row offset, 0..5
                s, q = src % 2, src // 2
                rows = x_ref[pl.ds(s * HB + (q + h0) * B, 7 * B), :]   # (7B, 32)
                d = jnp.dot(rows.astype(cdt), w1_ref[pl.ds(i * 32, 32), :],
                            preferred_element_type=jnp.float32)        # (7B, 256)
                acc = d if acc is None else acc + d
            return jnp.maximum(acc + b1_ref[...], 0.0)

        c1 = jnp.maximum(conv1_par(0), conv1_par(1))          # pool over H
        # pool over W: even/odd output columns live in lane blocks [0:128)/[128:256)
        p1_ref[pl.ds(h0 * B, 7 * B), :] = jnp.maximum(c1[:, 0:128], c1[:, 128:256])

    # ---- conv2 (6->16, 5x5) + ReLU + 2x2 max-pool --------------------------
    # Per-tap LHS = 5 vreg-aligned (B,128) chunks of p1 stacked along sublanes.
    def conv2_par(par):
        acc = None
        for i in range(5):
            base = par + i                          # pooled-row offset, 0..5
            slab = jnp.concatenate(
                [p1_ref[pl.ds((base + 2 * k) * B, B), :] for k in range(5)],
                axis=0)                             # (5B, 128)
            d = jnp.dot(slab.astype(cdt), w2_ref[pl.ds(i * 128, 128), :],
                        preferred_element_type=jnp.float32)             # (5B, 256)
            acc = d if acc is None else acc + d
        return jnp.maximum(acc + b2_ref[...], 0.0)

    c2 = jnp.maximum(conv2_par(0), conv2_par(1))              # pool over H
    p2 = jnp.maximum(c2[:, 0:128], c2[:, 128:256])            # (5B, 128), lane=co*5+wp

    # ---- flatten folded into fc1 (5 accumulating dots), fc2, fc3 -----------
    hf = None
    for r in range(5):
        d = jnp.dot(p2[r * B:(r + 1) * B, :].astype(cdt),
                    wf1_ref[pl.ds(r * 128, 128), :],
                    preferred_element_type=jnp.float32)                 # (B, 128)
        hf = d if hf is None else hf + d
    h = jnp.maximum(hf + bf1_ref[...], 0.0)                   # 120 real lanes
    h = jnp.dot(h.astype(cdt), wf2_ref[...], preferred_element_type=jnp.float32)
    h = jnp.maximum(h + bf2_ref[...], 0.0)                    # 84 real lanes
    h = jnp.dot(h.astype(cdt), wf3_ref[...], preferred_element_type=jnp.float32)
    o_ref[...] = (h + bf3_ref[...]).astype(o_ref.dtype)       # 10 real lanes


# --------------------------- one-time weight packing ------------------------

def pack_params(params):
    """Host-side, one-time repacking of PyTorch-layout params into lane-dense,
    128-aligned Toeplitz operands (weights bf16, biases f32)."""
    f32 = np.float32

    # conv1: rows k = i*32 + x_col (160), cols = sub*128 + co*14 + wp (168 real)
    w1 = np.asarray(params["conv1_w"], f32)                    # (6,1,5,5)
    b1 = np.asarray(params["conv1_b"], f32)
    W1 = np.zeros((5 * 32, 256), f32)
    B1 = np.zeros((1, 256), f32)
    for sub in range(2):
        for co in range(6):
            for wp in range(14):
                col = sub * 128 + co * 14 + wp
                B1[0, col] = b1[co]
                wo = 2 * wp + sub
                for i in range(5):
                    for j in range(5):
                        W1[i * 32 + wo + j, col] = w1[co, 0, i, j]

    # conv2: per-tap 128-row blocks, rows k = i*128 + ci*14 + x_col,
    #        cols = sub*128 + co*5 + wp (160 real)
    w2 = np.asarray(params["conv2_w"], f32)                    # (16,6,5,5)
    b2 = np.asarray(params["conv2_b"], f32)
    W2 = np.zeros((5 * 128, 256), f32)
    B2 = np.zeros((1, 256), f32)
    for sub in range(2):
        for co in range(16):
            for wp in range(5):
                col = sub * 128 + co * 5 + wp
                B2[0, col] = b2[co]
                wo = 2 * wp + sub
                for i in range(5):
                    for ci in range(6):
                        for j in range(5):
                            W2[i * 128 + ci * 14 + wo + j, col] = w2[co, ci, i, j]

    # fc1: per-pooled-row 128-row blocks; lane within a block = co*5 + w;
    # matches torch's (c,h,w) flatten order.  120 outputs padded to 128.
    fc1_w = np.asarray(params["fc1_w"], f32)                   # (120, 400)
    Wf1 = np.zeros((5 * 128, 128), f32)
    for hh in range(5):
        for cc in range(16):
            for ww in range(5):
                Wf1[hh * 128 + cc * 5 + ww, :120] = fc1_w[:, cc * 25 + hh * 5 + ww]
    Bf1 = np.zeros((1, 128), f32)
    Bf1[0, :120] = np.asarray(params["fc1_b"], f32)

    Wf2 = np.zeros((128, 128), f32)
    Wf2[:120, :84] = np.asarray(params["fc2_w"], f32).T
    Bf2 = np.zeros((1, 128), f32)
    Bf2[0, :84] = np.asarray(params["fc2_b"], f32)

    Wf3 = np.zeros((128, 128), f32)
    Wf3[:84, :10] = np.asarray(params["fc3_w"], f32).T
    Bf3 = np.zeros((1, 128), f32)
    Bf3[0, :10] = np.asarray(params["fc3_b"], f32)

    bf16 = jnp.bfloat16
    return {
        "w1": jnp.asarray(W1, bf16), "b1": jnp.asarray(B1, jnp.float32),
        "w2": jnp.asarray(W2, bf16), "b2": jnp.asarray(B2, jnp.float32),
        "wf1": jnp.asarray(Wf1, bf16), "bf1": jnp.asarray(Bf1, jnp.float32),
        "wf2": jnp.asarray(Wf2, bf16), "bf2": jnp.asarray(Bf2, jnp.float32),
        "wf3": jnp.asarray(Wf3, bf16), "bf3": jnp.asarray(Bf3, jnp.float32),
    }


# --------------------------------- wrapper ----------------------------------

def net_forward(x, packed, *, block_b=8):
    n, c, hh, ww = x.shape
    assert (c, hh, ww) == (1, 32, 32), "LeNet geometry requires (1, 32, 32) input"
    B = block_b
    assert B % 8 == 0, "per-step batch must be a multiple of 8 (sublane tile)"
    G = -(-n // B)
    n_pad = G * B

    x = x.reshape(n, 32, 32).astype(jnp.float32)
    if n_pad != n:
        x = jnp.concatenate([x, jnp.zeros((n_pad - n, 32, 32), jnp.float32)], 0)
    # De-interleave rows by parity, batch packed minor:
    #   x_prep[g, s*16*B + r*B + b, :] = x[g*B + b, 2*r + s, :]
    x_prep = (x.reshape(G, B, 16, 2, 32)
                .transpose(0, 3, 2, 1, 4)
                .reshape(G, 2 * 16 * B, 32))

    def wspec(shape):
        return pl.BlockSpec(shape, lambda g: (0,) * len(shape))  # VMEM-resident

    out = pl.pallas_call(
        functools.partial(_lenet_kernel, B=B),
        out_shape=jax.ShapeDtypeStruct((n_pad, 128), jnp.float32),
        grid=(G,),
        in_specs=[
            pl.BlockSpec((None, 2 * 16 * B, 32), lambda g: (g, 0, 0)),  # x block
            wspec((160, 256)), wspec((1, 256)),                         # conv1
            wspec((640, 256)), wspec((1, 256)),                         # conv2
            wspec((640, 128)), wspec((1, 128)),                         # fc1
            wspec((128, 128)), wspec((1, 128)),                         # fc2
            wspec((128, 128)), wspec((1, 128)),                         # fc3
        ],
        out_specs=pl.BlockSpec((B, 128), lambda g: (g, 0)),
        scratch_shapes=[pltpu.VMEM((14 * B, 128), jnp.float32)],        # pooled conv1
        compiler_params=pltpu.CompilerParams(
            dimension_semantics=("parallel",)),
    )(x_prep, packed["w1"], packed["b1"], packed["w2"], packed["b2"],
      packed["wf1"], packed["bf1"], packed["wf2"], packed["bf2"],
      packed["wf3"], packed["bf3"])

    return out[:n, :10]


# ------------------------------ reference & init ----------------------------

def reference_forward(x, params):
    """Pure-JAX (XLA) f32 reference of the PyTorch module, for validation."""
    def conv(x, w, b):
        y = jax.lax.conv_general_dilated(
            x, w, window_strides=(1, 1), padding="VALID",
            dimension_numbers=("NCHW", "OIHW", "NCHW"))
        return y + b[None, :, None, None]

    def pool(x):
        return jax.lax.reduce_window(x, -jnp.inf, jax.lax.max,
                                     (1, 1, 2, 2), (1, 1, 2, 2), "VALID")

    y = pool(jax.nn.relu(conv(x, params["conv1_w"], params["conv1_b"])))
    y = pool(jax.nn.relu(conv(y, params["conv2_w"], params["conv2_b"])))
    flat = y.reshape(y.shape[0], -1)                     # NCHW flatten == torch view
    h = jax.nn.relu(flat @ params["fc1_w"].T + params["fc1_b"])
    h = jax.nn.relu(h @ params["fc2_w"].T + params["fc2_b"])
    return h @ params["fc3_w"].T + params["fc3_b"]


def init_params(key):
    ks = jax.random.split(key, 10)

    def u(k, shape, fan_in):
        bound = 1.0 / jnp.sqrt(float(fan_in))
        return jax.random.uniform(k, shape, jnp.float32, -bound, bound)

    return {
        "conv1_w": u(ks[0], (6, 1, 5, 5), 1 * 5 * 5),
        "conv1_b": u(ks[1], (6,), 1 * 5 * 5),
        "conv2_w": u(ks[2], (16, 6, 5, 5), 6 * 5 * 5),
        "conv2_b": u(ks[3], (16,), 6 * 5 * 5),
        "fc1_w": u(ks[4], (120, 400), 400),
        "fc1_b": u(ks[5], (120,), 400),
        "fc2_w": u(ks[6], (84, 120), 120),
        "fc2_b": u(ks[7], (84,), 120),
        "fc3_w": u(ks[8], (10, 84), 84),
        "fc3_b": u(ks[9], (10,), 84),
    }


if __name__ == "__main__":
    key = jax.random.PRNGKey(0)
    pkey, xkey = jax.random.split(key)
    params = init_params(pkey)
    packed = pack_params(params)          # one-time host-side weight packing
    # LeNet geometry requires 32x32 single-channel input (flatten = 16*5*5).
    # n=10 exercises both a multi-step grid (2 steps of 8) and tail padding.
    x = jax.random.normal(xkey, (10, 1, 32, 32), jnp.float32)

    out = jax.jit(net_forward)(x, packed)
    out = jax.block_until_ready(out)
    assert out.shape == (10, 10) and out.dtype == jnp.float32

    # Validate against the pure-JAX f32 reference (bf16 MXU inputs -> loose tol).
    ref = jax.block_until_ready(reference_forward(x, params))
    max_err = float(jnp.max(jnp.abs(out - ref)))
    assert max_err < 5e-2, f"mismatch vs reference: max_err={max_err}"

    print("KERNEL_OK")
</pallas_src>

<mosaic_0001>
module attributes {stable_mosaic.version = 11 : i64} {
  func.func @_lenet_kernel(%arg0: i32, %arg1: memref<1x256x32xf32, #tpu.memory_space<vmem>>, %arg2: memref<160x256xbf16, #tpu.memory_space<vmem>>, %arg3: memref<1x256xf32, #tpu.memory_space<vmem>>, %arg4: memref<640x256xbf16, #tpu.memory_space<vmem>>, %arg5: memref<1x256xf32, #tpu.memory_space<vmem>>, %arg6: memref<640x128xbf16, #tpu.memory_space<vmem>>, %arg7: memref<1x128xf32, #tpu.memory_space<vmem>>, %arg8: memref<128x128xbf16, #tpu.memory_space<vmem>>, %arg9: memref<1x128xf32, #tpu.memory_space<vmem>>, %arg10: memref<128x128xbf16, #tpu.memory_space<vmem>>, %arg11: memref<1x128xf32, #tpu.memory_space<vmem>>, %arg12: memref<8x128xf32, #tpu.memory_space<vmem>>, %arg13: memref<112x128xf32, #tpu.memory_space<vmem>>) attributes {dimension_semantics = [#tpu.dimension_semantics<parallel>], iteration_bounds = array<i64: 2>, scalar_prefetch = 0 : i64, scratch_operands = 1 : i64, tpu.core_type = #tpu.core_type<tc>, window_params = [{transform_indices = @transform_0, window_bounds = array<i64: 1, 256, 32>}, {pipeline_mode = #tpu.pipeline_mode<synchronous>, transform_indices = @transform_1, window_bounds = array<i64: 160, 256>}, {pipeline_mode = #tpu.pipeline_mode<synchronous>, transform_indices = @transform_2, window_bounds = array<i64: 1, 256>}, {pipeline_mode = #tpu.pipeline_mode<synchronous>, transform_indices = @transform_3, window_bounds = array<i64: 640, 256>}, {pipeline_mode = #tpu.pipeline_mode<synchronous>, transform_indices = @transform_4, window_bounds = array<i64: 1, 256>}, {pipeline_mode = #tpu.pipeline_mode<synchronous>, transform_indices = @transform_5, window_bounds = array<i64: 640, 128>}, {pipeline_mode = #tpu.pipeline_mode<synchronous>, transform_indices = @transform_6, window_bounds = array<i64: 1, 128>}, {pipeline_mode = #tpu.pipeline_mode<synchronous>, transform_indices = @transform_7, window_bounds = array<i64: 128, 128>}, {pipeline_mode = #tpu.pipeline_mode<synchronous>, transform_indices = @transform_8, window_bounds = array<i64: 1, 128>}, {pipeline_mode = #tpu.pipeline_mode<synchronous>, transform_indices = @transform_9, window_bounds = array<i64: 128, 128>}, {pipeline_mode = #tpu.pipeline_mode<synchronous>, transform_indices = @transform_10, window_bounds = array<i64: 1, 128>}, {transform_indices = @transform_11, window_bounds = array<i64: 8, 128>}]} {
    %c0 = arith.constant 0 : index
    %c0_0 = arith.constant 0 : index
    %c0_1 = arith.constant 0 : index
    %0 = vector.load %arg1[%c0, %c0_0, %c0_1] : memref<1x256x32xf32, #tpu.memory_space<vmem>>, vector<1x56x32xf32>
    %1 = vector.shape_cast %0 : vector<1x56x32xf32> to vector<56x32xf32>
    %2 = arith.truncf %1 : vector<56x32xf32> to vector<56x32xbf16>
    %c0_2 = arith.constant 0 : index
    %c0_3 = arith.constant 0 : index
    %3 = vector.load %arg2[%c0_2, %c0_3] : memref<160x256xbf16, #tpu.memory_space<vmem>>, vector<32x256xbf16>
    %cst = arith.constant dense<0.000000e+00> : vector<56x256xf32>
    %4 = tpu.matmul %2, %3, %cst {dimension_numbers = #tpu.dot_dimension_numbers<[1], [0], [0], [1], [0, 0, 1, 1], [], []>} : vector<56x32xbf16>, vector<32x256xbf16>, vector<56x256xf32> -> vector<56x256xf32>
    %c0_4 = arith.constant 0 : index
    %c128 = arith.constant 128 : index
    %c0_5 = arith.constant 0 : index
    %5 = vector.load %arg1[%c0_4, %c128, %c0_5] : memref<1x256x32xf32, #tpu.memory_space<vmem>>, vector<1x56x32xf32>
    %6 = vector.shape_cast %5 : vector<1x56x32xf32> to vector<56x32xf32>
    %7 = arith.truncf %6 : vector<56x32xf32> to vector<56x32xbf16>
    %c32 = arith.constant 32 : index
    %c0_6 = arith.constant 0 : index
    %8 = vector.load %arg2[%c32, %c0_6] : memref<160x256xbf16, #tpu.memory_space<vmem>>, vector<32x256xbf16>
    %cst_7 = arith.constant dense<0.000000e+00> : vector<56x256xf32>
    %9 = tpu.matmul %7, %8, %cst_7 {dimension_numbers = #tpu.dot_dimension_numbers<[1], [0], [0], [1], [0, 0, 1, 1], [], []>} : vector<56x32xbf16>, vector<32x256xbf16>, vector<56x256xf32> -> vector<56x256xf32>
    %10 = arith.addf %4, %9 : vector<56x256xf32>
    %c0_8 = arith.constant 0 : index
    %c8 = arith.constant 8 : index
    %c0_9 = arith.constant 0 : index
    %11 = vector.load %arg1[%c0_8, %c8, %c0_9] : memref<1x256x32xf32, #tpu.memory_space<vmem>>, vector<1x56x32xf32>
    %12 = vector.shape_cast %11 : vector<1x56x32xf32> to vector<56x32xf32>
    %13 = arith.truncf %12 : vector<56x32xf32> to vector<56x32xbf16>
    %c64 = arith.constant 64 : index
    %c0_10 = arith.constant 0 : index
    %14 = vector.load %arg2[%c64, %c0_10] : memref<160x256xbf16, #tpu.memory_space<vmem>>, vector<32x256xbf16>
    %cst_11 = arith.constant dense<0.000000e+00> : vector<56x256xf32>
    %15 = tpu.matmul %13, %14, %cst_11 {dimension_numbers = #tpu.dot_dimension_numbers<[1], [0], [0], [1], [0, 0, 1, 1], [], []>} : vector<56x32xbf16>, vector<32x256xbf16>, vector<56x256xf32> -> vector<56x256xf32>
    %16 = arith.addf %10, %15 : vector<56x256xf32>
    %c0_12 = arith.constant 0 : index
    %c136 = arith.constant 136 : index
    %c0_13 = arith.constant 0 : index
    %17 = vector.load %arg1[%c0_12, %c136, %c0_13] : memref<1x256x32xf32, #tpu.memory_space<vmem>>, vector<1x56x32xf32>
    %18 = vector.shape_cast %17 : vector<1x56x32xf32> to vector<56x32xf32>
    %19 = arith.truncf %18 : vector<56x32xf32> to vector<56x32xbf16>
    %c96 = arith.constant 96 : index
    %c0_14 = arith.constant 0 : index
    %20 = vector.load %arg2[%c96, %c0_14] : memref<160x256xbf16, #tpu.memory_space<vmem>>, vector<32x256xbf16>
    %cst_15 = arith.constant dense<0.000000e+00> : vector<56x256xf32>
    %21 = tpu.matmul %19, %20, %cst_15 {dimension_numbers = #tpu.dot_dimension_numbers<[1], [0], [0], [1], [0, 0, 1, 1], [], []>} : vector<56x32xbf16>, vector<32x256xbf16>, vector<56x256xf32> -> vector<56x256xf32>
    %22 = arith.addf %16, %21 : vector<56x256xf32>
    %c0_16 = arith.constant 0 : index
    %c16 = arith.constant 16 : index
    %c0_17 = arith.constant 0 : index
    %23 = vector.load %arg1[%c0_16, %c16, %c0_17] : memref<1x256x32xf32, #tpu.memory_space<vmem>>, vector<1x56x32xf32>
    %24 = vector.shape_cast %23 : vector<1x56x32xf32> to vector<56x32xf32>
    %25 = arith.truncf %24 : vector<56x32xf32> to vector<56x32xbf16>
    %c128_18 = arith.constant 128 : index
    %c0_19 = arith.constant 0 : index
    %26 = vector.load %arg2[%c128_18, %c0_19] : memref<160x256xbf16, #tpu.memory_space<vmem>>, vector<32x256xbf16>
    %cst_20 = arith.constant dense<0.000000e+00> : vector<56x256xf32>
    %27 = tpu.matmul %25, %26, %cst_20 {dimension_numbers = #tpu.dot_dimension_numbers<[1], [0], [0], [1], [0, 0, 1, 1], [], []>} : vector<56x32xbf16>, vector<32x256xbf16>, vector<56x256xf32> -> vector<56x256xf32>
    %28 = arith.addf %22, %27 : vector<56x256xf32>
    %c0_21 = arith.constant 0 : index
    %c0_22 = arith.constant 0 : index
    %29 = vector.load %arg3[%c0_21, %c0_22] : memref<1x256xf32, #tpu.memory_space<vmem>>, vector<1x256xf32>
    %30 = vector.broadcast %29 : vector<1x256xf32> to vector<56x256xf32>
    %31 = arith.addf %28, %30 : vector<56x256xf32>
    %cst_23 = arith.constant 0.000000e+00 : f32
    %32 = vector.broadcast %cst_23 : f32 to vector<56x256xf32>
    %33 = arith.maximumf %31, %32 : vector<56x256xf32>
    %c0_24 = arith.constant 0 : index
    %c128_25 = arith.constant 128 : index
    %c0_26 = arith.constant 0 : index
    %34 = vector.load %arg1[%c0_24, %c128_25, %c0_26] : memref<1x256x32xf32, #tpu.memory_space<vmem>>, vector<1x56x32xf32>
    %35 = vector.shape_cast %34 : vector<1x56x32xf32> to vector<56x32xf32>
    %36 = arith.truncf %35 : vector<56x32xf32> to vector<56x32xbf16>
    %c0_27 = arith.constant 0 : index
    %c0_28 = arith.constant 0 : index
    %37 = vector.load %arg2[%c0_27, %c0_28] : memref<160x256xbf16, #tpu.memory_space<vmem>>, vector<32x256xbf16>
    %cst_29 = arith.constant dense<0.000000e+00> : vector<56x256xf32>
    %38 = tpu.matmul %36, %37, %cst_29 {dimension_numbers = #tpu.dot_dimension_numbers<[1], [0], [0], [1], [0, 0, 1, 1], [], []>} : vector<56x32xbf16>, vector<32x256xbf16>, vector<56x256xf32> -> vector<56x256xf32>
    %c0_30 = arith.constant 0 : index
    %c8_31 = arith.constant 8 : index
    %c0_32 = arith.constant 0 : index
    %39 = vector.load %arg1[%c0_30, %c8_31, %c0_32] : memref<1x256x32xf32, #tpu.memory_space<vmem>>, vector<1x56x32xf32>
    %40 = vector.shape_cast %39 : vector<1x56x32xf32> to vector<56x32xf32>
    %41 = arith.truncf %40 : vector<56x32xf32> to vector<56x32xbf16>
    %c32_33 = arith.constant 32 : index
    %c0_34 = arith.constant 0 : index
    %42 = vector.load %arg2[%c32_33, %c0_34] : memref<160x256xbf16, #tpu.memory_space<vmem>>, vector<32x256xbf16>
    %cst_35 = arith.constant dense<0.000000e+00> : vector<56x256xf32>
    %43 = tpu.matmul %41, %42, %cst_35 {dimension_numbers = #tpu.dot_dimension_numbers<[1], [0], [0], [1], [0, 0, 1, 1], [], []>} : vector<56x32xbf16>, vector<32x256xbf16>, vector<56x256xf32> -> vector<56x256xf32>
    %44 = arith.addf %38, %43 : vector<56x256xf32>
    %c0_36 = arith.constant 0 : index
    %c136_37 = arith.constant 136 : index
    %c0_38 = arith.constant 0 : index
    %45 = vector.load %arg1[%c0_36, %c136_37, %c0_38] : memref<1x256x32xf32, #tpu.memory_space<vmem>>, vector<1x56x32xf32>
    %46 = vector.shape_cast %45 : vector<1x56x32xf32> to vector<56x32xf32>
    %47 = arith.truncf %46 : vector<56x32xf32> to vector<56x32xbf16>
    %c64_39 = arith.constant 64 : index
    %c0_40 = arith.constant 0 : index
    %48 = vector.load %arg2[%c64_39, %c0_40] : memref<160x256xbf16, #tpu.memory_space<vmem>>, vector<32x256xbf16>
    %cst_41 = arith.constant dense<0.000000e+00> : vector<56x256xf32>
    %49 = tpu.matmul %47, %48, %cst_41 {dimension_numbers = #tpu.dot_dimension_numbers<[1], [0], [0], [1], [0, 0, 1, 1], [], []>} : vector<56x32xbf16>, vector<32x256xbf16>, vector<56x256xf32> -> vector<56x256xf32>
    %50 = arith.addf %44, %49 : vector<56x256xf32>
    %c0_42 = arith.constant 0 : index
    %c16_43 = arith.constant 16 : index
    %c0_44 = arith.constant 0 : index
    %51 = vector.load %arg1[%c0_42, %c16_43, %c0_44] : memref<1x256x32xf32, #tpu.memory_space<vmem>>, vector<1x56x32xf32>
    %52 = vector.shape_cast %51 : vector<1x56x32xf32> to vector<56x32xf32>
    %53 = arith.truncf %52 : vector<56x32xf32> to vector<56x32xbf16>
    %c96_45 = arith.constant 96 : index
    %c0_46 = arith.constant 0 : index
    %54 = vector.load %arg2[%c96_45, %c0_46] : memref<160x256xbf16, #tpu.memory_space<vmem>>, vector<32x256xbf16>
    %cst_47 = arith.constant dense<0.000000e+00> : vector<56x256xf32>
    %55 = tpu.matmul %53, %54, %cst_47 {dimension_numbers = #tpu.dot_dimension_numbers<[1], [0], [0], [1], [0, 0, 1, 1], [], []>} : vector<56x32xbf16>, vector<32x256xbf16>, vector<56x256xf32> -> vector<56x256xf32>
    %56 = arith.addf %50, %55 : vector<56x256xf32>
    %c0_48 = arith.constant 0 : index
    %c144 = arith.constant 144 : index
    %c0_49 = arith.constant 0 : index
    %57 = vector.load %arg1[%c0_48, %c144, %c0_49] : memref<1x256x32xf32, #tpu.memory_space<vmem>>, vector<1x56x32xf32>
    %58 = vector.shape_cast %57 : vector<1x56x32xf32> to vector<56x32xf32>
    %59 = arith.truncf %58 : vector<56x32xf32> to vector<56x32xbf16>
    %c128_50 = arith.constant 128 : index
    %c0_51 = arith.constant 0 : index
    %60 = vector.load %arg2[%c128_50, %c0_51] : memref<160x256xbf16, #tpu.memory_space<vmem>>, vector<32x256xbf16>
    %cst_52 = arith.constant dense<0.000000e+00> : vector<56x256xf32>
    %61 = tpu.matmul %59, %60, %cst_52 {dimension_numbers = #tpu.dot_dimension_numbers<[1], [0], [0], [1], [0, 0, 1, 1], [], []>} : vector<56x32xbf16>, vector<32x256xbf16>, vector<56x256xf32> -> vector<56x256xf32>
    %62 = arith.addf %56, %61 : vector<56x256xf32>
    %c0_53 = arith.constant 0 : index
    %c0_54 = arith.constant 0 : index
    %63 = vector.load %arg3[%c0_53, %c0_54] : memref<1x256xf32, #tpu.memory_space<vmem>>, vector<1x256xf32>
    %64 = vector.broadcast %63 : vector<1x256xf32> to vector<56x256xf32>
    %65 = arith.addf %62, %64 : vector<56x256xf32>
    %cst_55 = arith.constant 0.000000e+00 : f32
    %66 = vector.broadcast %cst_55 : f32 to vector<56x256xf32>
    %67 = arith.maximumf %65, %66 : vector<56x256xf32>
    %68 = arith.maximumf %33, %67 : vector<56x256xf32>
    %69 = vector.extract_strided_slice %68 {offsets = [0, 0], sizes = [56, 128], strides = [1, 1]} : vector<56x256xf32> to vector<56x128xf32>
    %70 = vector.extract_strided_slice %68 {offsets = [0, 128], sizes = [56, 128], strides = [1, 1]} : vector<56x256xf32> to vector<56x128xf32>
    %71 = arith.maximumf %69, %70 : vector<56x128xf32>
    %c0_56 = arith.constant 0 : index
    %c0_57 = arith.constant 0 : index
    %72 = vector.load %arg13[%c0_56, %c0_57] : memref<112x128xf32, #tpu.memory_space<vmem>>, vector<56x128xf32>
    tpu.vector_store %arg13[%c0_56, %c0_57], %71 {strides = array<i32>} : memref<112x128xf32, #tpu.memory_space<vmem>>, vector<56x128xf32>,
    %c0_58 = arith.constant 0 : index
    %c56 = arith.constant 56 : index
    %c0_59 = arith.constant 0 : index
    %73 = vector.load %arg1[%c0_58, %c56, %c0_59] : memref<1x256x32xf32, #tpu.memory_space<vmem>>, vector<1x56x32xf32>
    %74 = vector.shape_cast %73 : vector<1x56x32xf32> to vector<56x32xf32>
    %75 = arith.truncf %74 : vector<56x32xf32> to vector<56x32xbf16>
    %c0_60 = arith.constant 0 : index
    %c0_61 = arith.constant 0 : index
    %76 = vector.load %arg2[%c0_60, %c0_61] : memref<160x256xbf16, #tpu.memory_space<vmem>>, vector<32x256xbf16>
    %cst_62 = arith.constant dense<0.000000e+00> : vector<56x256xf32>
    %77 = tpu.matmul %75, %76, %cst_62 {dimension_numbers = #tpu.dot_dimension_numbers<[1], [0], [0], [1], [0, 0, 1, 1], [], []>} : vector<56x32xbf16>, vector<32x256xbf16>, vector<56x256xf32> -> vector<56x256xf32>
    %c0_63 = arith.constant 0 : index
    %c184 = arith.constant 184 : index
    %c0_64 = arith.constant 0 : index
    %78 = vector.load %arg1[%c0_63, %c184, %c0_64] : memref<1x256x32xf32, #tpu.memory_space<vmem>>, vector<1x56x32xf32>
    %79 = vector.shape_cast %78 : vector<1x56x32xf32> to vector<56x32xf32>
    %80 = arith.truncf %79 : vector<56x32xf32> to vector<56x32xbf16>
    %c32_65 = arith.constant 32 : index
    %c0_66 = arith.constant 0 : index
    %81 = vector.load %arg2[%c32_65, %c0_66] : memref<160x256xbf16, #tpu.memory_space<vmem>>, vector<32x256xbf16>
    %cst_67 = arith.constant dense<0.000000e+00> : vector<56x256xf32>
    %82 = tpu.matmul %80, %81, %cst_67 {dimension_numbers = #tpu.dot_dimension_numbers<[1], [0], [0], [1], [0, 0, 1, 1], [], []>} : vector<56x32xbf16>, vector<32x256xbf16>, vector<56x256xf32> -> vector<56x256xf32>
    %83 = arith.addf %77, %82 : vector<56x256xf32>
    %c0_68 = arith.constant 0 : index
    %c64_69 = arith.constant 64 : index
    %c0_70 = arith.constant 0 : index
    %84 = vector.load %arg1[%c0_68, %c64_69, %c0_70] : memref<1x256x32xf32, #tpu.memory_space<vmem>>, vector<1x56x32xf32>
    %85 = vector.shape_cast %84 : vector<1x56x32xf32> to vector<56x32xf32>
    %86 = arith.truncf %85 : vector<56x32xf32> to vector<56x32xbf16>
    %c64_71 = arith.constant 64 : index
    %c0_72 = arith.constant 0 : index
    %87 = vector.load %arg2[%c64_71, %c0_72] : memref<160x256xbf16, #tpu.memory_space<vmem>>, vector<32x256xbf16>
    %cst_73 = arith.constant dense<0.000000e+00> : vector<56x256xf32>
    %88 = tpu.matmul %86, %87, %cst_73 {dimension_numbers = #tpu.dot_dimension_numbers<[1], [0], [0], [1], [0, 0, 1, 1], [], []>} : vector<56x32xbf16>, vector<32x256xbf16>, vector<56x256xf32> -> vector<56x256xf32>
    %89 = arith.addf %83, %88 : vector<56x256xf32>
    %c0_74 = arith.constant 0 : index
    %c192 = arith.constant 192 : index
    %c0_75 = arith.constant 0 : index
    %90 = vector.load %arg1[%c0_74, %c192, %c0_75] : memref<1x256x32xf32, #tpu.memory_space<vmem>>, vector<1x56x32xf32>
    %91 = vector.shape_cast %90 : vector<1x56x32xf32> to vector<56x32xf32>
    %92 = arith.truncf %91 : vector<56x32xf32> to vector<56x32xbf16>
    %c96_76 = arith.constant 96 : index
    %c0_77 = arith.constant 0 : index
    %93 = vector.load %arg2[%c96_76, %c0_77] : memref<160x256xbf16, #tpu.memory_space<vmem>>, vector<32x256xbf16>
    %cst_78 = arith.constant dense<0.000000e+00> : vector<56x256xf32>
    %94 = tpu.matmul %92, %93, %cst_78 {dimension_numbers = #tpu.dot_dimension_numbers<[1], [0], [0], [1], [0, 0, 1, 1], [], []>} : vector<56x32xbf16>, vector<32x256xbf16>, vector<56x256xf32> -> vector<56x256xf32>
    %95 = arith.addf %89, %94 : vector<56x256xf32>
    %c0_79 = arith.constant 0 : index
    %c72 = arith.constant 72 : index
    %c0_80 = arith.constant 0 : index
    %96 = vector.load %arg1[%c0_79, %c72, %c0_80] : memref<1x256x32xf32, #tpu.memory_space<vmem>>, vector<1x56x32xf32>
    %97 = vector.shape_cast %96 : vector<1x56x32xf32> to vector<56x32xf32>
    %98 = arith.truncf %97 : vector<56x32xf32> to vector<56x32xbf16>
    %c128_81 = arith.constant 128 : index
    %c0_82 = arith.constant 0 : index
    %99 = vector.load %arg2[%c128_81, %c0_82] : memref<160x256xbf16, #tpu.memory_space<vmem>>, vector<32x256xbf16>
    %cst_83 = arith.constant dense<0.000000e+00> : vector<56x256xf32>
    %100 = tpu.matmul %98, %99, %cst_83 {dimension_numbers = #tpu.dot_dimension_numbers<[1], [0], [0], [1], [0, 0, 1, 1], [], []>} : vector<56x32xbf16>, vector<32x256xbf16>, vector<56x256xf32> -> vector<56x256xf32>
    %101 = arith.addf %95, %100 : vector<56x256xf32>
    %c0_84 = arith.constant 0 : index
    %c0_85 = arith.constant 0 : index
    %102 = vector.load %arg3[%c0_84, %c0_85] : memref<1x256xf32, #tpu.memory_space<vmem>>, vector<1x256xf32>
    %103 = vector.broadcast %102 : vector<1x256xf32> to vector<56x256xf32>
    %104 = arith.addf %101, %103 : vector<56x256xf32>
    %cst_86 = arith.constant 0.000000e+00 : f32
    %105 = vector.broadcast %cst_86 : f32 to vector<56x256xf32>
    %106 = arith.maximumf %104, %105 : vector<56x256xf32>
    %c0_87 = arith.constant 0 : index
    %c184_88 = arith.constant 184 : index
    %c0_89 = arith.constant 0 : index
    %107 = vector.load %arg1[%c0_87, %c184_88, %c0_89] : memref<1x256x32xf32, #tpu.memory_space<vmem>>, vector<1x56x32xf32>
    %108 = vector.shape_cast %107 : vector<1x56x32xf32> to vector<56x32xf32>
    %109 = arith.truncf %108 : vector<56x32xf32> to vector<56x32xbf16>
    %c0_90 = arith.constant 0 : index
    %c0_91 = arith.constant 0 : index
    %110 = vector.load %arg2[%c0_90, %c0_91] : memref<160x256xbf16, #tpu.memory_space<vmem>>, vector<32x256xbf16>
    %cst_92 = arith.constant dense<0.000000e+00> : vector<56x256xf32>
    %111 = tpu.matmul %109, %110, %cst_92 {dimension_numbers = #tpu.dot_dimension_numbers<[1], [0], [0], [1], [0, 0, 1, 1], [], []>} : vector<56x32xbf16>, vector<32x256xbf16>, vector<56x256xf32> -> vector<56x256xf32>
    %c0_93 = arith.constant 0 : index
    %c64_94 = arith.constant 64 : index
    %c0_95 = arith.constant 0 : index
    %112 = vector.load %arg1[%c0_93, %c64_94, %c0_95] : memref<1x256x32xf32, #tpu.memory_space<vmem>>, vector<1x56x32xf32>
    %113 = vector.shape_cast %112 : vector<1x56x32xf32> to vector<56x32xf32>
    %114 = arith.truncf %113 : vector<56x32xf32> to vector<56x32xbf16>
    %c32_96 = arith.constant 32 : index
    %c0_97 = arith.constant 0 : index
    %115 = vector.load %arg2[%c32_96, %c0_97] : memref<160x256xbf16, #tpu.memory_space<vmem>>, vector<32x256xbf16>
    %cst_98 = arith.constant dense<0.000000e+00> : vector<56x256xf32>
    %116 = tpu.matmul %114, %115, %cst_98 {dimension_numbers = #tpu.dot_dimension_numbers<[1], [0], [0], [1], [0, 0, 1, 1], [], []>} : vector<56x32xbf16>, vector<32x256xbf16>, vector<56x256xf32> -> vector<56x256xf32>
    %117 = arith.addf %111, %116 : vector<56x256xf32>
    %c0_99 = arith.constant 0 : index
    %c192_100 = arith.constant 192 : index
    %c0_101 = arith.constant 0 : index
    %118 = vector.load %arg1[%c0_99, %c192_100, %c0_101] : memref<1x256x32xf32, #tpu.memory_space<vmem>>, vector<1x56x32xf32>
    %119 = vector.shape_cast %118 : vector<1x56x32xf32> to vector<56x32xf32>
    %120 = arith.truncf %119 : vector<56x32xf32> to vector<56x32xbf16>
    %c64_102 = arith.constant 64 : index
    %c0_103 = arith.constant 0 : index
    %121 = vector.load %arg2[%c64_102, %c0_103] : memref<160x256xbf16, #tpu.memory_space<vmem>>, vector<32x256xbf16>
    %cst_104 = arith.constant dense<0.000000e+00> : vector<56x256xf32>
    %122 = tpu.matmul %120, %121, %cst_104 {dimension_numbers = #tpu.dot_dimension_numbers<[1], [0], [0], [1], [0, 0, 1, 1], [], []>} : vector<56x32xbf16>, vector<32x256xbf16>, vector<56x256xf32> -> vector<56x256xf32>
    %123 = arith.addf %117, %122 : vector<56x256xf32>
    %c0_105 = arith.constant 0 : index
    %c72_106 = arith.constant 72 : index
    %c0_107 = arith.constant 0 : index
    %124 = vector.load %arg1[%c0_105, %c72_106, %c0_107] : memref<1x256x32xf32, #tpu.memory_space<vmem>>, vector<1x56x32xf32>
    %125 = vector.shape_cast %124 : vector<1x56x32xf32> to vector<56x32xf32>
    %126 = arith.truncf %125 : vector<56x32xf32> to vector<56x32xbf16>
    %c96_108 = arith.constant 96 : index
    %c0_109 = arith.constant 0 : index
    %127 = vector.load %arg2[%c96_108, %c0_109] : memref<160x256xbf16, #tpu.memory_space<vmem>>, vector<32x256xbf16>
    %cst_110 = arith.constant dense<0.000000e+00> : vector<56x256xf32>
    %128 = tpu.matmul %126, %127, %cst_110 {dimension_numbers = #tpu.dot_dimension_numbers<[1], [0], [0], [1], [0, 0, 1, 1], [], []>} : vector<56x32xbf16>, vector<32x256xbf16>, vector<56x256xf32> -> vector<56x256xf32>
    %129 = arith.addf %123, %128 : vector<56x256xf32>
    %c0_111 = arith.constant 0 : index
    %c200 = arith.constant 200 : index
    %c0_112 = arith.constant 0 : index
    %130 = vector.load %arg1[%c0_111, %c200, %c0_112] : memref<1x256x32xf32, #tpu.memory_space<vmem>>, vector<1x56x32xf32>
    %131 = vector.shape_cast %130 : vector<1x56x32xf32> to vector<56x32xf32>
    %132 = arith.truncf %131 : vector<56x32xf32> to vector<56x32xbf16>
    %c128_113 = arith.constant 128 : index
    %c0_114 = arith.constant 0 : index
    %133 = vector.load %arg2[%c128_113, %c0_114] : memref<160x256xbf16, #tpu.memory_space<vmem>>, vector<32x256xbf16>
    %cst_115 = arith.constant dense<0.000000e+00> : vector<56x256xf32>
    %134 = tpu.matmul %132, %133, %cst_115 {dimension_numbers = #tpu.dot_dimension_numbers<[1], [0], [0], [1], [0, 0, 1, 1], [], []>} : vector<56x32xbf16>, vector<32x256xbf16>, vector<56x256xf32> -> vector<56x256xf32>
    %135 = arith.addf %129, %134 : vector<56x256xf32>
    %c0_116 = arith.constant 0 : index
    %c0_117 = arith.constant 0 : index
    %136 = vector.load %arg3[%c0_116, %c0_117] : memref<1x256xf32, #tpu.memory_space<vmem>>, vector<1x256xf32>
    %137 = vector.broadcast %136 : vector<1x256xf32> to vector<56x256xf32>
    %138 = arith.addf %135, %137 : vector<56x256xf32>
    %cst_118 = arith.constant 0.000000e+00 : f32
    %139 = vector.broadcast %cst_118 : f32 to vector<56x256xf32>
    %140 = arith.maximumf %138, %139 : vector<56x256xf32>
    %141 = arith.maximumf %106, %140 : vector<56x256xf32>
    %142 = vector.extract_strided_slice %141 {offsets = [0, 0], sizes = [56, 128], strides = [1, 1]} : vector<56x256xf32> to vector<56x128xf32>
    %143 = vector.extract_strided_slice %141 {offsets = [0, 128], sizes = [56, 128], strides = [1, 1]} : vector<56x256xf32> to vector<56x128xf32>
    %144 = arith.maximumf %142, %143 : vector<56x128xf32>
    %c56_119 = arith.constant 56 : index
    %c0_120 = arith.constant 0 : index
    %145 = vector.load %arg13[%c56_119, %c0_120] : memref<112x128xf32, #tpu.memory_space<vmem>>, vector<56x128xf32>
    tpu.vector_store %arg13[%c56_119, %c0_120], %144 {strides = array<i32>} : memref<112x128xf32, #tpu.memory_space<vmem>>, vector<56x128xf32>,
    %c0_121 = arith.constant 0 : index
    %c0_122 = arith.constant 0 : index
    %146 = vector.load %arg13[%c0_121, %c0_122] : memref<112x128xf32, #tpu.memory_space<vmem>>, vector<8x128xf32>
    %c16_123 = arith.constant 16 : index
    %c0_124 = arith.constant 0 : index
    %147 = vector.load %arg13[%c16_123, %c0_124] : memref<112x128xf32, #tpu.memory_space<vmem>>, vector<8x128xf32>
    %c32_125 = arith.constant 32 : index
    %c0_126 = arith.constant 0 : index
    %148 = vector.load %arg13[%c32_125, %c0_126] : memref<112x128xf32, #tpu.memory_space<vmem>>, vector<8x128xf32>
    %c48 = arith.constant 48 : index
    %c0_127 = arith.constant 0 : index
    %149 = vector.load %arg13[%c48, %c0_127] : memref<112x128xf32, #tpu.memory_space<vmem>>, vector<8x128xf32>
    %c64_128 = arith.constant 64 : index
    %c0_129 = arith.constant 0 : index
    %150 = vector.load %arg13[%c64_128, %c0_129] : memref<112x128xf32, #tpu.memory_space<vmem>>, vector<8x128xf32>
    %151 = tpu.concatenate %146, %147, %148, %149, %150 in 0 : vector<8x128xf32>, vector<8x128xf32>, vector<8x128xf32>, vector<8x128xf32>, vector<8x128xf32> -> vector<40x128xf32>
    %152 = arith.truncf %151 : vector<40x128xf32> to vector<40x128xbf16>
    %c0_130 = arith.constant 0 : index
    %c0_131 = arith.constant 0 : index
    %153 = vector.load %arg4[%c0_130, %c0_131] : memref<640x256xbf16, #tpu.memory_space<vmem>>, vector<128x256xbf16>
    %cst_132 = arith.constant dense<0.000000e+00> : vector<40x256xf32>
    %154 = tpu.matmul %152, %153, %cst_132 {dimension_numbers = #tpu.dot_dimension_numbers<[1], [0], [0], [1], [0, 0, 1, 1], [], []>} : vector<40x128xbf16>, vector<128x256xbf16>, vector<40x256xf32> -> vector<40x256xf32>
    %c8_133 = arith.constant 8 : index
    %c0_134 = arith.constant 0 : index
    %155 = vector.load %arg13[%c8_133, %c0_134] : memref<112x128xf32, #tpu.memory_space<vmem>>, vector<8x128xf32>
    %c24 = arith.constant 24 : index
    %c0_135 = arith.constant 0 : index
    %156 = vector.load %arg13[%c24, %c0_135] : memref<112x128xf32, #tpu.memory_space<vmem>>, vector<8x128xf32>
    %c40 = arith.constant 40 : index
    %c0_136 = arith.constant 0 : index
    %157 = vector.load %arg13[%c40, %c0_136] : memref<112x128xf32, #tpu.memory_space<vmem>>, vector<8x128xf32>
    %c56_137 = arith.constant 56 : index
    %c0_138 = arith.constant 0 : index
    %158 = vector.load %arg13[%c56_137, %c0_138] : memref<112x128xf32, #tpu.memory_space<vmem>>, vector<8x128xf32>
    %c72_139 = arith.constant 72 : index
    %c0_140 = arith.constant 0 : index
    %159 = vector.load %arg13[%c72_139, %c0_140] : memref<112x128xf32, #tpu.memory_space<vmem>>, vector<8x128xf32>
    %160 = tpu.concatenate %155, %156, %157, %158, %159 in 0 : vector<8x128xf32>, vector<8x128xf32>, vector<8x128xf32>, vector<8x128xf32>, vector<8x128xf32> -> vector<40x128xf32>
    %161 = arith.truncf %160 : vector<40x128xf32> to vector<40x128xbf16>
    %c128_141 = arith.constant 128 : index
    %c0_142 = arith.constant 0 : index
    %162 = vector.load %arg4[%c128_141, %c0_142] : memref<640x256xbf16, #tpu.memory_space<vmem>>, vector<128x256xbf16>
    %cst_143 = arith.constant dense<0.000000e+00> : vector<40x256xf32>
    %163 = tpu.matmul %161, %162, %cst_143 {dimension_numbers = #tpu.dot_dimension_numbers<[1], [0], [0], [1], [0, 0, 1, 1], [], []>} : vector<40x128xbf16>, vector<128x256xbf16>, vector<40x256xf32> -> vector<40x256xf32>
    %164 = arith.addf %154, %163 : vector<40x256xf32>
    %c16_144 = arith.constant 16 : index
    %c0_145 = arith.constant 0 : index
    %165 = vector.load %arg13[%c16_144, %c0_145] : memref<112x128xf32, #tpu.memory_space<vmem>>, vector<8x128xf32>
    %c32_146 = arith.constant 32 : index
    %c0_147 = arith.constant 0 : index
    %166 = vector.load %arg13[%c32_146, %c0_147] : memref<112x128xf32, #tpu.memory_space<vmem>>, vector<8x128xf32>
    %c48_148 = arith.constant 48 : index
    %c0_149 = arith.constant 0 : index
    %167 = vector.load %arg13[%c48_148, %c0_149] : memref<112x128xf32, #tpu.memory_space<vmem>>, vector<8x128xf32>
    %c64_150 = arith.constant 64 : index
    %c0_151 = arith.constant 0 : index
    %168 = vector.load %arg13[%c64_150, %c0_151] : memref<112x128xf32, #tpu.memory_space<vmem>>, vector<8x128xf32>
    %c80 = arith.constant 80 : index
    %c0_152 = arith.constant 0 : index
    %169 = vector.load %arg13[%c80, %c0_152] : memref<112x128xf32, #tpu.memory_space<vmem>>, vector<8x128xf32>
    %170 = tpu.concatenate %165, %166, %167, %168, %169 in 0 : vector<8x128xf32>, vector<8x128xf32>, vector<8x128xf32>, vector<8x128xf32>, vector<8x128xf32> -> vector<40x128xf32>
    %171 = arith.truncf %170 : vector<40x128xf32> to vector<40x128xbf16>
    %c256 = arith.constant 256 : index
    %c0_153 = arith.constant 0 : index
    %172 = vector.load %arg4[%c256, %c0_153] : memref<640x256xbf16, #tpu.memory_space<vmem>>, vector<128x256xbf16>
    %cst_154 = arith.constant dense<0.000000e+00> : vector<40x256xf32>
    %173 = tpu.matmul %171, %172, %cst_154 {dimension_numbers = #tpu.dot_dimension_numbers<[1], [0], [0], [1], [0, 0, 1, 1], [], []>} : vector<40x128xbf16>, vector<128x256xbf16>, vector<40x256xf32> -> vector<40x256xf32>
    %174 = arith.addf %164, %173 : vector<40x256xf32>
    %c24_155 = arith.constant 24 : index
    %c0_156 = arith.constant 0 : index
    %175 = vector.load %arg13[%c24_155, %c0_156] : memref<112x128xf32, #tpu.memory_space<vmem>>, vector<8x128xf32>
    %c40_157 = arith.constant 40 : index
    %c0_158 = arith.constant 0 : index
    %176 = vector.load %arg13[%c40_157, %c0_158] : memref<112x128xf32, #tpu.memory_space<vmem>>, vector<8x128xf32>
    %c56_159 = arith.constant 56 : index
    %c0_160 = arith.constant 0 : index
    %177 = vector.load %arg13[%c56_159, %c0_160] : memref<112x128xf32, #tpu.memory_space<vmem>>, vector<8x128xf32>
    %c72_161 = arith.constant 72 : index
    %c0_162 = arith.constant 0 : index
    %178 = vector.load %arg13[%c72_161, %c0_162] : memref<112x128xf32, #tpu.memory_space<vmem>>, vector<8x128xf32>
    %c88 = arith.constant 88 : index
    %c0_163 = arith.constant 0 : index
    %179 = vector.load %arg13[%c88, %c0_163] : memref<112x128xf32, #tpu.memory_space<vmem>>, vector<8x128xf32>
    %180 = tpu.concatenate %175, %176, %177, %178, %179 in 0 : vector<8x128xf32>, vector<8x128xf32>, vector<8x128xf32>, vector<8x128xf32>, vector<8x128xf32> -> vector<40x128xf32>
    %181 = arith.truncf %180 : vector<40x128xf32> to vector<40x128xbf16>
    %c384 = arith.constant 384 : index
    %c0_164 = arith.constant 0 : index
    %182 = vector.load %arg4[%c384, %c0_164] : memref<640x256xbf16, #tpu.memory_space<vmem>>, vector<128x256xbf16>
    %cst_165 = arith.constant dense<0.000000e+00> : vector<40x256xf32>
    %183 = tpu.matmul %181, %182, %cst_165 {dimension_numbers = #tpu.dot_dimension_numbers<[1], [0], [0], [1], [0, 0, 1, 1], [], []>} : vector<40x128xbf16>, vector<128x256xbf16>, vector<40x256xf32> -> vector<40x256xf32>
    %184 = arith.addf %174, %183 : vector<40x256xf32>
    %c32_166 = arith.constant 32 : index
    %c0_167 = arith.constant 0 : index
    %185 = vector.load %arg13[%c32_166, %c0_167] : memref<112x128xf32, #tpu.memory_space<vmem>>, vector<8x128xf32>
    %c48_168 = arith.constant 48 : index
    %c0_169 = arith.constant 0 : index
    %186 = vector.load %arg13[%c48_168, %c0_169] : memref<112x128xf32, #tpu.memory_space<vmem>>, vector<8x128xf32>
    %c64_170 = arith.constant 64 : index
    %c0_171 = arith.constant 0 : index
    %187 = vector.load %arg13[%c64_170, %c0_171] : memref<112x128xf32, #tpu.memory_space<vmem>>, vector<8x128xf32>
    %c80_172 = arith.constant 80 : index
    %c0_173 = arith.constant 0 : index
    %188 = vector.load %arg13[%c80_172, %c0_173] : memref<112x128xf32, #tpu.memory_space<vmem>>, vector<8x128xf32>
    %c96_174 = arith.constant 96 : index
    %c0_175 = arith.constant 0 : index
    %189 = vector.load %arg13[%c96_174, %c0_175] : memref<112x128xf32, #tpu.memory_space<vmem>>, vector<8x128xf32>
    %190 = tpu.concatenate %185, %186, %187, %188, %189 in 0 : vector<8x128xf32>, vector<8x128xf32>, vector<8x128xf32>, vector<8x128xf32>, vector<8x128xf32> -> vector<40x128xf32>
    %191 = arith.truncf %190 : vector<40x128xf32> to vector<40x128xbf16>
    %c512 = arith.constant 512 : index
    %c0_176 = arith.constant 0 : index
    %192 = vector.load %arg4[%c512, %c0_176] : memref<640x256xbf16, #tpu.memory_space<vmem>>, vector<128x256xbf16>
    %cst_177 = arith.constant dense<0.000000e+00> : vector<40x256xf32>
    %193 = tpu.matmul %191, %192, %cst_177 {dimension_numbers = #tpu.dot_dimension_numbers<[1], [0], [0], [1], [0, 0, 1, 1], [], []>} : vector<40x128xbf16>, vector<128x256xbf16>, vector<40x256xf32> -> vector<40x256xf32>
    %194 = arith.addf %184, %193 : vector<40x256xf32>
    %c0_178 = arith.constant 0 : index
    %c0_179 = arith.constant 0 : index
    %195 = vector.load %arg5[%c0_178, %c0_179] : memref<1x256xf32, #tpu.memory_space<vmem>>, vector<1x256xf32>
    %196 = vector.broadcast %195 : vector<1x256xf32> to vector<40x256xf32>
    %197 = arith.addf %194, %196 : vector<40x256xf32>
    %cst_180 = arith.constant 0.000000e+00 : f32
    %198 = vector.broadcast %cst_180 : f32 to vector<40x256xf32>
    %199 = arith.maximumf %197, %198 : vector<40x256xf32>
    %c8_181 = arith.constant 8 : index
    %c0_182 = arith.constant 0 : index
    %200 = vector.load %arg13[%c8_181, %c0_182] : memref<112x128xf32, #tpu.memory_space<vmem>>, vector<8x128xf32>
    %c24_183 = arith.constant 24 : index
    %c0_184 = arith.constant 0 : index
    %201 = vector.load %arg13[%c24_183, %c0_184] : memref<112x128xf32, #tpu.memory_space<vmem>>, vector<8x128xf32>
    %c40_185 = arith.constant 40 : index
    %c0_186 = arith.constant 0 : index
    %202 = vector.load %arg13[%c40_185, %c0_186] : memref<112x128xf32, #tpu.memory_space<vmem>>, vector<8x128xf32>
    %c56_187 = arith.constant 56 : index
    %c0_188 = arith.constant 0 : index
    %203 = vector.load %arg13[%c56_187, %c0_188] : memref<112x128xf32, #tpu.memory_space<vmem>>, vector<8x128xf32>
    %c72_189 = arith.constant 72 : index
    %c0_190 = arith.constant 0 : index
    %204 = vector.load %arg13[%c72_189, %c0_190] : memref<112x128xf32, #tpu.memory_space<vmem>>, vector<8x128xf32>
    %205 = tpu.concatenate %200, %201, %202, %203, %204 in 0 : vector<8x128xf32>, vector<8x128xf32>, vector<8x128xf32>, vector<8x128xf32>, vector<8x128xf32> -> vector<40x128xf32>
    %206 = arith.truncf %205 : vector<40x128xf32> to vector<40x128xbf16>
    %c0_191 = arith.constant 0 : index
    %c0_192 = arith.constant 0 : index
    %207 = vector.load %arg4[%c0_191, %c0_192] : memref<640x256xbf16, #tpu.memory_space<vmem>>, vector<128x256xbf16>
    %cst_193 = arith.constant dense<0.000000e+00> : vector<40x256xf32>
    %208 = tpu.matmul %206, %207, %cst_193 {dimension_numbers = #tpu.dot_dimension_numbers<[1], [0], [0], [1], [0, 0, 1, 1], [], []>} : vector<40x128xbf16>, vector<128x256xbf16>, vector<40x256xf32> -> vector<40x256xf32>
    %c16_194 = arith.constant 16 : index
    %c0_195 = arith.constant 0 : index
    %209 = vector.load %arg13[%c16_194, %c0_195] : memref<112x128xf32, #tpu.memory_space<vmem>>, vector<8x128xf32>
    %c32_196 = arith.constant 32 : index
    %c0_197 = arith.constant 0 : index
    %210 = vector.load %arg13[%c32_196, %c0_197] : memref<112x128xf32, #tpu.memory_space<vmem>>, vector<8x128xf32>
    %c48_198 = arith.constant 48 : index
    %c0_199 = arith.constant 0 : index
    %211 = vector.load %arg13[%c48_198, %c0_199] : memref<112x128xf32, #tpu.memory_space<vmem>>, vector<8x128xf32>
    %c64_200 = arith.constant 64 : index
    %c0_201 = arith.constant 0 : index
    %212 = vector.load %arg13[%c64_200, %c0_201] : memref<112x128xf32, #tpu.memory_space<vmem>>, vector<8x128xf32>
    %c80_202 = arith.constant 80 : index
    %c0_203 = arith.constant 0 : index
    %213 = vector.load %arg13[%c80_202, %c0_203] : memref<112x128xf32, #tpu.memory_space<vmem>>, vector<8x128xf32>
    %214 = tpu.concatenate %209, %210, %211, %212, %213 in 0 : vector<8x128xf32>, vector<8x128xf32>, vector<8x128xf32>, vector<8x128xf32>, vector<8x128xf32> -> vector<40x128xf32>
    %215 = arith.truncf %214 : vector<40x128xf32> to vector<40x128xbf16>
    %c128_204 = arith.constant 128 : index
    %c0_205 = arith.constant 0 : index
    %216 = vector.load %arg4[%c128_204, %c0_205] : memref<640x256xbf16, #tpu.memory_space<vmem>>, vector<128x256xbf16>
    %cst_206 = arith.constant dense<0.000000e+00> : vector<40x256xf32>
    %217 = tpu.matmul %215, %216, %cst_206 {dimension_numbers = #tpu.dot_dimension_numbers<[1], [0], [0], [1], [0, 0, 1, 1], [], []>} : vector<40x128xbf16>, vector<128x256xbf16>, vector<40x256xf32> -> vector<40x256xf32>
    %218 = arith.addf %208, %217 : vector<40x256xf32>
    %c24_207 = arith.constant 24 : index
    %c0_208 = arith.constant 0 : index
    %219 = vector.load %arg13[%c24_207, %c0_208] : memref<112x128xf32, #tpu.memory_space<vmem>>, vector<8x128xf32>
    %c40_209 = arith.constant 40 : index
    %c0_210 = arith.constant 0 : index
    %220 = vector.load %arg13[%c40_209, %c0_210] : memref<112x128xf32, #tpu.memory_space<vmem>>, vector<8x128xf32>
    %c56_211 = arith.constant 56 : index
    %c0_212 = arith.constant 0 : index
    %221 = vector.load %arg13[%c56_211, %c0_212] : memref<112x128xf32, #tpu.memory_space<vmem>>, vector<8x128xf32>
    %c72_213 = arith.constant 72 : index
    %c0_214 = arith.constant 0 : index
    %222 = vector.load %arg13[%c72_213, %c0_214] : memref<112x128xf32, #tpu.memory_space<vmem>>, vector<8x128xf32>
    %c88_215 = arith.constant 88 : index
    %c0_216 = arith.constant 0 : index
    %223 = vector.load %arg13[%c88_215, %c0_216] : memref<112x128xf32, #tpu.memory_space<vmem>>, vector<8x128xf32>
    %224 = tpu.concatenate %219, %220, %221, %222, %223 in 0 : vector<8x128xf32>, vector<8x128xf32>, vector<8x128xf32>, vector<8x128xf32>, vector<8x128xf32> -> vector<40x128xf32>
    %225 = arith.truncf %224 : vector<40x128xf32> to vector<40x128xbf16>
    %c256_217 = arith.constant 256 : index
    %c0_218 = arith.constant 0 : index
    %226 = vector.load %arg4[%c256_217, %c0_218] : memref<640x256xbf16, #tpu.memory_space<vmem>>, vector<128x256xbf16>
    %cst_219 = arith.constant dense<0.000000e+00> : vector<40x256xf32>
    %227 = tpu.matmul %225, %226, %cst_219 {dimension_numbers = #tpu.dot_dimension_numbers<[1], [0], [0], [1], [0, 0, 1, 1], [], []>} : vector<40x128xbf16>, vector<128x256xbf16>, vector<40x256xf32> -> vector<40x256xf32>
    %228 = arith.addf %218, %227 : vector<40x256xf32>
    %c32_220 = arith.constant 32 : index
    %c0_221 = arith.constant 0 : index
    %229 = vector.load %arg13[%c32_220, %c0_221] : memref<112x128xf32, #tpu.memory_space<vmem>>, vector<8x128xf32>
    %c48_222 = arith.constant 48 : index
    %c0_223 = arith.constant 0 : index
    %230 = vector.load %arg13[%c48_222, %c0_223] : memref<112x128xf32, #tpu.memory_space<vmem>>, vector<8x128xf32>
    %c64_224 = arith.constant 64 : index
    %c0_225 = arith.constant 0 : index
    %231 = vector.load %arg13[%c64_224, %c0_225] : memref<112x128xf32, #tpu.memory_space<vmem>>, vector<8x128xf32>
    %c80_226 = arith.constant 80 : index
    %c0_227 = arith.constant 0 : index
    %232 = vector.load %arg13[%c80_226, %c0_227] : memref<112x128xf32, #tpu.memory_space<vmem>>, vector<8x128xf32>
    %c96_228 = arith.constant 96 : index
    %c0_229 = arith.constant 0 : index
    %233 = vector.load %arg13[%c96_228, %c0_229] : memref<112x128xf32, #tpu.memory_space<vmem>>, vector<8x128xf32>
    %234 = tpu.concatenate %229, %230, %231, %232, %233 in 0 : vector<8x128xf32>, vector<8x128xf32>, vector<8x128xf32>, vector<8x128xf32>, vector<8x128xf32> -> vector<40x128xf32>
    %235 = arith.truncf %234 : vector<40x128xf32> to vector<40x128xbf16>
    %c384_230 = arith.constant 384 : index
    %c0_231 = arith.constant 0 : index
    %236 = vector.load %arg4[%c384_230, %c0_231] : memref<640x256xbf16, #tpu.memory_space<vmem>>, vector<128x256xbf16>
    %cst_232 = arith.constant dense<0.000000e+00> : vector<40x256xf32>
    %237 = tpu.matmul %235, %236, %cst_232 {dimension_numbers = #tpu.dot_dimension_numbers<[1], [0], [0], [1], [0, 0, 1, 1], [], []>} : vector<40x128xbf16>, vector<128x256xbf16>, vector<40x256xf32> -> vector<40x256xf32>
    %238 = arith.addf %228, %237 : vector<40x256xf32>
    %c40_233 = arith.constant 40 : index
    %c0_234 = arith.constant 0 : index
    %239 = vector.load %arg13[%c40_233, %c0_234] : memref<112x128xf32, #tpu.memory_space<vmem>>, vector<8x128xf32>
    %c56_235 = arith.constant 56 : index
    %c0_236 = arith.constant 0 : index
    %240 = vector.load %arg13[%c56_235, %c0_236] : memref<112x128xf32, #tpu.memory_space<vmem>>, vector<8x128xf32>
    %c72_237 = arith.constant 72 : index
    %c0_238 = arith.constant 0 : index
    %241 = vector.load %arg13[%c72_237, %c0_238] : memref<112x128xf32, #tpu.memory_space<vmem>>, vector<8x128xf32>
    %c88_239 = arith.constant 88 : index
    %c0_240 = arith.constant 0 : index
    %242 = vector.load %arg13[%c88_239, %c0_240] : memref<112x128xf32, #tpu.memory_space<vmem>>, vector<8x128xf32>
    %c104 = arith.constant 104 : index
    %c0_241 = arith.constant 0 : index
    %243 = vector.load %arg13[%c104, %c0_241] : memref<112x128xf32, #tpu.memory_space<vmem>>, vector<8x128xf32>
    %244 = tpu.concatenate %239, %240, %241, %242, %243 in 0 : vector<8x128xf32>, vector<8x128xf32>, vector<8x128xf32>, vector<8x128xf32>, vector<8x128xf32> -> vector<40x128xf32>
    %245 = arith.truncf %244 : vector<40x128xf32> to vector<40x128xbf16>
    %c512_242 = arith.constant 512 : index
    %c0_243 = arith.constant 0 : index
    %246 = vector.load %arg4[%c512_242, %c0_243] : memref<640x256xbf16, #tpu.memory_space<vmem>>, vector<128x256xbf16>
    %cst_244 = arith.constant dense<0.000000e+00> : vector<40x256xf32>
    %247 = tpu.matmul %245, %246, %cst_244 {dimension_numbers = #tpu.dot_dimension_numbers<[1], [0], [0], [1], [0, 0, 1, 1], [], []>} : vector<40x128xbf16>, vector<128x256xbf16>, vector<40x256xf32> -> vector<40x256xf32>
    %248 = arith.addf %238, %247 : vector<40x256xf32>
    %c0_245 = arith.constant 0 : index
    %c0_246 = arith.constant 0 : index
    %249 = vector.load %arg5[%c0_245, %c0_246] : memref<1x256xf32, #tpu.memory_space<vmem>>, vector<1x256xf32>
    %250 = vector.broadcast %249 : vector<1x256xf32> to vector<40x256xf32>
    %251 = arith.addf %248, %250 : vector<40x256xf32>
    %cst_247 = arith.constant 0.000000e+00 : f32
    %252 = vector.broadcast %cst_247 : f32 to vector<40x256xf32>
    %253 = arith.maximumf %251, %252 : vector<40x256xf32>
    %254 = arith.maximumf %199, %253 : vector<40x256xf32>
    %255 = vector.extract_strided_slice %254 {offsets = [0, 0], sizes = [40, 128], strides = [1, 1]} : vector<40x256xf32> to vector<40x128xf32>
    %256 = vector.extract_strided_slice %254 {offsets = [0, 128], sizes = [40, 128], strides = [1, 1]} : vector<40x256xf32> to vector<40x128xf32>
    %257 = arith.maximumf %255, %256 : vector<40x128xf32>
    %258 = vector.extract_strided_slice %257 {offsets = [0, 0], sizes = [8, 128], strides = [1, 1]} : vector<40x128xf32> to vector<8x128xf32>
    %259 = arith.truncf %258 : vector<8x128xf32> to vector<8x128xbf16>
    %c0_248 = arith.constant 0 : index
    %c0_249 = arith.constant 0 : index
    %260 = vector.load %arg6[%c0_248, %c0_249] : memref<640x128xbf16, #tpu.memory_space<vmem>>, vector<128x128xbf16>
    %cst_250 = arith.constant dense<0.000000e+00> : vector<8x128xf32>
    %261 = tpu.matmul %259, %260, %cst_250 {dimension_numbers = #tpu.dot_dimension_numbers<[1], [0], [0], [1], [0, 0, 1, 1], [], []>} : vector<8x128xbf16>, vector<128x128xbf16>, vector<8x128xf32> -> vector<8x128xf32>
    %262 = vector.extract_strided_slice %257 {offsets = [8, 0], sizes = [8, 128], strides = [1, 1]} : vector<40x128xf32> to vector<8x128xf32>
    %263 = arith.truncf %262 : vector<8x128xf32> to vector<8x128xbf16>
    %c128_251 = arith.constant 128 : index
    %c0_252 = arith.constant 0 : index
    %264 = vector.load %arg6[%c128_251, %c0_252] : memref<640x128xbf16, #tpu.memory_space<vmem>>, vector<128x128xbf16>
    %cst_253 = arith.constant dense<0.000000e+00> : vector<8x128xf32>
    %265 = tpu.matmul %263, %264, %cst_253 {dimension_numbers = #tpu.dot_dimension_numbers<[1], [0], [0], [1], [0, 0, 1, 1], [], []>} : vector<8x128xbf16>, vector<128x128xbf16>, vector<8x128xf32> -> vector<8x128xf32>
    %266 = arith.addf %261, %265 : vector<8x128xf32>
    %267 = vector.extract_strided_slice %257 {offsets = [16, 0], sizes = [8, 128], strides = [1, 1]} : vector<40x128xf32> to vector<8x128xf32>
    %268 = arith.truncf %267 : vector<8x128xf32> to vector<8x128xbf16>
    %c256_254 = arith.constant 256 : index
    %c0_255 = arith.constant 0 : index
    %269 = vector.load %arg6[%c256_254, %c0_255] : memref<640x128xbf16, #tpu.memory_space<vmem>>, vector<128x128xbf16>
    %cst_256 = arith.constant dense<0.000000e+00> : vector<8x128xf32>
    %270 = tpu.matmul %268, %269, %cst_256 {dimension_numbers = #tpu.dot_dimension_numbers<[1], [0], [0], [1], [0, 0, 1, 1], [], []>} : vector<8x128xbf16>, vector<128x128xbf16>, vector<8x128xf32> -> vector<8x128xf32>
    %271 = arith.addf %266, %270 : vector<8x128xf32>
    %272 = vector.extract_strided_slice %257 {offsets = [24, 0], sizes = [8, 128], strides = [1, 1]} : vector<40x128xf32> to vector<8x128xf32>
    %273 = arith.truncf %272 : vector<8x128xf32> to vector<8x128xbf16>
    %c384_257 = arith.constant 384 : index
    %c0_258 = arith.constant 0 : index
    %274 = vector.load %arg6[%c384_257, %c0_258] : memref<640x128xbf16, #tpu.memory_space<vmem>>, vector<128x128xbf16>
    %cst_259 = arith.constant dense<0.000000e+00> : vector<8x128xf32>
    %275 = tpu.matmul %273, %274, %cst_259 {dimension_numbers = #tpu.dot_dimension_numbers<[1], [0], [0], [1], [0, 0, 1, 1], [], []>} : vector<8x128xbf16>, vector<128x128xbf16>, vector<8x128xf32> -> vector<8x128xf32>
    %276 = arith.addf %271, %275 : vector<8x128xf32>
    %277 = vector.extract_strided_slice %257 {offsets = [32, 0], sizes = [8, 128], strides = [1, 1]} : vector<40x128xf32> to vector<8x128xf32>
    %278 = arith.truncf %277 : vector<8x128xf32> to vector<8x128xbf16>
    %c512_260 = arith.constant 512 : index
    %c0_261 = arith.constant 0 : index
    %279 = vector.load %arg6[%c512_260, %c0_261] : memref<640x128xbf16, #tpu.memory_space<vmem>>, vector<128x128xbf16>
    %cst_262 = arith.constant dense<0.000000e+00> : vector<8x128xf32>
    %280 = tpu.matmul %278, %279, %cst_262 {dimension_numbers = #tpu.dot_dimension_numbers<[1], [0], [0], [1], [0, 0, 1, 1], [], []>} : vector<8x128xbf16>, vector<128x128xbf16>, vector<8x128xf32> -> vector<8x128xf32>
    %281 = arith.addf %276, %280 : vector<8x128xf32>
    %c0_263 = arith.constant 0 : index
    %c0_264 = arith.constant 0 : index
    %282 = vector.load %arg7[%c0_263, %c0_264] : memref<1x128xf32, #tpu.memory_space<vmem>>, vector<1x128xf32>
    %283 = vector.broadcast %282 : vector<1x128xf32> to vector<8x128xf32>
    %284 = arith.addf %281, %283 : vector<8x128xf32>
    %cst_265 = arith.constant 0.000000e+00 : f32
    %285 = vector.broadcast %cst_265 : f32 to vector<8x128xf32>
    %286 = arith.maximumf %284, %285 : vector<8x128xf32>
    %287 = arith.truncf %286 : vector<8x128xf32> to vector<8x128xbf16>
    %c0_266 = arith.constant 0 : index
    %c0_267 = arith.constant 0 : index
    %288 = vector.load %arg8[%c0_266, %c0_267] : memref<128x128xbf16, #tpu.memory_space<vmem>>, vector<128x128xbf16>
    %cst_268 = arith.constant dense<0.000000e+00> : vector<8x128xf32>
    %289 = tpu.matmul %287, %288, %cst_268 {dimension_numbers = #tpu.dot_dimension_numbers<[1], [0], [0], [1], [0, 0, 1, 1], [], []>} : vector<8x128xbf16>, vector<128x128xbf16>, vector<8x128xf32> -> vector<8x128xf32>
    %c0_269 = arith.constant 0 : index
    %c0_270 = arith.constant 0 : index
    %290 = vector.load %arg9[%c0_269, %c0_270] : memref<1x128xf32, #tpu.memory_space<vmem>>, vector<1x128xf32>
    %291 = vector.broadcast %290 : vector<1x128xf32> to vector<8x128xf32>
    %292 = arith.addf %289, %291 : vector<8x128xf32>
    %cst_271 = arith.constant 0.000000e+00 : f32
    %293 = vector.broadcast %cst_271 : f32 to vector<8x128xf32>
    %294 = arith.maximumf %292, %293 : vector<8x128xf32>
    %295 = arith.truncf %294 : vector<8x128xf32> to vector<8x128xbf16>
    %c0_272 = arith.constant 0 : index
    %c0_273 = arith.constant 0 : index
    %296 = vector.load %arg10[%c0_272, %c0_273] : memref<128x128xbf16, #tpu.memory_space<vmem>>, vector<128x128xbf16>
    %cst_274 = arith.constant dense<0.000000e+00> : vector<8x128xf32>
    %297 = tpu.matmul %295, %296, %cst_274 {dimension_numbers = #tpu.dot_dimension_numbers<[1], [0], [0], [1], [0, 0, 1, 1], [], []>} : vector<8x128xbf16>, vector<128x128xbf16>, vector<8x128xf32> -> vector<8x128xf32>
    %c0_275 = arith.constant 0 : index
    %c0_276 = arith.constant 0 : index
    %298 = vector.load %arg11[%c0_275, %c0_276] : memref<1x128xf32, #tpu.memory_space<vmem>>, vector<1x128xf32>
    %299 = vector.broadcast %298 : vector<1x128xf32> to vector<8x128xf32>
    %300 = arith.addf %297, %299 : vector<8x128xf32>
    %c0_277 = arith.constant 0 : index
    %c0_278 = arith.constant 0 : index
    %301 = vector.load %arg12[%c0_277, %c0_278] : memref<8x128xf32, #tpu.memory_space<vmem>>, vector<8x128xf32>
    tpu.vector_store %arg12[%c0_277, %c0_278], %300 {strides = array<i32>} : memref<8x128xf32, #tpu.memory_space<vmem>>, vector<8x128xf32>,
    return
  }
  func.func @transform_0(%arg0: i32) -> (i32, i32, i32) {
    %c0_i32 = arith.constant 0 : i32
    %c0_i32_0 = arith.constant 0 : i32
    %c0_i32_1 = arith.constant 0 : i32
    return %arg0, %c0_i32, %c0_i32_0 : i32, i32, i32
  }
  func.func @transform_1(%arg0: i32) -> (i32, i32) {
    %c0_i32 = arith.constant 0 : i32
    %c0_i32_0 = arith.constant 0 : i32
    %c0_i32_1 = arith.constant 0 : i32
    return %c0_i32, %c0_i32_0 : i32, i32
  }
  func.func @transform_2(%arg0: i32) -> (i32, i32) {
    %c0_i32 = arith.constant 0 : i32
    %c0_i32_0 = arith.constant 0 : i32
    %c0_i32_1 = arith.constant 0 : i32
    return %c0_i32, %c0_i32_0 : i32, i32
  }
  func.func @transform_3(%arg0: i32) -> (i32, i32) {
    %c0_i32 = arith.constant 0 : i32
    %c0_i32_0 = arith.constant 0 : i32
    %c0_i32_1 = arith.constant 0 : i32
    return %c0_i32, %c0_i32_0 : i32, i32
  }
  func.func @transform_4(%arg0: i32) -> (i32, i32) {
    %c0_i32 = arith.constant 0 : i32
    %c0_i32_0 = arith.constant 0 : i32
    %c0_i32_1 = arith.constant 0 : i32
    return %c0_i32, %c0_i32_0 : i32, i32
  }
  func.func @transform_5(%arg0: i32) -> (i32, i32) {
    %c0_i32 = arith.constant 0 : i32
    %c0_i32_0 = arith.constant 0 : i32
    %c0_i32_1 = arith.constant 0 : i32
    return %c0_i32, %c0_i32_0 : i32, i32
  }
  func.func @transform_6(%arg0: i32) -> (i32, i32) {
    %c0_i32 = arith.constant 0 : i32
    %c0_i32_0 = arith.constant 0 : i32
    %c0_i32_1 = arith.constant 0 : i32
    return %c0_i32, %c0_i32_0 : i32, i32
  }
  func.func @transform_7(%arg0: i32) -> (i32, i32) {
    %c0_i32 = arith.constant 0 : i32
    %c0_i32_0 = arith.constant 0 : i32
    %c0_i32_1 = arith.constant 0 : i32
    return %c0_i32, %c0_i32_0 : i32, i32
  }
  func.func @transform_8(%arg0: i32) -> (i32, i32) {
    %c0_i32 = arith.constant 0 : i32
    %c0_i32_0 = arith.constant 0 : i32
    %c0_i32_1 = arith.constant 0 : i32
    return %c0_i32, %c0_i32_0 : i32, i32
  }
  func.func @transform_9(%arg0: i32) -> (i32, i32) {
    %c0_i32 = arith.constant 0 : i32
    %c0_i32_0 = arith.constant 0 : i32
    %c0_i32_1 = arith.constant 0 : i32
    return %c0_i32, %c0_i32_0 : i32, i32
  }
  func.func @transform_10(%arg0: i32) -> (i32, i32) {
    %c0_i32 = arith.constant 0 : i32
    %c0_i32_0 = arith.constant 0 : i32
    %c0_i32_1 = arith.constant 0 : i32
    return %c0_i32, %c0_i32_0 : i32, i32
  }
  func.func @transform_11(%arg0: i32) -> (i32, i32) {
    %c0_i32 = arith.constant 0 : i32
    %c0_i32_0 = arith.constant 0 : i32
    return %arg0, %c0_i32 : i32, i32
  }
}

</mosaic_0001>

<llo_original>
// kernel: net_forward.1
$region0: #{net_forward.1}
  #allocation0 [shape = 'u32[]', space=smem, size = 0x4, offset = 0x4, fixed_abs, tag = 'smem constant byte address 0x4 - core index']
  #allocation1 [shape = 'u32[144,128]{1,0:T(1,128)}', space=vmem, size = 0x12000, scoped, tag = 'internal scratch']
  #allocation2 [shape = 'f32[112,128]{1,0:T(8,128)}', space=vmem, size = 0xe000, scoped, tag = 'scratch operand']
  %s0 = inlined_call_operand.vmem [shape: f32[2,256,32], index: 0, kind: input, shape index: {}]
  %s1 = inlined_call_operand.vmem [shape: bf16[160,256], index: 1, kind: input, shape index: {}]
  %s2 = inlined_call_operand.vmem [shape: f32[1,256], index: 2, kind: input, shape index: {}]
  %s3 = inlined_call_operand.vmem [shape: bf16[640,256], index: 3, kind: input, shape index: {}]
  %s4 = inlined_call_operand.vmem [shape: f32[1,256], index: 4, kind: input, shape index: {}]
  %s5 = inlined_call_operand.vmem [shape: bf16[640,128], index: 5, kind: input, shape index: {}]
  %s6 = inlined_call_operand.vmem [shape: f32[1,128], index: 6, kind: input, shape index: {}]
  %s7 = inlined_call_operand.vmem [shape: bf16[128,128], index: 7, kind: input, shape index: {}]
  %s8 = inlined_call_operand.vmem [shape: f32[1,128], index: 8, kind: input, shape index: {}]
  %s9 = inlined_call_operand.vmem [shape: bf16[128,128], index: 9, kind: input, shape index: {}]
  %s10 = inlined_call_operand.vmem [shape: f32[1,128], index: 10, kind: input, shape index: {}]
  %s11 = inlined_call_operand.hbm [shape: f32[16,128], index: 11, kind: output, shape index: {}]
  %s12 = sld [smem:[#allocation0]]
  $region77: #{net_forward.1} parent=0
    _
  %s14 = ssub.s32 1, %s12
  %s15 = scalar_select 0, %s14, %s12
  $region1: #{net_forward.1} parent=0
    #allocation3 [shape = 'u8[8192]{0}', space=vmem, size = 0x2000, scoped, tag = 'output window, operand 0']
    #allocation4 [shape = 's32[2]{0}', space=sflag, size = 0x8, scoped, tag = 'scoped memory for net_forward.1']
    %16 = vsyncpa [#allocation4], 0
    %s17 = scalar_lea.sflag [#allocation4], 1
    %18 = vsyncpa %s17, 0
    loop: start=0, step=1, limit=4
    $region2: #{net_forward.1} parent=1 // loop_pre_header
      _
    $region3: #{net_forward.1} parent=1 // loop_header
      %s20 = sphi 0, %s24
      %p21 = scmp.ge.s32.totalorder %s20, 4
      %s30 = sphi 0, %s32
      %s33 = sphi 0, %s30
      %s34 = sphi 0, %s33
      %s50 = sphi 0, %s34
      %s54 = sphi 0, %s54
      %s56 = sphi 0, %s54
      %s57 = sphi 0, %s56
      %s71 = sphi 0, %s57
      %s75 = sphi 0, %s75
      %s77 = sphi 0, %s75
      %s78 = sphi 0, %s77
      %s92 = sphi 0, %s78
      %s96 = sphi 0, %s96
      %s98 = sphi 0, %s96
      %s99 = sphi 0, %s98
      %s113 = sphi 0, %s99
      %s117 = sphi 0, %s117
      %s119 = sphi 0, %s117
      %s120 = sphi 0, %s119
      %s134 = sphi 0, %s120
      %s138 = sphi 0, %s138
      %s140 = sphi 0, %s138
      %s141 = sphi 0, %s140
      %s155 = sphi 0, %s141
      %s159 = sphi 0, %s159
      %s161 = sphi 0, %s159
      %s162 = sphi 0, %s161
      %s176 = sphi 0, %s162
      %s180 = sphi 0, %s180
      %s182 = sphi 0, %s180
      %s183 = sphi 0, %s182
      %s197 = sphi 0, %s183
      %s201 = sphi 0, %s201
      %s203 = sphi 0, %s201
      %s204 = sphi 0, %s203
      %s218 = sphi 0, %s204
      %s222 = sphi 0, %s222
      %s224 = sphi 0, %s222
      %s225 = sphi 0, %s224
      %s239 = sphi 0, %s225
      %s243 = sphi 0, %s243
      %s245 = sphi 0, %s243
      %s246 = sphi 0, %s245
      %s260 = sphi 0, %s246
      %s266 = sphi 0, %s268
      %s269 = sphi 0, %s266
      %s270 = sphi 0, %s269
      %s286 = sphi 0, %s270
    $region4: #{net_forward.1} parent=1 // loop_header_branch
      %23 = sbr.rel (%p21) target = $region8
    $region5: #{net_forward.1} parent=1 // loop_body
      %s25 = ssub.s32 %s20, 1
      %s26 = ssub.s32 %s20, 2
      %s27 = sadd.s32 %s20, 1
      %s28 = ssub.s32 %s20, %s27
      %p29 = scmp.eq.s32.totalorder %s28, 0
      %s31 = sadd.s32 %s30, 1
      %s32 = scalar_select %p29, %s30, %s31
      %p35 = pneg %p29
      %p36 = scmp.eq.s32.totalorder %s20, 1
      %p37 = por %p35, %p36
      %p38 = scmp.ne.s32.totalorder %s30, %s33
      %p39 = scmp.eq.s32.totalorder %s20, 0
      %p40 = por %p38, %p39
      %p41 = scmp.ne.s32.totalorder %s30, %s33
      %p42 = scmp.eq.s32.totalorder %s25, 1
      %p43 = por %p41, %p42
      %p44 = scmp.ne.s32.totalorder %s33, %s34
      %p45 = scmp.eq.s32.totalorder %s25, 0
      %p46 = por %p44, %p45
      %p47 = scmp.ne.s32.totalorder %s33, %s34
      %p48 = scmp.eq.s32.totalorder %s26, 1
      %p49 = por %p47, %p48
      %p51 = scmp.ne.s32.totalorder %s34, %s50
      %p52 = scmp.eq.s32.totalorder %s26, 0
      %p53 = por %p51, %p52
      %s55 = sadd.s32 %s54, 1
      %p58 = scmp.eq.s32.totalorder %s20, 1
      %p59 = scmp.ne.s32.totalorder %s54, %s56
      %p60 = scmp.eq.s32.totalorder %s20, 0
      %p61 = por %p59, %p60
      %p62 = scmp.ne.s32.totalorder %s54, %s56
      %p63 = scmp.eq.s32.totalorder %s25, 1
      %p64 = por %p62, %p63
      %p65 = scmp.ne.s32.totalorder %s56, %s57
      %p66 = scmp.eq.s32.totalorder %s25, 0
      %p67 = por %p65, %p66
      %p68 = scmp.ne.s32.totalorder %s56, %s57
      %p69 = scmp.eq.s32.totalorder %s26, 1
      %p70 = por %p68, %p69
      %p72 = scmp.ne.s32.totalorder %s57, %s71
      %p73 = scmp.eq.s32.totalorder %s26, 0
      %p74 = por %p72, %p73
      %s76 = sadd.s32 %s75, 1
      %p79 = scmp.eq.s32.totalorder %s20, 1
      %p80 = scmp.ne.s32.totalorder %s75, %s77
      %p81 = scmp.eq.s32.totalorder %s20, 0
      %p82 = por %p80, %p81
      %p83 = scmp.ne.s32.totalorder %s75, %s77
      %p84 = scmp.eq.s32.totalorder %s25, 1
      %p85 = por %p83, %p84
      %p86 = scmp.ne.s32.totalorder %s77, %s78
      %p87 = scmp.eq.s32.totalorder %s25, 0
      %p88 = por %p86, %p87
      %p89 = scmp.ne.s32.totalorder %s77, %s78
      %p90 = scmp.eq.s32.totalorder %s26, 1
      %p91 = por %p89, %p90
      %p93 = scmp.ne.s32.totalorder %s78, %s92
      %p94 = scmp.eq.s32.totalorder %s26, 0
      %p95 = por %p93, %p94
      %s97 = sadd.s32 %s96, 1
      %p100 = scmp.eq.s32.totalorder %s20, 1
      %p101 = scmp.ne.s32.totalorder %s96, %s98
      %p102 = scmp.eq.s32.totalorder %s20, 0
      %p103 = por %p101, %p102
      %p104 = scmp.ne.s32.totalorder %s96, %s98
      %p105 = scmp.eq.s32.totalorder %s25, 1
      %p106 = por %p104, %p105
      %p107 = scmp.ne.s32.totalorder %s98, %s99
      %p108 = scmp.eq.s32.totalorder %s25, 0
      %p109 = por %p107, %p108
      %p110 = scmp.ne.s32.totalorder %s98, %s99
      %p111 = scmp.eq.s32.totalorder %s26, 1
      %p112 = por %p110, %p111
      %p114 = scmp.ne.s32.totalorder %s99, %s113
      %p115 = scmp.eq.s32.totalorder %s26, 0
      %p116 = por %p114, %p115
      %s118 = sadd.s32 %s117, 1
      %p121 = scmp.eq.s32.totalorder %s20, 1
      %p122 = scmp.ne.s32.totalorder %s117, %s119
      %p123 = scmp.eq.s32.totalorder %s20, 0
      %p124 = por %p122, %p123
      %p125 = scmp.ne.s32.totalorder %s117, %s119
      %p126 = scmp.eq.s32.totalorder %s25, 1
      %p127 = por %p125, %p126
      %p128 = scmp.ne.s32.totalorder %s119, %s120
      %p129 = scmp.eq.s32.totalorder %s25, 0
      %p130 = por %p128, %p129
      %p131 = scmp.ne.s32.totalorder %s119, %s120
      %p132 = scmp.eq.s32.totalorder %s26, 1
      %p133 = por %p131, %p132
      %p135 = scmp.ne.s32.totalorder %s120, %s134
      %p136 = scmp.eq.s32.totalorder %s26, 0
      %p137 = por %p135, %p136
      %s139 = sadd.s32 %s138, 1
      %p142 = scmp.eq.s32.totalorder %s20, 1
      %p143 = scmp.ne.s32.totalorder %s138, %s140
      %p144 = scmp.eq.s32.totalorder %s20, 0
      %p145 = por %p143, %p144
      %p146 = scmp.ne.s32.totalorder %s138, %s140
      %p147 = scmp.eq.s32.totalorder %s25, 1
      %p148 = por %p146, %p147
      %p149 = scmp.ne.s32.totalorder %s140, %s141
      %p150 = scmp.eq.s32.totalorder %s25, 0
      %p151 = por %p149, %p150
      %p152 = scmp.ne.s32.totalorder %s140, %s141
      %p153 = scmp.eq.s32.totalorder %s26, 1
      %p154 = por %p152, %p153
      %p156 = scmp.ne.s32.totalorder %s141, %s155
      %p157 = scmp.eq.s32.totalorder %s26, 0
      %p158 = por %p156, %p157
      %s160 = sadd.s32 %s159, 1
      %p163 = scmp.eq.s32.totalorder %s20, 1
      %p164 = scmp.ne.s32.totalorder %s159, %s161
      %p165 = scmp.eq.s32.totalorder %s20, 0
      %p166 = por %p164, %p165
      %p167 = scmp.ne.s32.totalorder %s159, %s161
      %p168 = scmp.eq.s32.totalorder %s25, 1
      %p169 = por %p167, %p168
      %p170 = scmp.ne.s32.totalorder %s161, %s162
      %p171 = scmp.eq.s32.totalorder %s25, 0
      %p172 = por %p170, %p171
      %p173 = scmp.ne.s32.totalorder %s161, %s162
      %p174 = scmp.eq.s32.totalorder %s26, 1
      %p175 = por %p173, %p174
      %p177 = scmp.ne.s32.totalorder %s162, %s176
      %p178 = scmp.eq.s32.totalorder %s26, 0
      %p179 = por %p177, %p178
      %s181 = sadd.s32 %s180, 1
      %p184 = scmp.eq.s32.totalorder %s20, 1
      %p185 = scmp.ne.s32.totalorder %s180, %s182
      %p186 = scmp.eq.s32.totalorder %s20, 0
      %p187 = por %p185, %p186
      %p188 = scmp.ne.s32.totalorder %s180, %s182
      %p189 = scmp.eq.s32.totalorder %s25, 1
      %p190 = por %p188, %p189
      %p191 = scmp.ne.s32.totalorder %s182, %s183
      %p192 = scmp.eq.s32.totalorder %s25, 0
      %p193 = por %p191, %p192
      %p194 = scmp.ne.s32.totalorder %s182, %s183
      %p195 = scmp.eq.s32.totalorder %s26, 1
      %p196 = por %p194, %p195
      %p198 = scmp.ne.s32.totalorder %s183, %s197
      %p199 = scmp.eq.s32.totalorder %s26, 0
      %p200 = por %p198, %p199
      %s202 = sadd.s32 %s201, 1
      %p205 = scmp.eq.s32.totalorder %s20, 1
      %p206 = scmp.ne.s32.totalorder %s201, %s203
      %p207 = scmp.eq.s32.totalorder %s20, 0
      %p208 = por %p206, %p207
      %p209 = scmp.ne.s32.totalorder %s201, %s203
      %p210 = scmp.eq.s32.totalorder %s25, 1
      %p211 = por %p209, %p210
      %p212 = scmp.ne.s32.totalorder %s203, %s204
      %p213 = scmp.eq.s32.totalorder %s25, 0
      %p214 = por %p212, %p213
      %p215 = scmp.ne.s32.totalorder %s203, %s204
      %p216 = scmp.eq.s32.totalorder %s26, 1
      %p217 = por %p215, %p216
      %p219 = scmp.ne.s32.totalorder %s204, %s218
      %p220 = scmp.eq.s32.totalorder %s26, 0
      %p221 = por %p219, %p220
      %s223 = sadd.s32 %s222, 1
      %p226 = scmp.eq.s32.totalorder %s20, 1
      %p227 = scmp.ne.s32.totalorder %s222, %s224
      %p228 = scmp.eq.s32.totalorder %s20, 0
      %p229 = por %p227, %p228
      %p230 = scmp.ne.s32.totalorder %s222, %s224
      %p231 = scmp.eq.s32.totalorder %s25, 1
      %p232 = por %p230, %p231
      %p233 = scmp.ne.s32.totalorder %s224, %s225
      %p234 = scmp.eq.s32.totalorder %s25, 0
      %p235 = por %p233, %p234
      %p236 = scmp.ne.s32.totalorder %s224, %s225
      %p237 = scmp.eq.s32.totalorder %s26, 1
      %p238 = por %p236, %p237
      %p240 = scmp.ne.s32.totalorder %s225, %s239
      %p241 = scmp.eq.s32.totalorder %s26, 0
      %p242 = por %p240, %p241
      %s244 = sadd.s32 %s243, 1
      %p247 = scmp.eq.s32.totalorder %s20, 1
      %p248 = scmp.ne.s32.totalorder %s243, %s245
      %p249 = scmp.eq.s32.totalorder %s20, 0
      %p250 = por %p248, %p249
      %p251 = scmp.ne.s32.totalorder %s243, %s245
      %p252 = scmp.eq.s32.totalorder %s25, 1
      %p253 = por %p251, %p252
      %p254 = scmp.ne.s32.totalorder %s245, %s246
      %p255 = scmp.eq.s32.totalorder %s25, 0
      %p256 = por %p254, %p255
      %p257 = scmp.ne.s32.totalorder %s245, %s246
      %p258 = scmp.eq.s32.totalorder %s26, 1
      %p259 = por %p257, %p258
      %p261 = scmp.ne.s32.totalorder %s246, %s260
      %p262 = scmp.eq.s32.totalorder %s26, 0
      %p263 = por %p261, %p262
      %s264 = ssub.s32 %s20, %s27
      %p265 = scmp.eq.s32.totalorder %s264, 0
      %s267 = sadd.s32 %s266, 1
      %s268 = scalar_select %p265, %s266, %s267
      %p271 = pneg %p265
      %p272 = scmp.eq.s32.totalorder %s20, 1
      %p273 = por %p271, %p272
      %p274 = scmp.ne.s32.totalorder %s266, %s269
      %p275 = scmp.eq.s32.totalorder %s20, 0
      %p276 = por %p274, %p275
      %p277 = scmp.ne.s32.totalorder %s266, %s269
      %p278 = scmp.eq.s32.totalorder %s25, 1
      %p279 = por %p277, %p278
      %p280 = scmp.ne.s32.totalorder %s269, %s270
      %p281 = scmp.eq.s32.totalorder %s25, 0
      %p282 = por %p280, %p281
      %p283 = scmp.ne.s32.totalorder %s269, %s270
      %p284 = scmp.eq.s32.totalorder %s26, 1
      %p285 = por %p283, %p284
      %p287 = scmp.ne.s32.totalorder %s270, %s286
      %p288 = scmp.eq.s32.totalorder %s26, 0
      %p289 = por %p287, %p288
      %p290 = scmp.le.s32.totalorder 1, %s20
      %p291 = scmp.lt.s32.totalorder %s20, 3
      %p292 = pnand %p290, %p291
      %p293 = pneg %p292
      // Predicated region
      $region9: #{net_forward.1} parent=5 // pred_check
        _
      $region10: #{net_forward.1} parent=5 // pred_check_branch
        %295 = sbr.rel (%p292) target = $region12
      $region11: #{net_forward.1} parent=5 // pred_region
        %s296 = ssub.s32 %s20, 1
        // Predicated region
        $region13: #{net_forward.1} parent=11 // pred_check
          %p297 = pneg %p67
        $region14: #{net_forward.1} parent=11 // pred_check_branch
          %299 = sbr.rel (%p297) target = $region16
        $region15: #{net_forward.1} parent=11 // pred_region
          _
        $region16: #{net_forward.1} parent=11 // pred_fallthru
          _
        // Predicated region
        $region17: #{net_forward.1} parent=11 // pred_check
          %p300 = pneg %p88
        $region18: #{net_forward.1} parent=11 // pred_check_branch
          %302 = sbr.rel (%p300) target = $region20
        $region19: #{net_forward.1} parent=11 // pred_region
          _
        $region20: #{net_forward.1} parent=11 // pred_fallthru
          _
        // Predicated region
        $region21: #{net_forward.1} parent=11 // pred_check
          %p303 = pneg %p109
        $region22: #{net_forward.1} parent=11 // pred_check_branch
          %305 = sbr.rel (%p303) target = $region24
        $region23: #{net_forward.1} parent=11 // pred_region
          _
        $region24: #{net_forward.1} parent=11 // pred_fallthru
          _
        // Predicated region
        $region25: #{net_forward.1} parent=11 // pred_check
          %p306 = pneg %p130
        $region26: #{net_forward.1} parent=11 // pred_check_branch
          %308 = sbr.rel (%p306) target = $region28
        $region27: #{net_forward.1} parent=11 // pred_region
          _
        $region28: #{net_forward.1} parent=11 // pred_fallthru
          _
        // Predicated region
        $region29: #{net_forward.1} parent=11 // pred_check
          %p309 = pneg %p151
        $region30: #{net_forward.1} parent=11 // pred_check_branch
          %311 = sbr.rel (%p309) target = $region32
        $region31: #{net_forward.1} parent=11 // pred_region
          _
        $region32: #{net_forward.1} parent=11 // pred_fallthru
          _
        // Predicated region
        $region33: #{net_forward.1} parent=11 // pred_check
          %p312 = pneg %p172
        $region34: #{net_forward.1} parent=11 // pred_check_branch
          %314 = sbr.rel (%p312) target = $region36
        $region35: #{net_forward.1} parent=11 // pred_region
          _
        $region36: #{net_forward.1} parent=11 // pred_fallthru
          _
        // Predicated region
        $region37: #{net_forward.1} parent=11 // pred_check
          %p315 = pneg %p193
        $region38: #{net_forward.1} parent=11 // pred_check_branch
          %317 = sbr.rel (%p315) target = $region40
        $region39: #{net_forward.1} parent=11 // pred_region
          _
        $region40: #{net_forward.1} parent=11 // pred_fallthru
          _
        // Predicated region
        $region41: #{net_forward.1} parent=11 // pred_check
          %p318 = pneg %p214
        $region42: #{net_forward.1} parent=11 // pred_check_branch
          %320 = sbr.rel (%p318) target = $region44
        $region43: #{net_forward.1} parent=11 // pred_region
          _
        $region44: #{net_forward.1} parent=11 // pred_fallthru
          _
        // Predicated region
        $region45: #{net_forward.1} parent=11 // pred_check
          %p321 = pneg %p235
        $region46: #{net_forward.1} parent=11 // pred_check_branch
          %323 = sbr.rel (%p321) target = $region48
        $region47: #{net_forward.1} parent=11 // pred_region
          _
        $region48: #{net_forward.1} parent=11 // pred_fallthru
          _
        // Predicated region
        $region49: #{net_forward.1} parent=11 // pred_check
          %p324 = pneg %p256
        $region50: #{net_forward.1} parent=11 // pred_check_branch
          %326 = sbr.rel (%p324) target = $region52
        $region51: #{net_forward.1} parent=11 // pred_region
          _
        $region52: #{net_forward.1} parent=11 // pred_fallthru
          _
      $region12: #{net_forward.1} parent=5 // pred_fallthru
        _
      %p327 = scmp.lt.s32.totalorder %s20, 2
      // Predicated region
      $region53: #{net_forward.1} parent=5 // pred_check
        %p328 = pneg %p327
      $region54: #{net_forward.1} parent=5 // pred_check_branch
        %330 = sbr.rel (%p328) target = $region56
      $region55: #{net_forward.1} parent=5 // pred_region
        // Predicated region
        $region57: #{net_forward.1} parent=55 // pred_check
          %p331 = pneg %p40
        $region58: #{net_forward.1} parent=55 // pred_check_branch
          %333 = sbr.rel (%p331) target = $region60
        $region59: #{net_forward.1} parent=55 // pred_region
          %p334 = scmp.lt.s32.totalorder %s20, 1
          %s335 = scalar_select %p334, %s20, 1
          %s336 = smul.addr %s335, 32
          %s337 = smul.addr %s336, 8
          %s338 = scalar_lea.vmem %s0, %s337
        $region60: #{net_forward.1} parent=55 // pred_fallthru
          _
      $region56: #{net_forward.1} parent=5 // pred_fallthru
        _
      %p339 = scmp.le.s32.totalorder 1, %s20
      %p340 = scmp.lt.s32.totalorder %s20, 3
      %p341 = pnand %p339, %p340
      %p342 = pneg %p341
      // Predicated region
      $region61: #{net_forward.1} parent=5 // pred_check
        _
      $region62: #{net_forward.1} parent=5 // pred_check_branch
        %344 = sbr.rel (%p341) target = $region64
      $region63: #{net_forward.1} parent=5 // pred_region
        %s345 = ssub.s32 %s20, 1
        %p346 = scmp.lt.s32.totalorder %s25, 1
        %s347 = scalar_select %p346, %s25, 1
        %s348 = smul.addr %s347, 32
        %s349 = smul.addr %s348, 8
        %s350 = scalar_lea.vmem %s0, %s349
        %p351 = pneg %p46
        %p352 = pneg %p43
        %p353 = pneg %p67
        %p354 = pneg %p64
        %p355 = pneg %p88
        %p356 = pneg %p85
        %p357 = pneg %p109
        %p358 = pneg %p106
        %p359 = pneg %p130
        %p360 = pneg %p127
        %p361 = pneg %p151
        %p362 = pneg %p148
        %p363 = pneg %p172
        %p364 = pneg %p169
        %p365 = pneg %p193
        %p366 = pneg %p190
        %p367 = pneg %p214
        %p368 = pneg %p211
        %p369 = pneg %p235
        %p370 = pneg %p232
        %p371 = pneg %p256
        %p372 = pneg %p253
        %p373 = pneg %p282
        %p374 = pneg %p279
        %s375 = sand.u32 %s269, 1
        %s376 = scalar_lea.sflag [#allocation4], %s375
        %s377 = sand.u32 %s269, 1
        %s378 = smul.addr %s377, 8
        %s379 = scalar_lea.vmem [#allocation3], %s378
        %p380 = scmp.lt.s32.totalorder %s25, 1
        %s381 = scalar_select %p380, %s25, 1
        %s382 = smul.addr %s381, 32
        %s383 = smul.addr %s382, 8
        %s384 = scalar_lea.vmem %s0, %s383
        %v386 = vld [vmem:[%s384] sm:$0xff]
        %v387 = vld [vmem:[%s384 + $0x8] sm:$0xff]
        %v388 = vld [vmem:[%s384 + $0x10] sm:$0xff]
        %v389 = vld [vmem:[%s384 + $0x18] sm:$0xff]
        %v390 = vld [vmem:[%s384 + $0x20] sm:$0xff]
        %v391 = vld [vmem:[%s384 + $0x28] sm:$0xff]
        %v392 = vld [vmem:[%s384 + $0x30] sm:$0xff]
        %v393 = vpack.c.bf16 %v387, %v386
        %v394 = vpack.c.bf16 %v389, %v388
        %v395 = vpack.c.bf16 %v391, %v390
        %v396 = vpack.c.bf16 %v392, %v392
        %v397 = vld [vmem:[%s1] sm:$0xff]
        %v398 = vld [vmem:[%s1 + $0x8] sm:$0xff]
        %v399 = vld [vmem:[%s1 + $0x10] sm:$0xff]
        %v400 = vld [vmem:[%s1 + $0x18] sm:$0xff]
        %v401 = vld [vmem:[%s384 + $0x80] sm:$0xff]
        %v402 = vld [vmem:[%s384 + $0x88] sm:$0xff]
        %v403 = vld [vmem:[%s384 + $0x90] sm:$0xff]
        %v404 = vld [vmem:[%s384 + $0x98] sm:$0xff]
        %v405 = vld [vmem:[%s384 + $0xa0] sm:$0xff]
        %v406 = vld [vmem:[%s384 + $0xa8] sm:$0xff]
        %v407 = vld [vmem:[%s384 + $0xb0] sm:$0xff]
        %v408 = vpack.c.bf16 %v402, %v401
        %v409 = vpack.c.bf16 %v404, %v403
        %v410 = vpack.c.bf16 %v406, %v405
        %v411 = vpack.c.bf16 %v407, %v407
        %v412 = vld [vmem:[%s1 + $0x20] sm:$0xff]
        %v413 = vld [vmem:[%s1 + $0x28] sm:$0xff]
        %v414 = vld [vmem:[%s1 + $0x30] sm:$0xff]
        %v415 = vld [vmem:[%s1 + $0x38] sm:$0xff]
        %v420 = vunpack.c.l.b16 %v412
        %v421 = vunpack.c.h.b16 %v412
        %v422 = vunpack.c.l.b16 %v413
        %v423 = vunpack.c.h.b16 %v413
        %v424 = vunpack.c.l.b16 %v414
        %v425 = vunpack.c.h.b16 %v414
        %v426 = vunpack.c.l.b16 %v415
        %v427 = vunpack.c.h.b16 %v415
        %v428 = vpack.c.b16 %v422, %v420
        %v429 = vpack.c.b16 %v423, %v421
        %v430 = vpack.c.b16 %v426, %v424
        %v431 = vpack.c.b16 %v427, %v425
        %vm436 = vcmask 261120
        %v438 = vsel %vm436, %v408, 0
        %v441 = vsel %vm436, %v409, 0
        %v444 = vsel %vm436, %v410, 0
        %v447 = vsel %vm436, %v411, 0
        %449 = vmatprep.subr.bf16.mxu0 0
        %450 = vmatpush1.bf16.msra.mxu0 0
        %451 = vmatprep.subr.bf16.mxu0 0
        %452 = vmatpush1.bf16.msra.mxu0 0
        %453 = vmatprep.subr.bf16.mxu0 0
        %454 = vmatpush1.bf16.msra.mxu0 0
        %455 = vmatprep.subr.bf16.mxu0 0
        %456 = vmatpush1.bf16.msra.mxu0 0
        %457 = vmatprep.subr.bf16.mxu0 0
        %458 = vmatpush1.bf16.msra.mxu0 0
        %459 = vmatprep.subr.bf16.mxu0 0
        %460 = vmatpush1.bf16.msra.mxu0 0
        %461 = vmatprep.subr.bf16.mxu0 %v431
        %462 = vmatpush1.bf16.msra.mxu0 %v430
        %463 = vmatprep.subr.bf16.mxu0 %v429
        %464 = vmatpush1.bf16.msra.mxu0 %v428
        %465 = vmatprep.subr.bf16.mxu0 0
        %466 = vmatpush2.bf16.msra.mxu0 0
        %467 = vmatprep.subr.bf16.mxu0 0
        %468 = vmatpush2.bf16.msra.mxu0 0
        %469 = vmatprep.subr.bf16.mxu0 0
        %470 = vmatpush2.bf16.msra.mxu0 0
        %471 = vmatprep.subr.bf16.mxu0 0
        %472 = vmatpush2.bf16.msra.mxu0 0
        %473 = vmatprep.subr.bf16.mxu0 0
        %474 = vmatpush2.bf16.msra.mxu0 0
        %475 = vmatprep.subr.bf16.mxu0 0
        %476 = vmatpush2.bf16.msra.mxu0 0
        %477 = vmatprep.subr.bf16.mxu0 0
        %478 = vmatpush2.bf16.msra.mxu0 0
        %479 = vmatprep.subr.bf16.mxu0 0
        %480 = vmatpush2.bf16.msra.mxu0 0
        %481 = vmatprep.mubr.bf16.mxu0 0
        %482 = vmatmul.mubr.bf16.gmra.mxu0 %v438
        %v483 = vpop.f32.mrf.mxu0
        %v484 = vadd.f32 0.0, %v483
        %v485 = vpop.f32.mrf.mxu0
        %v486 = vadd.f32 0.0, %v485
        %v487 = vpop.f32.mrf.mxu0
        %v488 = vadd.f32 0.0, %v487
        %v489 = vpop.f32.mrf.mxu0
        %v490 = vadd.f32 0.0, %v489
        %491 = vmatprep.mubr.bf16.mxu0 0
        %492 = vmatmul.mubr.bf16.gmra.mxu0 %v441
        %v493 = vpop.f32.mrf.mxu0
        %v494 = vadd.f32 0.0, %v493
        %v495 = vpop.f32.mrf.mxu0
        %v496 = vadd.f32 0.0, %v495
        %v497 = vpop.f32.mrf.mxu0
        %v498 = vadd.f32 0.0, %v497
        %v499 = vpop.f32.mrf.mxu0
        %v500 = vadd.f32 0.0, %v499
        %501 = vmatprep.mubr.bf16.mxu0 0
        %502 = vmatmul.mubr.bf16.gmra.mxu0 %v444
        %v503 = vpop.f32.mrf.mxu0
        %v504 = vadd.f32 0.0, %v503
        %v505 = vpop.f32.mrf.mxu0
        %v506 = vadd.f32 0.0, %v505
        %v507 = vpop.f32.mrf.mxu0
        %v508 = vadd.f32 0.0, %v507
        %v509 = vpop.f32.mrf.mxu0
        %v510 = vadd.f32 0.0, %v509
        %511 = vmatprep.mubr.bf16.mxu0 0
        %512 = vmatmul.mubr.bf16.gmra.mxu0 %v447
        %v513 = vpop.f32.mrf.mxu0
        %v514 = vadd.f32 0.0, %v513
        %v515 = vpop.f32.mrf.mxu0
        %v516 = vadd.f32 0.0, %v515
        %v517 = vpop.f32.mrf.mxu0
        %v518 = vpop.f32.mrf.mxu0
        %519 = vdwg.mxu0
        %v524 = vunpack.c.l.b16 %v397
        %v525 = vunpack.c.h.b16 %v397
        %v526 = vunpack.c.l.b16 %v398
        %v527 = vunpack.c.h.b16 %v398
        %v528 = vunpack.c.l.b16 %v399
        %v529 = vunpack.c.h.b16 %v399
        %v530 = vunpack.c.l.b16 %v400
        %v531 = vunpack.c.h.b16 %v400
        %v532 = vpack.c.b16 %v526, %v524
        %v533 = vpack.c.b16 %v527, %v525
        %v534 = vpack.c.b16 %v530, %v528
        %v535 = vpack.c.b16 %v531, %v529
        %v541 = vsel %vm436, %v393, 0
        %v544 = vsel %vm436, %v394, 0
        %v547 = vsel %vm436, %v395, 0
        %v550 = vsel %vm436, %v396, 0
        %552 = vmatprep.subr.bf16.mxu0 0
        %553 = vmatpush1.bf16.msra.mxu0 0
        %554 = vmatprep.subr.bf16.mxu0 0
        %555 = vmatpush1.bf16.msra.mxu0 0
        %556 = vmatprep.subr.bf16.mxu0 0
        %557 = vmatpush1.bf16.msra.mxu0 0
        %558 = vmatprep.subr.bf16.mxu0 0
        %559 = vmatpush1.bf16.msra.mxu0 0
        %560 = vmatprep.subr.bf16.mxu0 0
        %561 = vmatpush1.bf16.msra.mxu0 0
        %562 = vmatprep.subr.bf16.mxu0 0
        %563 = vmatpush1.bf16.msra.mxu0 0
        %564 = vmatprep.subr.bf16.mxu0 %v535
        %565 = vmatpush1.bf16.msra.mxu0 %v534
        %566 = vmatprep.subr.bf16.mxu0 %v533
        %567 = vmatpush1.bf16.msra.mxu0 %v532
        %568 = vmatprep.subr.bf16.mxu0 0
        %569 = vmatpush2.bf16.msra.mxu0 0
        %570 = vmatprep.subr.bf16.mxu0 0
        %571 = vmatpush2.bf16.msra.mxu0 0
        %572 = vmatprep.subr.bf16.mxu0 0
        %573 = vmatpush2.bf16.msra.mxu0 0
        %574 = vmatprep.subr.bf16.mxu0 0
        %575 = vmatpush2.bf16.msra.mxu0 0
        %576 = vmatprep.subr.bf16.mxu0 0
        %577 = vmatpush2.bf16.msra.mxu0 0
        %578 = vmatprep.subr.bf16.mxu0 0
        %579 = vmatpush2.bf16.msra.mxu0 0
        %580 = vmatprep.subr.bf16.mxu0 0
        %581 = vmatpush2.bf16.msra.mxu0 0
        %582 = vmatprep.subr.bf16.mxu0 0
        %583 = vmatpush2.bf16.msra.mxu0 0
        %584 = vmatprep.mubr.bf16.mxu0 0
        %585 = vmatmul.mubr.bf16.gmra.mxu0 %v541
        %v586 = vpop.f32.mrf.mxu0
        %v587 = vadd.f32 %v484, %v586
        %v588 = vpop.f32.mrf.mxu0
        %v589 = vadd.f32 %v486, %v588
        %v590 = vpop.f32.mrf.mxu0
        %v591 = vadd.f32 %v488, %v590
        %v592 = vpop.f32.mrf.mxu0
        %v593 = vadd.f32 %v490, %v592
        %594 = vmatprep.mubr.bf16.mxu0 0
        %595 = vmatmul.mubr.bf16.gmra.mxu0 %v544
        %v596 = vpop.f32.mrf.mxu0
        %v597 = vadd.f32 %v494, %v596
        %v598 = vpop.f32.mrf.mxu0
        %v599 = vadd.f32 %v496, %v598
        %v600 = vpop.f32.mrf.mxu0
        %v601 = vadd.f32 %v498, %v600
        %v602 = vpop.f32.mrf.mxu0
        %v603 = vadd.f32 %v500, %v602
        %604 = vmatprep.mubr.bf16.mxu0 0
        %605 = vmatmul.mubr.bf16.gmra.mxu0 %v547
        %v606 = vpop.f32.mrf.mxu0
        %v607 = vadd.f32 %v504, %v606
        %v608 = vpop.f32.mrf.mxu0
        %v609 = vadd.f32 %v506, %v608
        %v610 = vpop.f32.mrf.mxu0
        %v611 = vadd.f32 %v508, %v610
        %v612 = vpop.f32.mrf.mxu0
        %v613 = vadd.f32 %v510, %v612
        %614 = vmatprep.mubr.bf16.mxu0 0
        %615 = vmatmul.mubr.bf16.gmra.mxu0 %v550
        %v616 = vpop.f32.mrf.mxu0
        %v617 = vadd.f32 %v514, %v616
        %v618 = vpop.f32.mrf.mxu0
        %v619 = vadd.f32 %v516, %v618
        %v620 = vpop.f32.mrf.mxu0
        %v621 = vpop.f32.mrf.mxu0
        %622 = vdwg.mxu0
        %v623 = vld [vmem:[%s384 + $0x8] sm:$0xff]
        %v624 = vld [vmem:[%s384 + $0x10] sm:$0xff]
        %v625 = vld [vmem:[%s384 + $0x18] sm:$0xff]
        %v626 = vld [vmem:[%s384 + $0x20] sm:$0xff]
        %v627 = vld [vmem:[%s384 + $0x28] sm:$0xff]
        %v628 = vld [vmem:[%s384 + $0x30] sm:$0xff]
        %v629 = vld [vmem:[%s384 + $0x38] sm:$0xff]
        %v630 = vpack.c.bf16 %v624, %v623
        %v631 = vpack.c.bf16 %v626, %v625
        %v632 = vpack.c.bf16 %v628, %v627
        %v633 = vpack.c.bf16 %v629, %v629
        %v634 = vld [vmem:[%s1 + $0x40] sm:$0xff]
        %v635 = vld [vmem:[%s1 + $0x48] sm:$0xff]
        %v636 = vld [vmem:[%s1 + $0x50] sm:$0xff]
        %v637 = vld [vmem:[%s1 + $0x58] sm:$0xff]
        %v642 = vunpack.c.l.b16 %v634
        %v643 = vunpack.c.h.b16 %v634
        %v644 = vunpack.c.l.b16 %v635
        %v645 = vunpack.c.h.b16 %v635
        %v646 = vunpack.c.l.b16 %v636
        %v647 = vunpack.c.h.b16 %v636
        %v648 = vunpack.c.l.b16 %v637
        %v649 = vunpack.c.h.b16 %v637
        %v650 = vpack.c.b16 %v644, %v642
        %v651 = vpack.c.b16 %v645, %v643
        %v652 = vpack.c.b16 %v648, %v646
        %v653 = vpack.c.b16 %v649, %v647
        %v659 = vsel %vm436, %v630, 0
        %v662 = vsel %vm436, %v631, 0
        %v665 = vsel %vm436, %v632, 0
        %v668 = vsel %vm436, %v633, 0
        %670 = vmatprep.subr.bf16.mxu0 0
        %671 = vmatpush1.bf16.msra.mxu0 0
        %672 = vmatprep.subr.bf16.mxu0 0
        %673 = vmatpush1.bf16.msra.mxu0 0
        %674 = vmatprep.subr.bf16.mxu0 0
        %675 = vmatpush1.bf16.msra.mxu0 0
        %676 = vmatprep.subr.bf16.mxu0 0
        %677 = vmatpush1.bf16.msra.mxu0 0
        %678 = vmatprep.subr.bf16.mxu0 0
        %679 = vmatpush1.bf16.msra.mxu0 0
        %680 = vmatprep.subr.bf16.mxu0 0
        %681 = vmatpush1.bf16.msra.mxu0 0
        %682 = vmatprep.subr.bf16.mxu0 %v653
        %683 = vmatpush1.bf16.msra.mxu0 %v652
        %684 = vmatprep.subr.bf16.mxu0 %v651
        %685 = vmatpush1.bf16.msra.mxu0 %v650
        %686 = vmatprep.subr.bf16.mxu0 0
        %687 = vmatpush2.bf16.msra.mxu0 0
        %688 = vmatprep.subr.bf16.mxu0 0
        %689 = vmatpush2.bf16.msra.mxu0 0
        %690 = vmatprep.subr.bf16.mxu0 0
        %691 = vmatpush2.bf16.msra.mxu0 0
        %692 = vmatprep.subr.bf16.mxu0 0
        %693 = vmatpush2.bf16.msra.mxu0 0
        %694 = vmatprep.subr.bf16.mxu0 0
        %695 = vmatpush2.bf16.msra.mxu0 0
        %696 = vmatprep.subr.bf16.mxu0 0
        %697 = vmatpush2.bf16.msra.mxu0 0
        %698 = vmatprep.subr.bf16.mxu0 0
        %699 = vmatpush2.bf16.msra.mxu0 0
        %700 = vmatprep.subr.bf16.mxu0 0
        %701 = vmatpush2.bf16.msra.mxu0 0
        %702 = vmatprep.mubr.bf16.mxu0 0
        %703 = vmatmul.mubr.bf16.gmra.mxu0 %v659
        %v704 = vpop.f32.mrf.mxu0
        %v705 = vadd.f32 0.0, %v704
        %v706 = vpop.f32.mrf.mxu0
        %v707 = vadd.f32 0.0, %v706
        %v708 = vpop.f32.mrf.mxu0
        %v709 = vadd.f32 0.0, %v708
        %v710 = vpop.f32.mrf.mxu0
        %v711 = vadd.f32 0.0, %v710
        %712 = vmatprep.mubr.bf16.mxu0 0
        %713 = vmatmul.mubr.bf16.gmra.mxu0 %v662
        %v714 = vpop.f32.mrf.mxu0
        %v715 = vadd.f32 0.0, %v714
        %v716 = vpop.f32.mrf.mxu0
        %v717 = vadd.f32 0.0, %v716
        %v718 = vpop.f32.mrf.mxu0
        %v719 = vadd.f32 0.0, %v718
        %v720 = vpop.f32.mrf.mxu0
        %v721 = vadd.f32 0.0, %v720
        %722 = vmatprep.mubr.bf16.mxu0 0
        %723 = vmatmul.mubr.bf16.gmra.mxu0 %v665
        %v724 = vpop.f32.mrf.mxu0
        %v725 = vadd.f32 0.0, %v724
        %v726 = vpop.f32.mrf.mxu0
        %v727 = vadd.f32 0.0, %v726
        %v728 = vpop.f32.mrf.mxu0
        %v729 = vadd.f32 0.0, %v728
        %v730 = vpop.f32.mrf.mxu0
        %v731 = vadd.f32 0.0, %v730
        %732 = vmatprep.mubr.bf16.mxu0 0
        %733 = vmatmul.mubr.bf16.gmra.mxu0 %v668
        %v734 = vpop.f32.mrf.mxu0
        %v735 = vadd.f32 0.0, %v734
        %v736 = vpop.f32.mrf.mxu0
        %v737 = vadd.f32 0.0, %v736
        %v738 = vpop.f32.mrf.mxu0
        %v739 = vpop.f32.mrf.mxu0
        %740 = vdwg.mxu0
        %v741 = vadd.f32 %v587, %v705
        %v742 = vadd.f32 %v589, %v707
        %v743 = vadd.f32 %v591, %v709
        %v744 = vadd.f32 %v593, %v711
        %v745 = vadd.f32 %v597, %v715
        %v746 = vadd.f32 %v599, %v717
        %v747 = vadd.f32 %v601, %v719
        %v748 = vadd.f32 %v603, %v721
        %v749 = vadd.f32 %v607, %v725
        %v750 = vadd.f32 %v609, %v727
        %v751 = vadd.f32 %v611, %v729
        %v752 = vadd.f32 %v613, %v731
        %v753 = vadd.f32 %v617, %v735
        %v754 = vadd.f32 %v619, %v737
        %v755 = vld [vmem:[%s384 + $0x88] sm:$0xff]
        %v756 = vld [vmem:[%s384 + $0x90] sm:$0xff]
        %v757 = vld [vmem:[%s384 + $0x98] sm:$0xff]
        %v758 = vld [vmem:[%s384 + $0xa0] sm:$0xff]
        %v759 = vld [vmem:[%s384 + $0xa8] sm:$0xff]
        %v760 = vld [vmem:[%s384 + $0xb0] sm:$0xff]
        %v761 = vld [vmem:[%s384 + $0xb8] sm:$0xff]
        %v762 = vpack.c.bf16 %v756, %v755
        %v763 = vpack.c.bf16 %v758, %v757
        %v764 = vpack.c.bf16 %v760, %v759
        %v765 = vpack.c.bf16 %v761, %v761
        %v766 = vld [vmem:[%s1 + $0x60] sm:$0xff]
        %v767 = vld [vmem:[%s1 + $0x68] sm:$0xff]
        %v768 = vld [vmem:[%s1 + $0x70] sm:$0xff]
        %v769 = vld [vmem:[%s1 + $0x78] sm:$0xff]
        %v774 = vunpack.c.l.b16 %v766
        %v775 = vunpack.c.h.b16 %v766
        %v776 = vunpack.c.l.b16 %v767
        %v777 = vunpack.c.h.b16 %v767
        %v778 = vunpack.c.l.b16 %v768
        %v779 = vunpack.c.h.b16 %v768
        %v780 = vunpack.c.l.b16 %v769
        %v781 = vunpack.c.h.b16 %v769
        %v782 = vpack.c.b16 %v776, %v774
        %v783 = vpack.c.b16 %v777, %v775
        %v784 = vpack.c.b16 %v780, %v778
        %v785 = vpack.c.b16 %v781, %v779
        %v791 = vsel %vm436, %v762, 0
        %v794 = vsel %vm436, %v763, 0
        %v797 = vsel %vm436, %v764, 0
        %v800 = vsel %vm436, %v765, 0
        %802 = vmatprep.subr.bf16.mxu0 0
        %803 = vmatpush1.bf16.msra.mxu0 0
        %804 = vmatprep.subr.bf16.mxu0 0
        %805 = vmatpush1.bf16.msra.mxu0 0
        %806 = vmatprep.subr.bf16.mxu0 0
        %807 = vmatpush1.bf16.msra.mxu0 0
        %808 = vmatprep.subr.bf16.mxu0 0
        %809 = vmatpush1.bf16.msra.mxu0 0
        %810 = vmatprep.subr.bf16.mxu0 0
        %811 = vmatpush1.bf16.msra.mxu0 0
        %812 = vmatprep.subr.bf16.mxu0 0
        %813 = vmatpush1.bf16.msra.mxu0 0
        %814 = vmatprep.subr.bf16.mxu0 %v785
        %815 = vmatpush1.bf16.msra.mxu0 %v784
        %816 = vmatprep.subr.bf16.mxu0 %v783
        %817 = vmatpush1.bf16.msra.mxu0 %v782
        %818 = vmatprep.subr.bf16.mxu0 0
        %819 = vmatpush2.bf16.msra.mxu0 0
        %820 = vmatprep.subr.bf16.mxu0 0
        %821 = vmatpush2.bf16.msra.mxu0 0
        %822 = vmatprep.subr.bf16.mxu0 0
        %823 = vmatpush2.bf16.msra.mxu0 0
        %824 = vmatprep.subr.bf16.mxu0 0
        %825 = vmatpush2.bf16.msra.mxu0 0
        %826 = vmatprep.subr.bf16.mxu0 0
        %827 = vmatpush2.bf16.msra.mxu0 0
        %828 = vmatprep.subr.bf16.mxu0 0
        %829 = vmatpush2.bf16.msra.mxu0 0
        %830 = vmatprep.subr.bf16.mxu0 0
        %831 = vmatpush2.bf16.msra.mxu0 0
        %832 = vmatprep.subr.bf16.mxu0 0
        %833 = vmatpush2.bf16.msra.mxu0 0
        %834 = vmatprep.mubr.bf16.mxu0 0
        %835 = vmatmul.mubr.bf16.gmra.mxu0 %v791
        %v836 = vpop.f32.mrf.mxu0
        %v837 = vadd.f32 0.0, %v836
        %v838 = vpop.f32.mrf.mxu0
        %v839 = vadd.f32 0.0, %v838
        %v840 = vpop.f32.mrf.mxu0
        %v841 = vadd.f32 0.0, %v840
        %v842 = vpop.f32.mrf.mxu0
        %v843 = vadd.f32 0.0, %v842
        %844 = vmatprep.mubr.bf16.mxu0 0
        %845 = vmatmul.mubr.bf16.gmra.mxu0 %v794
        %v846 = vpop.f32.mrf.mxu0
        %v847 = vadd.f32 0.0, %v846
        %v848 = vpop.f32.mrf.mxu0
        %v849 = vadd.f32 0.0, %v848
        %v850 = vpop.f32.mrf.mxu0
        %v851 = vadd.f32 0.0, %v850
        %v852 = vpop.f32.mrf.mxu0
        %v853 = vadd.f32 0.0, %v852
        %854 = vmatprep.mubr.bf16.mxu0 0
        %855 = vmatmul.mubr.bf16.gmra.mxu0 %v797
        %v856 = vpop.f32.mrf.mxu0
        %v857 = vadd.f32 0.0, %v856
        %v858 = vpop.f32.mrf.mxu0
        %v859 = vadd.f32 0.0, %v858
        %v860 = vpop.f32.mrf.mxu0
        %v861 = vadd.f32 0.0, %v860
        %v862 = vpop.f32.mrf.mxu0
        %v863 = vadd.f32 0.0, %v862
        %864 = vmatprep.mubr.bf16.mxu0 0
        %865 = vmatmul.mubr.bf16.gmra.mxu0 %v800
        %v866 = vpop.f32.mrf.mxu0
        %v867 = vadd.f32 0.0, %v866
        %v868 = vpop.f32.mrf.mxu0
        %v869 = vadd.f32 0.0, %v868
        %v870 = vpop.f32.mrf.mxu0
        %v871 = vpop.f32.mrf.mxu0
        %872 = vdwg.mxu0
        %v873 = vadd.f32 %v741, %v837
        %v874 = vadd.f32 %v742, %v839
        %v875 = vadd.f32 %v743, %v841
        %v876 = vadd.f32 %v744, %v843
        %v877 = vadd.f32 %v745, %v847
        %v878 = vadd.f32 %v746, %v849
        %v879 = vadd.f32 %v747, %v851
        %v880 = vadd.f32 %v748, %v853
        %v881 = vadd.f32 %v749, %v857
        %v882 = vadd.f32 %v750, %v859
        %v883 = vadd.f32 %v751, %v861
        %v884 = vadd.f32 %v752, %v863
        %v885 = vadd.f32 %v753, %v867
        %v886 = vadd.f32 %v754, %v869
        %v887 = vld [vmem:[%s384 + $0x10] sm:$0xff]
        %v888 = vld [vmem:[%s384 + $0x18] sm:$0xff]
        %v889 = vld [vmem:[%s384 + $0x20] sm:$0xff]
        %v890 = vld [vmem:[%s384 + $0x28] sm:$0xff]
        %v891 = vld [vmem:[%s384 + $0x30] sm:$0xff]
        %v892 = vld [vmem:[%s384 + $0x38] sm:$0xff]
        %v893 = vld [vmem:[%s384 + $0x40] sm:$0xff]
        %v894 = vpack.c.bf16 %v888, %v887
        %v895 = vpack.c.bf16 %v890, %v889
        %v896 = vpack.c.bf16 %v892, %v891
        %v897 = vpack.c.bf16 %v893, %v893
        %v898 = vld [vmem:[%s1 + $0x80] sm:$0xff]
        %v899 = vld [vmem:[%s1 + $0x88] sm:$0xff]
        %v900 = vld [vmem:[%s1 + $0x90] sm:$0xff]
        %v901 = vld [vmem:[%s1 + $0x98] sm:$0xff]
        %v906 = vunpack.c.l.b16 %v898
        %v907 = vunpack.c.h.b16 %v898
        %v908 = vunpack.c.l.b16 %v899
        %v909 = vunpack.c.h.b16 %v899
        %v910 = vunpack.c.l.b16 %v900
        %v911 = vunpack.c.h.b16 %v900
        %v912 = vunpack.c.l.b16 %v901
        %v913 = vunpack.c.h.b16 %v901
        %v914 = vpack.c.b16 %v908, %v906
        %v915 = vpack.c.b16 %v909, %v907
        %v916 = vpack.c.b16 %v912, %v910
        %v917 = vpack.c.b16 %v913, %v911
        %v923 = vsel %vm436, %v894, 0
        %v926 = vsel %vm436, %v895, 0
        %v929 = vsel %vm436, %v896, 0
        %v932 = vsel %vm436, %v897, 0
        %934 = vmatprep.subr.bf16.mxu0 0
        %935 = vmatpush1.bf16.msra.mxu0 0
        %936 = vmatprep.subr.bf16.mxu0 0
        %937 = vmatpush1.bf16.msra.mxu0 0
        %938 = vmatprep.subr.bf16.mxu0 0
        %939 = vmatpush1.bf16.msra.mxu0 0
        %940 = vmatprep.subr.bf16.mxu0 0
        %941 = vmatpush1.bf16.msra.mxu0 0
        %942 = vmatprep.subr.bf16.mxu0 0
        %943 = vmatpush1.bf16.msra.mxu0 0
        %944 = vmatprep.subr.bf16.mxu0 0
        %945 = vmatpush1.bf16.msra.mxu0 0
        %946 = vmatprep.subr.bf16.mxu0 %v917
        %947 = vmatpush1.bf16.msra.mxu0 %v916
        %948 = vmatprep.subr.bf16.mxu0 %v915
        %949 = vmatpush1.bf16.msra.mxu0 %v914
        %950 = vmatprep.subr.bf16.mxu0 0
        %951 = vmatpush2.bf16.msra.mxu0 0
        %952 = vmatprep.subr.bf16.mxu0 0
        %953 = vmatpush2.bf16.msra.mxu0 0
        %954 = vmatprep.subr.bf16.mxu0 0
        %955 = vmatpush2.bf16.msra.mxu0 0
        %956 = vmatprep.subr.bf16.mxu0 0
        %957 = vmatpush2.bf16.msra.mxu0 0
        %958 = vmatprep.subr.bf16.mxu0 0
        %959 = vmatpush2.bf16.msra.mxu0 0
        %960 = vmatprep.subr.bf16.mxu0 0
        %961 = vmatpush2.bf16.msra.mxu0 0
        %962 = vmatprep.subr.bf16.mxu0 0
        %963 = vmatpush2.bf16.msra.mxu0 0
        %964 = vmatprep.subr.bf16.mxu0 0
        %965 = vmatpush2.bf16.msra.mxu0 0
        %966 = vmatprep.mubr.bf16.mxu0 0
        %967 = vmatmul.mubr.bf16.gmra.mxu0 %v923
        %v968 = vpop.f32.mrf.mxu0
        %v969 = vadd.f32 0.0, %v968
        %v970 = vpop.f32.mrf.mxu0
        %v971 = vadd.f32 0.0, %v970
        %v972 = vpop.f32.mrf.mxu0
        %v973 = vadd.f32 0.0, %v972
        %v974 = vpop.f32.mrf.mxu0
        %v975 = vadd.f32 0.0, %v974
        %976 = vmatprep.mubr.bf16.mxu0 0
        %977 = vmatmul.mubr.bf16.gmra.mxu0 %v926
        %v978 = vpop.f32.mrf.mxu0
        %v979 = vadd.f32 0.0, %v978
        %v980 = vpop.f32.mrf.mxu0
        %v981 = vadd.f32 0.0, %v980
        %v982 = vpop.f32.mrf.mxu0
        %v983 = vadd.f32 0.0, %v982
        %v984 = vpop.f32.mrf.mxu0
        %v985 = vadd.f32 0.0, %v984
        %986 = vmatprep.mubr.bf16.mxu0 0
        %987 = vmatmul.mubr.bf16.gmra.mxu0 %v929
        %v988 = vpop.f32.mrf.mxu0
        %v989 = vadd.f32 0.0, %v988
        %v990 = vpop.f32.mrf.mxu0
        %v991 = vadd.f32 0.0, %v990
        %v992 = vpop.f32.mrf.mxu0
        %v993 = vadd.f32 0.0, %v992
        %v994 = vpop.f32.mrf.mxu0
        %v995 = vadd.f32 0.0, %v994
        %996 = vmatprep.mubr.bf16.mxu0 0
        %997 = vmatmul.mubr.bf16.gmra.mxu0 %v932
        %v998 = vpop.f32.mrf.mxu0
        %v999 = vadd.f32 0.0, %v998
        %v1000 = vpop.f32.mrf.mxu0
        %v1001 = vadd.f32 0.0, %v1000
        %v1002 = vpop.f32.mrf.mxu0
        %v1003 = vpop.f32.mrf.mxu0
        %1004 = vdwg.mxu0
        %v1005 = vadd.f32 %v873, %v969
        %v1006 = vadd.f32 %v874, %v971
        %v1007 = vadd.f32 %v875, %v973
        %v1008 = vadd.f32 %v876, %v975
        %v1009 = vadd.f32 %v877, %v979
        %v1010 = vadd.f32 %v878, %v981
        %v1011 = vadd.f32 %v879, %v983
        %v1012 = vadd.f32 %v880, %v985
        %v1013 = vadd.f32 %v881, %v989
        %v1014 = vadd.f32 %v882, %v991
        %v1015 = vadd.f32 %v883, %v993
        %v1016 = vadd.f32 %v884, %v995
        %v1017 = vadd.f32 %v885, %v999
        %v1018 = vadd.f32 %v886, %v1001
        %v1019 = vld [vmem:[%s2] sm:$0x3]
        %v1021 = vlaneseq
        %v1022 = vshrl.u32 %v1021, 7
        %v1023 = vsub.s32 0, %v1022
        %v1024 = vrot.slane %v1019, %v1023
        %v1025 = vlaneseq
        %v1026 = vshrl.u32 %v1025, 7
        %v1027 = vsub.s32 1, %v1026
        %v1028 = vrot.slane %v1019, %v1027
        %v1031 = vadd.f32 %v1005, %v1024
        %v1032 = vadd.f32 %v1006, %v1028
        %v1033 = vadd.f32 %v1007, %v1024
        %v1034 = vadd.f32 %v1008, %v1028
        %v1035 = vadd.f32 %v1009, %v1024
        %v1036 = vadd.f32 %v1010, %v1028
        %v1037 = vadd.f32 %v1011, %v1024
        %v1038 = vadd.f32 %v1012, %v1028
        %v1039 = vadd.f32 %v1013, %v1024
        %v1040 = vadd.f32 %v1014, %v1028
        %v1041 = vadd.f32 %v1015, %v1024
        %v1042 = vadd.f32 %v1016, %v1028
        %v1043 = vadd.f32 %v1017, %v1024
        %v1044 = vadd.f32 %v1018, %v1028
        %v1045 = vmax.f32 %v1031, 0.0
        %v1046 = vmax.f32 %v1032, 0.0
        %v1047 = vmax.f32 %v1033, 0.0
        %v1048 = vmax.f32 %v1034, 0.0
        %v1049 = vmax.f32 %v1035, 0.0
        %v1050 = vmax.f32 %v1036, 0.0
        %v1051 = vmax.f32 %v1037, 0.0
        %v1052 = vmax.f32 %v1038, 0.0
        %v1053 = vmax.f32 %v1039, 0.0
        %v1054 = vmax.f32 %v1040, 0.0
        %v1055 = vmax.f32 %v1041, 0.0
        %v1056 = vmax.f32 %v1042, 0.0
        %v1057 = vmax.f32 %v1043, 0.0
        %v1058 = vmax.f32 %v1044, 0.0
        %1059 = vmatprep.subr.bf16.mxu0 0
        %1060 = vmatpush1.bf16.msra.mxu0 0
        %1061 = vmatprep.subr.bf16.mxu0 0
        %1062 = vmatpush1.bf16.msra.mxu0 0
        %1063 = vmatprep.subr.bf16.mxu0 0
        %1064 = vmatpush1.bf16.msra.mxu0 0
        %1065 = vmatprep.subr.bf16.mxu0 0
        %1066 = vmatpush1.bf16.msra.mxu0 0
        %1067 = vmatprep.subr.bf16.mxu0 0
        %1068 = vmatpush1.bf16.msra.mxu0 0
        %1069 = vmatprep.subr.bf16.mxu0 0
        %1070 = vmatpush1.bf16.msra.mxu0 0
        %1071 = vmatprep.subr.bf16.mxu0 %v431
        %1072 = vmatpush1.bf16.msra.mxu0 %v430
        %1073 = vmatprep.subr.bf16.mxu0 %v429
        %1074 = vmatpush1.bf16.msra.mxu0 %v428
        %1075 = vmatprep.subr.bf16.mxu0 0
        %1076 = vmatpush2.bf16.msra.mxu0 0
        %1077 = vmatprep.subr.bf16.mxu0 0
        %1078 = vmatpush2.bf16.msra.mxu0 0
        %1079 = vmatprep.subr.bf16.mxu0 0
        %1080 = vmatpush2.bf16.msra.mxu0 0
        %1081 = vmatprep.subr.bf16.mxu0 0
        %1082 = vmatpush2.bf16.msra.mxu0 0
        %1083 = vmatprep.subr.bf16.mxu0 0
        %1084 = vmatpush2.bf16.msra.mxu0 0
        %1085 = vmatprep.subr.bf16.mxu0 0
        %1086 = vmatpush2.bf16.msra.mxu0 0
        %1087 = vmatprep.subr.bf16.mxu0 0
        %1088 = vmatpush2.bf16.msra.mxu0 0
        %1089 = vmatprep.subr.bf16.mxu0 0
        %1090 = vmatpush2.bf16.msra.mxu0 0
        %1091 = vmatprep.mubr.bf16.mxu0 0
        %1092 = vmatmul.mubr.bf16.gmra.mxu0 %v659
        %v1093 = vpop.f32.mrf.mxu0
        %v1094 = vadd.f32 0.0, %v1093
        %v1095 = vpop.f32.mrf.mxu0
        %v1096 = vadd.f32 0.0, %v1095
        %v1097 = vpop.f32.mrf.mxu0
        %v1098 = vadd.f32 0.0, %v1097
        %v1099 = vpop.f32.mrf.mxu0
        %v1100 = vadd.f32 0.0, %v1099
        %1101 = vmatprep.mubr.bf16.mxu0 0
        %1102 = vmatmul.mubr.bf16.gmra.mxu0 %v662
        %v1103 = vpop.f32.mrf.mxu0
        %v1104 = vadd.f32 0.0, %v1103
        %v1105 = vpop.f32.mrf.mxu0
        %v1106 = vadd.f32 0.0, %v1105
        %v1107 = vpop.f32.mrf.mxu0
        %v1108 = vadd.f32 0.0, %v1107
        %v1109 = vpop.f32.mrf.mxu0
        %v1110 = vadd.f32 0.0, %v1109
        %1111 = vmatprep.mubr.bf16.mxu0 0
        %1112 = vmatmul.mubr.bf16.gmra.mxu0 %v665
        %v1113 = vpop.f32.mrf.mxu0
        %v1114 = vadd.f32 0.0, %v1113
        %v1115 = vpop.f32.mrf.mxu0
        %v1116 = vadd.f32 0.0, %v1115
        %v1117 = vpop.f32.mrf.mxu0
        %v1118 = vadd.f32 0.0, %v1117
        %v1119 = vpop.f32.mrf.mxu0
        %v1120 = vadd.f32 0.0, %v1119
        %1121 = vmatprep.mubr.bf16.mxu0 0
        %1122 = vmatmul.mubr.bf16.gmra.mxu0 %v668
        %v1123 = vpop.f32.mrf.mxu0
        %v1124 = vadd.f32 0.0, %v1123
        %v1125 = vpop.f32.mrf.mxu0
        %v1126 = vadd.f32 0.0, %v1125
        %v1127 = vpop.f32.mrf.mxu0
        %v1128 = vpop.f32.mrf.mxu0
        %1129 = vdwg.mxu0
        %1130 = vmatprep.subr.bf16.mxu0 0
        %1131 = vmatpush1.bf16.msra.mxu0 0
        %1132 = vmatprep.subr.bf16.mxu0 0
        %1133 = vmatpush1.bf16.msra.mxu0 0
        %1134 = vmatprep.subr.bf16.mxu0 0
        %1135 = vmatpush1.bf16.msra.mxu0 0
        %1136 = vmatprep.subr.bf16.mxu0 0
        %1137 = vmatpush1.bf16.msra.mxu0 0
        %1138 = vmatprep.subr.bf16.mxu0 0
        %1139 = vmatpush1.bf16.msra.mxu0 0
        %1140 = vmatprep.subr.bf16.mxu0 0
        %1141 = vmatpush1.bf16.msra.mxu0 0
        %1142 = vmatprep.subr.bf16.mxu0 %v535
        %1143 = vmatpush1.bf16.msra.mxu0 %v534
        %1144 = vmatprep.subr.bf16.mxu0 %v533
        %1145 = vmatpush1.bf16.msra.mxu0 %v532
        %1146 = vmatprep.subr.bf16.mxu0 0
        %1147 = vmatpush2.bf16.msra.mxu0 0
        %1148 = vmatprep.subr.bf16.mxu0 0
        %1149 = vmatpush2.bf16.msra.mxu0 0
        %1150 = vmatprep.subr.bf16.mxu0 0
        %1151 = vmatpush2.bf16.msra.mxu0 0
        %1152 = vmatprep.subr.bf16.mxu0 0
        %1153 = vmatpush2.bf16.msra.mxu0 0
        %1154 = vmatprep.subr.bf16.mxu0 0
        %1155 = vmatpush2.bf16.msra.mxu0 0
        %1156 = vmatprep.subr.bf16.mxu0 0
        %1157 = vmatpush2.bf16.msra.mxu0 0
        %1158 = vmatprep.subr.bf16.mxu0 0
        %1159 = vmatpush2.bf16.msra.mxu0 0
        %1160 = vmatprep.subr.bf16.mxu0 0
        %1161 = vmatpush2.bf16.msra.mxu0 0
        %1162 = vmatprep.mubr.bf16.mxu0 0
        %1163 = vmatmul.mubr.bf16.gmra.mxu0 %v438
        %v1164 = vpop.f32.mrf.mxu0
        %v1165 = vadd.f32 %v1094, %v1164
        %v1166 = vpop.f32.mrf.mxu0
        %v1167 = vadd.f32 %v1096, %v1166
        %v1168 = vpop.f32.mrf.mxu0
        %v1169 = vadd.f32 %v1098, %v1168
        %v1170 = vpop.f32.mrf.mxu0
        %v1171 = vadd.f32 %v1100, %v1170
        %1172 = vmatprep.mubr.bf16.mxu0 0
        %1173 = vmatmul.mubr.bf16.gmra.mxu0 %v441
        %v1174 = vpop.f32.mrf.mxu0
        %v1175 = vadd.f32 %v1104, %v1174
        %v1176 = vpop.f32.mrf.mxu0
        %v1177 = vadd.f32 %v1106, %v1176
        %v1178 = vpop.f32.mrf.mxu0
        %v1179 = vadd.f32 %v1108, %v1178
        %v1180 = vpop.f32.mrf.mxu0
        %v1181 = vadd.f32 %v1110, %v1180
        %1182 = vmatprep.mubr.bf16.mxu0 0
        %1183 = vmatmul.mubr.bf16.gmra.mxu0 %v444
        %v1184 = vpop.f32.mrf.mxu0
        %v1185 = vadd.f32 %v1114, %v1184
        %v1186 = vpop.f32.mrf.mxu0
        %v1187 = vadd.f32 %v1116, %v1186
        %v1188 = vpop.f32.mrf.mxu0
        %v1189 = vadd.f32 %v1118, %v1188
        %v1190 = vpop.f32.mrf.mxu0
        %v1191 = vadd.f32 %v1120, %v1190
        %1192 = vmatprep.mubr.bf16.mxu0 0
        %1193 = vmatmul.mubr.bf16.gmra.mxu0 %v447
        %v1194 = vpop.f32.mrf.mxu0
        %v1195 = vadd.f32 %v1124, %v1194
        %v1196 = vpop.f32.mrf.mxu0
        %v1197 = vadd.f32 %v1126, %v1196
        %v1198 = vpop.f32.mrf.mxu0
        %v1199 = vpop.f32.mrf.mxu0
        %1200 = vdwg.mxu0
        %1201 = vmatprep.subr.bf16.mxu0 0
        %1202 = vmatpush1.bf16.msra.mxu0 0
        %1203 = vmatprep.subr.bf16.mxu0 0
        %1204 = vmatpush1.bf16.msra.mxu0 0
        %1205 = vmatprep.subr.bf16.mxu0 0
        %1206 = vmatpush1.bf16.msra.mxu0 0
        %1207 = vmatprep.subr.bf16.mxu0 0
        %1208 = vmatpush1.bf16.msra.mxu0 0
        %1209 = vmatprep.subr.bf16.mxu0 0
        %1210 = vmatpush1.bf16.msra.mxu0 0
        %1211 = vmatprep.subr.bf16.mxu0 0
        %1212 = vmatpush1.bf16.msra.mxu0 0
        %1213 = vmatprep.subr.bf16.mxu0 %v653
        %1214 = vmatpush1.bf16.msra.mxu0 %v652
        %1215 = vmatprep.subr.bf16.mxu0 %v651
        %1216 = vmatpush1.bf16.msra.mxu0 %v650
        %1217 = vmatprep.subr.bf16.mxu0 0
        %1218 = vmatpush2.bf16.msra.mxu0 0
        %1219 = vmatprep.subr.bf16.mxu0 0
        %1220 = vmatpush2.bf16.msra.mxu0 0
        %1221 = vmatprep.subr.bf16.mxu0 0
        %1222 = vmatpush2.bf16.msra.mxu0 0
        %1223 = vmatprep.subr.bf16.mxu0 0
        %1224 = vmatpush2.bf16.msra.mxu0 0
        %1225 = vmatprep.subr.bf16.mxu0 0
        %1226 = vmatpush2.bf16.msra.mxu0 0
        %1227 = vmatprep.subr.bf16.mxu0 0
        %1228 = vmatpush2.bf16.msra.mxu0 0
        %1229 = vmatprep.subr.bf16.mxu0 0
        %1230 = vmatpush2.bf16.msra.mxu0 0
        %1231 = vmatprep.subr.bf16.mxu0 0
        %1232 = vmatpush2.bf16.msra.mxu0 0
        %1233 = vmatprep.mubr.bf16.mxu0 0
        %1234 = vmatmul.mubr.bf16.gmra.mxu0 %v791
        %v1235 = vpop.f32.mrf.mxu0
        %v1236 = vadd.f32 0.0, %v1235
        %v1237 = vpop.f32.mrf.mxu0
        %v1238 = vadd.f32 0.0, %v1237
        %v1239 = vpop.f32.mrf.mxu0
        %v1240 = vadd.f32 0.0, %v1239
        %v1241 = vpop.f32.mrf.mxu0
        %v1242 = vadd.f32 0.0, %v1241
        %1243 = vmatprep.mubr.bf16.mxu0 0
        %1244 = vmatmul.mubr.bf16.gmra.mxu0 %v794
        %v1245 = vpop.f32.mrf.mxu0
        %v1246 = vadd.f32 0.0, %v1245
        %v1247 = vpop.f32.mrf.mxu0
        %v1248 = vadd.f32 0.0, %v1247
        %v1249 = vpop.f32.mrf.mxu0
        %v1250 = vadd.f32 0.0, %v1249
        %v1251 = vpop.f32.mrf.mxu0
        %v1252 = vadd.f32 0.0, %v1251
        %1253 = vmatprep.mubr.bf16.mxu0 0
        %1254 = vmatmul.mubr.bf16.gmra.mxu0 %v797
        %v1255 = vpop.f32.mrf.mxu0
        %v1256 = vadd.f32 0.0, %v1255
        %v1257 = vpop.f32.mrf.mxu0
        %v1258 = vadd.f32 0.0, %v1257
        %v1259 = vpop.f32.mrf.mxu0
        %v1260 = vadd.f32 0.0, %v1259
        %v1261 = vpop.f32.mrf.mxu0
        %v1262 = vadd.f32 0.0, %v1261
        %1263 = vmatprep.mubr.bf16.mxu0 0
        %1264 = vmatmul.mubr.bf16.gmra.mxu0 %v800
        %v1265 = vpop.f32.mrf.mxu0
        %v1266 = vadd.f32 0.0, %v1265
        %v1267 = vpop.f32.mrf.mxu0
        %v1268 = vadd.f32 0.0, %v1267
        %v1269 = vpop.f32.mrf.mxu0
        %v1270 = vpop.f32.mrf.mxu0
        %1271 = vdwg.mxu0
        %v1272 = vadd.f32 %v1165, %v1236
        %v1273 = vadd.f32 %v1167, %v1238
        %v1274 = vadd.f32 %v1169, %v1240
        %v1275 = vadd.f32 %v1171, %v1242
        %v1276 = vadd.f32 %v1175, %v1246
        %v1277 = vadd.f32 %v1177, %v1248
        %v1278 = vadd.f32 %v1179, %v1250
        %v1279 = vadd.f32 %v1181, %v1252
        %v1280 = vadd.f32 %v1185, %v1256
        %v1281 = vadd.f32 %v1187, %v1258
        %v1282 = vadd.f32 %v1189, %v1260
        %v1283 = vadd.f32 %v1191, %v1262
        %v1284 = vadd.f32 %v1195, %v1266
        %v1285 = vadd.f32 %v1197, %v1268
        %1286 = vmatprep.subr.bf16.mxu0 0
        %1287 = vmatpush1.bf16.msra.mxu0 0
        %1288 = vmatprep.subr.bf16.mxu0 0
        %1289 = vmatpush1.bf16.msra.mxu0 0
        %1290 = vmatprep.subr.bf16.mxu0 0
        %1291 = vmatpush1.bf16.msra.mxu0 0
        %1292 = vmatprep.subr.bf16.mxu0 0
        %1293 = vmatpush1.bf16.msra.mxu0 0
        %1294 = vmatprep.subr.bf16.mxu0 0
        %1295 = vmatpush1.bf16.msra.mxu0 0
        %1296 = vmatprep.subr.bf16.mxu0 0
        %1297 = vmatpush1.bf16.msra.mxu0 0
        %1298 = vmatprep.subr.bf16.mxu0 %v785
        %1299 = vmatpush1.bf16.msra.mxu0 %v784
        %1300 = vmatprep.subr.bf16.mxu0 %v783
        %1301 = vmatpush1.bf16.msra.mxu0 %v782
        %1302 = vmatprep.subr.bf16.mxu0 0
        %1303 = vmatpush2.bf16.msra.mxu0 0
        %1304 = vmatprep.subr.bf16.mxu0 0
        %1305 = vmatpush2.bf16.msra.mxu0 0
        %1306 = vmatprep.subr.bf16.mxu0 0
        %1307 = vmatpush2.bf16.msra.mxu0 0
        %1308 = vmatprep.subr.bf16.mxu0 0
        %1309 = vmatpush2.bf16.msra.mxu0 0
        %1310 = vmatprep.subr.bf16.mxu0 0
        %1311 = vmatpush2.bf16.msra.mxu0 0
        %1312 = vmatprep.subr.bf16.mxu0 0
        %1313 = vmatpush2.bf16.msra.mxu0 0
        %1314 = vmatprep.subr.bf16.mxu0 0
        %1315 = vmatpush2.bf16.msra.mxu0 0
        %1316 = vmatprep.subr.bf16.mxu0 0
        %1317 = vmatpush2.bf16.msra.mxu0 0
        %1318 = vmatprep.mubr.bf16.mxu0 0
        %1319 = vmatmul.mubr.bf16.gmra.mxu0 %v923
        %v1320 = vpop.f32.mrf.mxu0
        %v1321 = vadd.f32 0.0, %v1320
        %v1322 = vpop.f32.mrf.mxu0
        %v1323 = vadd.f32 0.0, %v1322
        %v1324 = vpop.f32.mrf.mxu0
        %v1325 = vadd.f32 0.0, %v1324
        %v1326 = vpop.f32.mrf.mxu0
        %v1327 = vadd.f32 0.0, %v1326
        %1328 = vmatprep.mubr.bf16.mxu0 0
        %1329 = vmatmul.mubr.bf16.gmra.mxu0 %v926
        %v1330 = vpop.f32.mrf.mxu0
        %v1331 = vadd.f32 0.0, %v1330
        %v1332 = vpop.f32.mrf.mxu0
        %v1333 = vadd.f32 0.0, %v1332
        %v1334 = vpop.f32.mrf.mxu0
        %v1335 = vadd.f32 0.0, %v1334
        %v1336 = vpop.f32.mrf.mxu0
        %v1337 = vadd.f32 0.0, %v1336
        %1338 = vmatprep.mubr.bf16.mxu0 0
        %1339 = vmatmul.mubr.bf16.gmra.mxu0 %v929
        %v1340 = vpop.f32.mrf.mxu0
        %v1341 = vadd.f32 0.0, %v1340
        %v1342 = vpop.f32.mrf.mxu0
        %v1343 = vadd.f32 0.0, %v1342
        %v1344 = vpop.f32.mrf.mxu0
        %v1345 = vadd.f32 0.0, %v1344
        %v1346 = vpop.f32.mrf.mxu0
        %v1347 = vadd.f32 0.0, %v1346
        %1348 = vmatprep.mubr.bf16.mxu0 0
        %1349 = vmatmul.mubr.bf16.gmra.mxu0 %v932
        %v1350 = vpop.f32.mrf.mxu0
        %v1351 = vadd.f32 0.0, %v1350
        %v1352 = vpop.f32.mrf.mxu0
        %v1353 = vadd.f32 0.0, %v1352
        %v1354 = vpop.f32.mrf.mxu0
        %v1355 = vpop.f32.mrf.mxu0
        %1356 = vdwg.mxu0
        %v1357 = vadd.f32 %v1272, %v1321
        %v1358 = vadd.f32 %v1273, %v1323
        %v1359 = vadd.f32 %v1274, %v1325
        %v1360 = vadd.f32 %v1275, %v1327
        %v1361 = vadd.f32 %v1276, %v1331
        %v1362 = vadd.f32 %v1277, %v1333
        %v1363 = vadd.f32 %v1278, %v1335
        %v1364 = vadd.f32 %v1279, %v1337
        %v1365 = vadd.f32 %v1280, %v1341
        %v1366 = vadd.f32 %v1281, %v1343
        %v1367 = vadd.f32 %v1282, %v1345
        %v1368 = vadd.f32 %v1283, %v1347
        %v1369 = vadd.f32 %v1284, %v1351
        %v1370 = vadd.f32 %v1285, %v1353
        %v1371 = vld [vmem:[%s384 + $0x90] sm:$0xff]
        %v1372 = vld [vmem:[%s384 + $0x98] sm:$0xff]
        %v1373 = vld [vmem:[%s384 + $0xa0] sm:$0xff]
        %v1374 = vld [vmem:[%s384 + $0xa8] sm:$0xff]
        %v1375 = vld [vmem:[%s384 + $0xb0] sm:$0xff]
        %v1376 = vld [vmem:[%s384 + $0xb8] sm:$0xff]
        %v1377 = vld [vmem:[%s384 + $0xc0] sm:$0xff]
        %v1378 = vpack.c.bf16 %v1372, %v1371
        %v1379 = vpack.c.bf16 %v1374, %v1373
        %v1380 = vpack.c.bf16 %v1376, %v1375
        %v1381 = vpack.c.bf16 %v1377, %v1377
        %v1383 = vsel %vm436, %v1378, 0
        %v1386 = vsel %vm436, %v1379, 0
        %v1389 = vsel %vm436, %v1380, 0
        %v1392 = vsel %vm436, %v1381, 0
        %1394 = vmatprep.subr.bf16.mxu0 0
        %1395 = vmatpush1.bf16.msra.mxu0 0
        %1396 = vmatprep.subr.bf16.mxu0 0
        %1397 = vmatpush1.bf16.msra.mxu0 0
        %1398 = vmatprep.subr.bf16.mxu0 0
        %1399 = vmatpush1.bf16.msra.mxu0 0
        %1400 = vmatprep.subr.bf16.mxu0 0
        %1401 = vmatpush1.bf16.msra.mxu0 0
        %1402 = vmatprep.subr.bf16.mxu0 0
        %1403 = vmatpush1.bf16.msra.mxu0 0
        %1404 = vmatprep.subr.bf16.mxu0 0
        %1405 = vmatpush1.bf16.msra.mxu0 0
        %1406 = vmatprep.subr.bf16.mxu0 %v917
        %1407 = vmatpush1.bf16.msra.mxu0 %v916
        %1408 = vmatprep.subr.bf16.mxu0 %v915
        %1409 = vmatpush1.bf16.msra.mxu0 %v914
        %1410 = vmatprep.subr.bf16.mxu0 0
        %1411 = vmatpush2.bf16.msra.mxu0 0
        %1412 = vmatprep.subr.bf16.mxu0 0
        %1413 = vmatpush2.bf16.msra.mxu0 0
        %1414 = vmatprep.subr.bf16.mxu0 0
        %1415 = vmatpush2.bf16.msra.mxu0 0
        %1416 = vmatprep.subr.bf16.mxu0 0
        %1417 = vmatpush2.bf16.msra.mxu0 0
        %1418 = vmatprep.subr.bf16.mxu0 0
        %1419 = vmatpush2.bf16.msra.mxu0 0
        %1420 = vmatprep.subr.bf16.mxu0 0
        %1421 = vmatpush2.bf16.msra.mxu0 0
        %1422 = vmatprep.subr.bf16.mxu0 0
        %1423 = vmatpush2.bf16.msra.mxu0 0
        %1424 = vmatprep.subr.bf16.mxu0 0
        %1425 = vmatpush2.bf16.msra.mxu0 0
        %1426 = vmatprep.mubr.bf16.mxu0 0
        %1427 = vmatmul.mubr.bf16.gmra.mxu0 %v1383
        %v1428 = vpop.f32.mrf.mxu0
        %v1429 = vadd.f32 0.0, %v1428
        %v1430 = vpop.f32.mrf.mxu0
        %v1431 = vadd.f32 0.0, %v1430
        %v1432 = vpop.f32.mrf.mxu0
        %v1433 = vadd.f32 0.0, %v1432
        %v1434 = vpop.f32.mrf.mxu0
        %v1435 = vadd.f32 0.0, %v1434
        %1436 = vmatprep.mubr.bf16.mxu0 0
        %1437 = vmatmul.mubr.bf16.gmra.mxu0 %v1386
        %v1438 = vpop.f32.mrf.mxu0
        %v1439 = vadd.f32 0.0, %v1438
        %v1440 = vpop.f32.mrf.mxu0
        %v1441 = vadd.f32 0.0, %v1440
        %v1442 = vpop.f32.mrf.mxu0
        %v1443 = vadd.f32 0.0, %v1442
        %v1444 = vpop.f32.mrf.mxu0
        %v1445 = vadd.f32 0.0, %v1444
        %1446 = vmatprep.mubr.bf16.mxu0 0
        %1447 = vmatmul.mubr.bf16.gmra.mxu0 %v1389
        %v1448 = vpop.f32.mrf.mxu0
        %v1449 = vadd.f32 0.0, %v1448
        %v1450 = vpop.f32.mrf.mxu0
        %v1451 = vadd.f32 0.0, %v1450
        %v1452 = vpop.f32.mrf.mxu0
        %v1453 = vadd.f32 0.0, %v1452
        %v1454 = vpop.f32.mrf.mxu0
        %v1455 = vadd.f32 0.0, %v1454
        %1456 = vmatprep.mubr.bf16.mxu0 0
        %1457 = vmatmul.mubr.bf16.gmra.mxu0 %v1392
        %v1458 = vpop.f32.mrf.mxu0
        %v1459 = vadd.f32 0.0, %v1458
        %v1460 = vpop.f32.mrf.mxu0
        %v1461 = vadd.f32 0.0, %v1460
        %v1462 = vpop.f32.mrf.mxu0
        %v1463 = vpop.f32.mrf.mxu0
        %1464 = vdwg.mxu0
        %v1465 = vadd.f32 %v1357, %v1429
        %v1466 = vadd.f32 %v1358, %v1431
        %v1467 = vadd.f32 %v1359, %v1433
        %v1468 = vadd.f32 %v1360, %v1435
        %v1469 = vadd.f32 %v1361, %v1439
        %v1470 = vadd.f32 %v1362, %v1441
        %v1471 = vadd.f32 %v1363, %v1443
        %v1472 = vadd.f32 %v1364, %v1445
        %v1473 = vadd.f32 %v1365, %v1449
        %v1474 = vadd.f32 %v1366, %v1451
        %v1475 = vadd.f32 %v1367, %v1453
        %v1476 = vadd.f32 %v1368, %v1455
        %v1477 = vadd.f32 %v1369, %v1459
        %v1478 = vadd.f32 %v1370, %v1461
        %v1479 = vadd.f32 %v1465, %v1024
        %v1480 = vadd.f32 %v1466, %v1028
        %v1481 = vadd.f32 %v1467, %v1024
        %v1482 = vadd.f32 %v1468, %v1028
        %v1483 = vadd.f32 %v1469, %v1024
        %v1484 = vadd.f32 %v1470, %v1028
        %v1485 = vadd.f32 %v1471, %v1024
        %v1486 = vadd.f32 %v1472, %v1028
        %v1487 = vadd.f32 %v1473, %v1024
        %v1488 = vadd.f32 %v1474, %v1028
        %v1489 = vadd.f32 %v1475, %v1024
        %v1490 = vadd.f32 %v1476, %v1028
        %v1491 = vadd.f32 %v1477, %v1024
        %v1492 = vadd.f32 %v1478, %v1028
        %v1493 = vmax.f32 %v1479, 0.0
        %v1494 = vmax.f32 %v1480, 0.0
        %v1495 = vmax.f32 %v1481, 0.0
        %v1496 = vmax.f32 %v1482, 0.0
        %v1497 = vmax.f32 %v1483, 0.0
        %v1498 = vmax.f32 %v1484, 0.0
        %v1499 = vmax.f32 %v1485, 0.0
        %v1500 = vmax.f32 %v1486, 0.0
        %v1501 = vmax.f32 %v1487, 0.0
        %v1502 = vmax.f32 %v1488, 0.0
        %v1503 = vmax.f32 %v1489, 0.0
        %v1504 = vmax.f32 %v1490, 0.0
        %v1505 = vmax.f32 %v1491, 0.0
        %v1506 = vmax.f32 %v1492, 0.0
        %v1507 = vmax.f32 %v1045, %v1493
        %v1508 = vmax.f32 %v1046, %v1494
        %v1509 = vmax.f32 %v1047, %v1495
        %v1510 = vmax.f32 %v1048, %v1496
        %v1511 = vmax.f32 %v1049, %v1497
        %v1512 = vmax.f32 %v1050, %v1498
        %v1513 = vmax.f32 %v1051, %v1499
        %v1514 = vmax.f32 %v1052, %v1500
        %v1515 = vmax.f32 %v1053, %v1501
        %v1516 = vmax.f32 %v1054, %v1502
        %v1517 = vmax.f32 %v1055, %v1503
        %v1518 = vmax.f32 %v1056, %v1504
        %v1519 = vmax.f32 %v1057, %v1505
        %v1520 = vmax.f32 %v1058, %v1506
        %v1521 = vmax.f32 %v1507, %v1508
        %v1522 = vmax.f32 %v1509, %v1510
        %v1523 = vmax.f32 %v1511, %v1512
        %v1524 = vmax.f32 %v1513, %v1514
        %v1525 = vmax.f32 %v1515, %v1516
        %v1526 = vmax.f32 %v1517, %v1518
        %v1527 = vmax.f32 %v1519, %v1520
        %1528 = vst [vmem:[#allocation2] sm:$0xff] %v1521
        %1529 = vst [vmem:[#allocation2 + $0x8] sm:$0xff] %v1522
        %1530 = vst [vmem:[#allocation2 + $0x10] sm:$0xff] %v1523
        %1531 = vst [vmem:[#allocation2 + $0x18] sm:$0xff] %v1524
        %1532 = vst [vmem:[#allocation2 + $0x20] sm:$0xff] %v1525
        %1533 = vst [vmem:[#allocation2 + $0x28] sm:$0xff] %v1526
        %1534 = vst [vmem:[#allocation2 + $0x30] sm:$0xff] %v1527
        %v1535 = vld [vmem:[%s384 + $0x38] sm:$0xff]
        %v1536 = vld [vmem:[%s384 + $0x40] sm:$0xff]
        %v1537 = vld [vmem:[%s384 + $0x48] sm:$0xff]
        %v1538 = vld [vmem:[%s384 + $0x50] sm:$0xff]
        %v1539 = vld [vmem:[%s384 + $0x58] sm:$0xff]
        %v1540 = vld [vmem:[%s384 + $0x60] sm:$0xff]
        %v1541 = vld [vmem:[%s384 + $0x68] sm:$0xff]
        %v1542 = vpack.c.bf16 %v1536, %v1535
        %v1543 = vpack.c.bf16 %v1538, %v1537
        %v1544 = vpack.c.bf16 %v1540, %v1539
        %v1545 = vpack.c.bf16 %v1541, %v1541
        %v1546 = vld [vmem:[%s1] sm:$0xff]
        %v1547 = vld [vmem:[%s1 + $0x8] sm:$0xff]
        %v1548 = vld [vmem:[%s1 + $0x10] sm:$0xff]
        %v1549 = vld [vmem:[%s1 + $0x18] sm:$0xff]
        %v1550 = vld [vmem:[%s384 + $0xb8] sm:$0xff]
        %v1551 = vld [vmem:[%s384 + $0xc0] sm:$0xff]
        %v1552 = vld [vmem:[%s384 + $0xc8] sm:$0xff]
        %v1553 = vld [vmem:[%s384 + $0xd0] sm:$0xff]
        %v1554 = vld [vmem:[%s384 + $0xd8] sm:$0xff]
        %v1555 = vld [vmem:[%s384 + $0xe0] sm:$0xff]
        %v1556 = vld [vmem:[%s384 + $0xe8] sm:$0xff]
        %v1557 = vpack.c.bf16 %v1551, %v1550
        %v1558 = vpack.c.bf16 %v1553, %v1552
        %v1559 = vpack.c.bf16 %v1555, %v1554
        %v1560 = vpack.c.bf16 %v1556, %v1556
        %v1561 = vld [vmem:[%s1 + $0x20] sm:$0xff]
        %v1562 = vld [vmem:[%s1 + $0x28] sm:$0xff]
        %v1563 = vld [vmem:[%s1 + $0x30] sm:$0xff]
        %v1564 = vld [vmem:[%s1 + $0x38] sm:$0xff]
        %v1569 = vunpack.c.l.b16 %v1561
        %v1570 = vunpack.c.h.b16 %v1561
        %v1571 = vunpack.c.l.b16 %v1562
        %v1572 = vunpack.c.h.b16 %v1562
        %v1573 = vunpack.c.l.b16 %v1563
        %v1574 = vunpack.c.h.b16 %v1563
        %v1575 = vunpack.c.l.b16 %v1564
        %v1576 = vunpack.c.h.b16 %v1564
        %v1577 = vpack.c.b16 %v1571, %v1569
        %v1578 = vpack.c.b16 %v1572, %v1570
        %v1579 = vpack.c.b16 %v1575, %v1573
        %v1580 = vpack.c.b16 %v1576, %v1574
        %v1586 = vsel %vm436, %v1557, 0
        %v1589 = vsel %vm436, %v1558, 0
        %v1592 = vsel %vm436, %v1559, 0
        %v1595 = vsel %vm436, %v1560, 0
        %1597 = vmatprep.subr.bf16.mxu0 0
        %1598 = vmatpush1.bf16.msra.mxu0 0
        %1599 = vmatprep.subr.bf16.mxu0 0
        %1600 = vmatpush1.bf16.msra.mxu0 0
        %1601 = vmatprep.subr.bf16.mxu0 0
        %1602 = vmatpush1.bf16.msra.mxu0 0
        %1603 = vmatprep.subr.bf16.mxu0 0
        %1604 = vmatpush1.bf16.msra.mxu0 0
        %1605 = vmatprep.subr.bf16.mxu0 0
        %1606 = vmatpush1.bf16.msra.mxu0 0
        %1607 = vmatprep.subr.bf16.mxu0 0
        %1608 = vmatpush1.bf16.msra.mxu0 0
        %1609 = vmatprep.subr.bf16.mxu0 %v1580
        %1610 = vmatpush1.bf16.msra.mxu0 %v1579
        %1611 = vmatprep.subr.bf16.mxu0 %v1578
        %1612 = vmatpush1.bf16.msra.mxu0 %v1577
        %1613 = vmatprep.subr.bf16.mxu0 0
        %1614 = vmatpush2.bf16.msra.mxu0 0
        %1615 = vmatprep.subr.bf16.mxu0 0
        %1616 = vmatpush2.bf16.msra.mxu0 0
        %1617 = vmatprep.subr.bf16.mxu0 0
        %1618 = vmatpush2.bf16.msra.mxu0 0
        %1619 = vmatprep.subr.bf16.mxu0 0
        %1620 = vmatpush2.bf16.msra.mxu0 0
        %1621 = vmatprep.subr.bf16.mxu0 0
        %1622 = vmatpush2.bf16.msra.mxu0 0
        %1623 = vmatprep.subr.bf16.mxu0 0
        %1624 = vmatpush2.bf16.msra.mxu0 0
        %1625 = vmatprep.subr.bf16.mxu0 0
        %1626 = vmatpush2.bf16.msra.mxu0 0
        %1627 = vmatprep.subr.bf16.mxu0 0
        %1628 = vmatpush2.bf16.msra.mxu0 0
        %1629 = vmatprep.mubr.bf16.mxu0 0
        %1630 = vmatmul.mubr.bf16.gmra.mxu0 %v1586
        %v1631 = vpop.f32.mrf.mxu0
        %v1632 = vadd.f32 0.0, %v1631
        %v1633 = vpop.f32.mrf.mxu0
        %v1634 = vadd.f32 0.0, %v1633
        %v1635 = vpop.f32.mrf.mxu0
        %v1636 = vadd.f32 0.0, %v1635
        %v1637 = vpop.f32.mrf.mxu0
        %v1638 = vadd.f32 0.0, %v1637
        %1639 = vmatprep.mubr.bf16.mxu0 0
        %1640 = vmatmul.mubr.bf16.gmra.mxu0 %v1589
        %v1641 = vpop.f32.mrf.mxu0
        %v1642 = vadd.f32 0.0, %v1641
        %v1643 = vpop.f32.mrf.mxu0
        %v1644 = vadd.f32 0.0, %v1643
        %v1645 = vpop.f32.mrf.mxu0
        %v1646 = vadd.f32 0.0, %v1645
        %v1647 = vpop.f32.mrf.mxu0
        %v1648 = vadd.f32 0.0, %v1647
        %1649 = vmatprep.mubr.bf16.mxu0 0
        %1650 = vmatmul.mubr.bf16.gmra.mxu0 %v1592
        %v1651 = vpop.f32.mrf.mxu0
        %v1652 = vadd.f32 0.0, %v1651
        %v1653 = vpop.f32.mrf.mxu0
        %v1654 = vadd.f32 0.0, %v1653
        %v1655 = vpop.f32.mrf.mxu0
        %v1656 = vadd.f32 0.0, %v1655
        %v1657 = vpop.f32.mrf.mxu0
        %v1658 = vadd.f32 0.0, %v1657
        %1659 = vmatprep.mubr.bf16.mxu0 0
        %1660 = vmatmul.mubr.bf16.gmra.mxu0 %v1595
        %v1661 = vpop.f32.mrf.mxu0
        %v1662 = vadd.f32 0.0, %v1661
        %v1663 = vpop.f32.mrf.mxu0
        %v1664 = vadd.f32 0.0, %v1663
        %v1665 = vpop.f32.mrf.mxu0
        %v1666 = vpop.f32.mrf.mxu0
        %1667 = vdwg.mxu0
        %v1672 = vunpack.c.l.b16 %v1546
        %v1673 = vunpack.c.h.b16 %v1546
        %v1674 = vunpack.c.l.b16 %v1547
        %v1675 = vunpack.c.h.b16 %v1547
        %v1676 = vunpack.c.l.b16 %v1548
        %v1677 = vunpack.c.h.b16 %v1548
        %v1678 = vunpack.c.l.b16 %v1549
        %v1679 = vunpack.c.h.b16 %v1549
        %v1680 = vpack.c.b16 %v1674, %v1672
        %v1681 = vpack.c.b16 %v1675, %v1673
        %v1682 = vpack.c.b16 %v1678, %v1676
        %v1683 = vpack.c.b16 %v1679, %v1677
        %v1689 = vsel %vm436, %v1542, 0
        %v1692 = vsel %vm436, %v1543, 0
        %v1695 = vsel %vm436, %v1544, 0
        %v1698 = vsel %vm436, %v1545, 0
        %1700 = vmatprep.subr.bf16.mxu0 0
        %1701 = vmatpush1.bf16.msra.mxu0 0
        %1702 = vmatprep.subr.bf16.mxu0 0
        %1703 = vmatpush1.bf16.msra.mxu0 0
        %1704 = vmatprep.subr.bf16.mxu0 0
        %1705 = vmatpush1.bf16.msra.mxu0 0
        %1706 = vmatprep.subr.bf16.mxu0 0
        %1707 = vmatpush1.bf16.msra.mxu0 0
        %1708 = vmatprep.subr.bf16.mxu0 0
        %1709 = vmatpush1.bf16.msra.mxu0 0
        %1710 = vmatprep.subr.bf16.mxu0 0
        %1711 = vmatpush1.bf16.msra.mxu0 0
        %1712 = vmatprep.subr.bf16.mxu0 %v1683
        %1713 = vmatpush1.bf16.msra.mxu0 %v1682
        %1714 = vmatprep.subr.bf16.mxu0 %v1681
        %1715 = vmatpush1.bf16.msra.mxu0 %v1680
        %1716 = vmatprep.subr.bf16.mxu0 0
        %1717 = vmatpush2.bf16.msra.mxu0 0
        %1718 = vmatprep.subr.bf16.mxu0 0
        %1719 = vmatpush2.bf16.msra.mxu0 0
        %1720 = vmatprep.subr.bf16.mxu0 0
        %1721 = vmatpush2.bf16.msra.mxu0 0
        %1722 = vmatprep.subr.bf16.mxu0 0
        %1723 = vmatpush2.bf16.msra.mxu0 0
        %1724 = vmatprep.subr.bf16.mxu0 0
        %1725 = vmatpush2.bf16.msra.mxu0 0
        %1726 = vmatprep.subr.bf16.mxu0 0
        %1727 = vmatpush2.bf16.msra.mxu0 0
        %1728 = vmatprep.subr.bf16.mxu0 0
        %1729 = vmatpush2.bf16.msra.mxu0 0
        %1730 = vmatprep.subr.bf16.mxu0 0
        %1731 = vmatpush2.bf16.msra.mxu0 0
        %1732 = vmatprep.mubr.bf16.mxu0 0
        %1733 = vmatmul.mubr.bf16.gmra.mxu0 %v1689
        %v1734 = vpop.f32.mrf.mxu0
        %v1735 = vadd.f32 %v1632, %v1734
        %v1736 = vpop.f32.mrf.mxu0
        %v1737 = vadd.f32 %v1634, %v1736
        %v1738 = vpop.f32.mrf.mxu0
        %v1739 = vadd.f32 %v1636, %v1738
        %v1740 = vpop.f32.mrf.mxu0
        %v1741 = vadd.f32 %v1638, %v1740
        %1742 = vmatprep.mubr.bf16.mxu0 0
        %1743 = vmatmul.mubr.bf16.gmra.mxu0 %v1692
        %v1744 = vpop.f32.mrf.mxu0
        %v1745 = vadd.f32 %v1642, %v1744
        %v1746 = vpop.f32.mrf.mxu0
        %v1747 = vadd.f32 %v1644, %v1746
        %v1748 = vpop.f32.mrf.mxu0
        %v1749 = vadd.f32 %v1646, %v1748
        %v1750 = vpop.f32.mrf.mxu0
        %v1751 = vadd.f32 %v1648, %v1750
        %1752 = vmatprep.mubr.bf16.mxu0 0
        %1753 = vmatmul.mubr.bf16.gmra.mxu0 %v1695
        %v1754 = vpop.f32.mrf.mxu0
        %v1755 = vadd.f32 %v1652, %v1754
        %v1756 = vpop.f32.mrf.mxu0
        %v1757 = vadd.f32 %v1654, %v1756
        %v1758 = vpop.f32.mrf.mxu0
        %v1759 = vadd.f32 %v1656, %v1758
        %v1760 = vpop.f32.mrf.mxu0
        %v1761 = vadd.f32 %v1658, %v1760
        %1762 = vmatprep.mubr.bf16.mxu0 0
        %1763 = vmatmul.mubr.bf16.gmra.mxu0 %v1698
        %v1764 = vpop.f32.mrf.mxu0
        %v1765 = vadd.f32 %v1662, %v1764
        %v1766 = vpop.f32.mrf.mxu0
        %v1767 = vadd.f32 %v1664, %v1766
        %v1768 = vpop.f32.mrf.mxu0
        %v1769 = vpop.f32.mrf.mxu0
        %1770 = vdwg.mxu0
        %v1771 = vld [vmem:[%s384 + $0x40] sm:$0xff]
        %v1772 = vld [vmem:[%s384 + $0x48] sm:$0xff]
        %v1773 = vld [vmem:[%s384 + $0x50] sm:$0xff]
        %v1774 = vld [vmem:[%s384 + $0x58] sm:$0xff]
        %v1775 = vld [vmem:[%s384 + $0x60] sm:$0xff]
        %v1776 = vld [vmem:[%s384 + $0x68] sm:$0xff]
        %v1777 = vld [vmem:[%s384 + $0x70] sm:$0xff]
        %v1778 = vpack.c.bf16 %v1772, %v1771
        %v1779 = vpack.c.bf16 %v1774, %v1773
        %v1780 = vpack.c.bf16 %v1776, %v1775
        %v1781 = vpack.c.bf16 %v1777, %v1777
        %v1782 = vld [vmem:[%s1 + $0x40] sm:$0xff]
        %v1783 = vld [vmem:[%s1 + $0x48] sm:$0xff]
        %v1784 = vld [vmem:[%s1 + $0x50] sm:$0xff]
        %v1785 = vld [vmem:[%s1 + $0x58] sm:$0xff]
        %v1790 = vunpack.c.l.b16 %v1782
        %v1791 = vunpack.c.h.b16 %v1782
        %v1792 = vunpack.c.l.b16 %v1783
        %v1793 = vunpack.c.h.b16 %v1783
        %v1794 = vunpack.c.l.b16 %v1784
        %v1795 = vunpack.c.h.b16 %v1784
        %v1796 = vunpack.c.l.b16 %v1785
        %v1797 = vunpack.c.h.b16 %v1785
        %v1798 = vpack.c.b16 %v1792, %v1790
        %v1799 = vpack.c.b16 %v1793, %v1791
        %v1800 = vpack.c.b16 %v1796, %v1794
        %v1801 = vpack.c.b16 %v1797, %v1795
        %v1807 = vsel %vm436, %v1778, 0
        %v1810 = vsel %vm436, %v1779, 0
        %v1813 = vsel %vm436, %v1780, 0
        %v1816 = vsel %vm436, %v1781, 0
        %1818 = vmatprep.subr.bf16.mxu0 0
        %1819 = vmatpush1.bf16.msra.mxu0 0
        %1820 = vmatprep.subr.bf16.mxu0 0
        %1821 = vmatpush1.bf16.msra.mxu0 0
        %1822 = vmatprep.subr.bf16.mxu0 0
        %1823 = vmatpush1.bf16.msra.mxu0 0
        %1824 = vmatprep.subr.bf16.mxu0 0
        %1825 = vmatpush1.bf16.msra.mxu0 0
        %1826 = vmatprep.subr.bf16.mxu0 0
        %1827 = vmatpush1.bf16.msra.mxu0 0
        %1828 = vmatprep.subr.bf16.mxu0 0
        %1829 = vmatpush1.bf16.msra.mxu0 0
        %1830 = vmatprep.subr.bf16.mxu0 %v1801
        %1831 = vmatpush1.bf16.msra.mxu0 %v1800
        %1832 = vmatprep.subr.bf16.mxu0 %v1799
        %1833 = vmatpush1.bf16.msra.mxu0 %v1798
        %1834 = vmatprep.subr.bf16.mxu0 0
        %1835 = vmatpush2.bf16.msra.mxu0 0
        %1836 = vmatprep.subr.bf16.mxu0 0
        %1837 = vmatpush2.bf16.msra.mxu0 0
        %1838 = vmatprep.subr.bf16.mxu0 0
        %1839 = vmatpush2.bf16.msra.mxu0 0
        %1840 = vmatprep.subr.bf16.mxu0 0
        %1841 = vmatpush2.bf16.msra.mxu0 0
        %1842 = vmatprep.subr.bf16.mxu0 0
        %1843 = vmatpush2.bf16.msra.mxu0 0
        %1844 = vmatprep.subr.bf16.mxu0 0
        %1845 = vmatpush2.bf16.msra.mxu0 0
        %1846 = vmatprep.subr.bf16.mxu0 0
        %1847 = vmatpush2.bf16.msra.mxu0 0
        %1848 = vmatprep.subr.bf16.mxu0 0
        %1849 = vmatpush2.bf16.msra.mxu0 0
        %1850 = vmatprep.mubr.bf16.mxu0 0
        %1851 = vmatmul.mubr.bf16.gmra.mxu0 %v1807
        %v1852 = vpop.f32.mrf.mxu0
        %v1853 = vadd.f32 0.0, %v1852
        %v1854 = vpop.f32.mrf.mxu0
        %v1855 = vadd.f32 0.0, %v1854
        %v1856 = vpop.f32.mrf.mxu0
        %v1857 = vadd.f32 0.0, %v1856
        %v1858 = vpop.f32.mrf.mxu0
        %v1859 = vadd.f32 0.0, %v1858
        %1860 = vmatprep.mubr.bf16.mxu0 0
        %1861 = vmatmul.mubr.bf16.gmra.mxu0 %v1810
        %v1862 = vpop.f32.mrf.mxu0
        %v1863 = vadd.f32 0.0, %v1862
        %v1864 = vpop.f32.mrf.mxu0
        %v1865 = vadd.f32 0.0, %v1864
        %v1866 = vpop.f32.mrf.mxu0
        %v1867 = vadd.f32 0.0, %v1866
        %v1868 = vpop.f32.mrf.mxu0
        %v1869 = vadd.f32 0.0, %v1868
        %1870 = vmatprep.mubr.bf16.mxu0 0
        %1871 = vmatmul.mubr.bf16.gmra.mxu0 %v1813
        %v1872 = vpop.f32.mrf.mxu0
        %v1873 = vadd.f32 0.0, %v1872
        %v1874 = vpop.f32.mrf.mxu0
        %v1875 = vadd.f32 0.0, %v1874
        %v1876 = vpop.f32.mrf.mxu0
        %v1877 = vadd.f32 0.0, %v1876
        %v1878 = vpop.f32.mrf.mxu0
        %v1879 = vadd.f32 0.0, %v1878
        %1880 = vmatprep.mubr.bf16.mxu0 0
        %1881 = vmatmul.mubr.bf16.gmra.mxu0 %v1816
        %v1882 = vpop.f32.mrf.mxu0
        %v1883 = vadd.f32 0.0, %v1882
        %v1884 = vpop.f32.mrf.mxu0
        %v1885 = vadd.f32 0.0, %v1884
        %v1886 = vpop.f32.mrf.mxu0
        %v1887 = vpop.f32.mrf.mxu0
        %1888 = vdwg.mxu0
        %v1889 = vadd.f32 %v1735, %v1853
        %v1890 = vadd.f32 %v1737, %v1855
        %v1891 = vadd.f32 %v1739, %v1857
        %v1892 = vadd.f32 %v1741, %v1859
        %v1893 = vadd.f32 %v1745, %v1863
        %v1894 = vadd.f32 %v1747, %v1865
        %v1895 = vadd.f32 %v1749, %v1867
        %v1896 = vadd.f32 %v1751, %v1869
        %v1897 = vadd.f32 %v1755, %v1873
        %v1898 = vadd.f32 %v1757, %v1875
        %v1899 = vadd.f32 %v1759, %v1877
        %v1900 = vadd.f32 %v1761, %v1879
        %v1901 = vadd.f32 %v1765, %v1883
        %v1902 = vadd.f32 %v1767, %v1885
        %v1903 = vld [vmem:[%s384 + $0xc0] sm:$0xff]
        %v1904 = vld [vmem:[%s384 + $0xc8] sm:$0xff]
        %v1905 = vld [vmem:[%s384 + $0xd0] sm:$0xff]
        %v1906 = vld [vmem:[%s384 + $0xd8] sm:$0xff]
        %v1907 = vld [vmem:[%s384 + $0xe0] sm:$0xff]
        %v1908 = vld [vmem:[%s384 + $0xe8] sm:$0xff]
        %v1909 = vld [vmem:[%s384 + $0xf0] sm:$0xff]
        %v1910 = vpack.c.bf16 %v1904, %v1903
        %v1911 = vpack.c.bf16 %v1906, %v1905
        %v1912 = vpack.c.bf16 %v1908, %v1907
        %v1913 = vpack.c.bf16 %v1909, %v1909
        %v1914 = vld [vmem:[%s1 + $0x60] sm:$0xff]
        %v1915 = vld [vmem:[%s1 + $0x68] sm:$0xff]
        %v1916 = vld [vmem:[%s1 + $0x70] sm:$0xff]
        %v1917 = vld [vmem:[%s1 + $0x78] sm:$0xff]
        %v1922 = vunpack.c.l.b16 %v1914
        %v1923 = vunpack.c.h.b16 %v1914
        %v1924 = vunpack.c.l.b16 %v1915
        %v1925 = vunpack.c.h.b16 %v1915
        %v1926 = vunpack.c.l.b16 %v1916
        %v1927 = vunpack.c.h.b16 %v1916
        %v1928 = vunpack.c.l.b16 %v1917
        %v1929 = vunpack.c.h.b16 %v1917
        %v1930 = vpack.c.b16 %v1924, %v1922
        %v1931 = vpack.c.b16 %v1925, %v1923
        %v1932 = vpack.c.b16 %v1928, %v1926
        %v1933 = vpack.c.b16 %v1929, %v1927
        %v1939 = vsel %vm436, %v1910, 0
        %v1942 = vsel %vm436, %v1911, 0
        %v1945 = vsel %vm436, %v1912, 0
        %v1948 = vsel %vm436, %v1913, 0
        %1950 = vmatprep.subr.bf16.mxu0 0
        %1951 = vmatpush1.bf16.msra.mxu0 0
        %1952 = vmatprep.subr.bf16.mxu0 0
        %1953 = vmatpush1.bf16.msra.mxu0 0
        %1954 = vmatprep.subr.bf16.mxu0 0
        %1955 = vmatpush1.bf16.msra.mxu0 0
        %1956 = vmatprep.subr.bf16.mxu0 0
        %1957 = vmatpush1.bf16.msra.mxu0 0
        %1958 = vmatprep.subr.bf16.mxu0 0
        %1959 = vmatpush1.bf16.msra.mxu0 0
        %1960 = vmatprep.subr.bf16.mxu0 0
        %1961 = vmatpush1.bf16.msra.mxu0 0
        %1962 = vmatprep.subr.bf16.mxu0 %v1933
        %1963 = vmatpush1.bf16.msra.mxu0 %v1932
        %1964 = vmatprep.subr.bf16.mxu0 %v1931
        %1965 = vmatpush1.bf16.msra.mxu0 %v1930
        %1966 = vmatprep.subr.bf16.mxu0 0
        %1967 = vmatpush2.bf16.msra.mxu0 0
        %1968 = vmatprep.subr.bf16.mxu0 0
        %1969 = vmatpush2.bf16.msra.mxu0 0
        %1970 = vmatprep.subr.bf16.mxu0 0
        %1971 = vmatpush2.bf16.msra.mxu0 0
        %1972 = vmatprep.subr.bf16.mxu0 0
        %1973 = vmatpush2.bf16.msra.mxu0 0
        %1974 = vmatprep.subr.bf16.mxu0 0
        %1975 = vmatpush2.bf16.msra.mxu0 0
        %1976 = vmatprep.subr.bf16.mxu0 0
        %1977 = vmatpush2.bf16.msra.mxu0 0
        %1978 = vmatprep.subr.bf16.mxu0 0
        %1979 = vmatpush2.bf16.msra.mxu0 0
        %1980 = vmatprep.subr.bf16.mxu0 0
        %1981 = vmatpush2.bf16.msra.mxu0 0
        %1982 = vmatprep.mubr.bf16.mxu0 0
        %1983 = vmatmul.mubr.bf16.gmra.mxu0 %v1939
        %v1984 = vpop.f32.mrf.mxu0
        %v1985 = vadd.f32 0.0, %v1984
        %v1986 = vpop.f32.mrf.mxu0
        %v1987 = vadd.f32 0.0, %v1986
        %v1988 = vpop.f32.mrf.mxu0
        %v1989 = vadd.f32 0.0, %v1988
        %v1990 = vpop.f32.mrf.mxu0
        %v1991 = vadd.f32 0.0, %v1990
        %1992 = vmatprep.mubr.bf16.mxu0 0
        %1993 = vmatmul.mubr.bf16.gmra.mxu0 %v1942
        %v1994 = vpop.f32.mrf.mxu0
        %v1995 = vadd.f32 0.0, %v1994
        %v1996 = vpop.f32.mrf.mxu0
        %v1997 = vadd.f32 0.0, %v1996
        %v1998 = vpop.f32.mrf.mxu0
        %v1999 = vadd.f32 0.0, %v1998
        %v2000 = vpop.f32.mrf.mxu0
        %v2001 = vadd.f32 0.0, %v2000
        %2002 = vmatprep.mubr.bf16.mxu0 0
        %2003 = vmatmul.mubr.bf16.gmra.mxu0 %v1945
        %v2004 = vpop.f32.mrf.mxu0
        %v2005 = vadd.f32 0.0, %v2004
        %v2006 = vpop.f32.mrf.mxu0
        %v2007 = vadd.f32 0.0, %v2006
        %v2008 = vpop.f32.mrf.mxu0
        %v2009 = vadd.f32 0.0, %v2008
        %v2010 = vpop.f32.mrf.mxu0
        %v2011 = vadd.f32 0.0, %v2010
        %2012 = vmatprep.mubr.bf16.mxu0 0
        %2013 = vmatmul.mubr.bf16.gmra.mxu0 %v1948
        %v2014 = vpop.f32.mrf.mxu0
        %v2015 = vadd.f32 0.0, %v2014
        %v2016 = vpop.f32.mrf.mxu0
        %v2017 = vadd.f32 0.0, %v2016
        %v2018 = vpop.f32.mrf.mxu0
        %v2019 = vpop.f32.mrf.mxu0
        %2020 = vdwg.mxu0
        %v2021 = vadd.f32 %v1889, %v1985
        %v2022 = vadd.f32 %v1890, %v1987
        %v2023 = vadd.f32 %v1891, %v1989
        %v2024 = vadd.f32 %v1892, %v1991
        %v2025 = vadd.f32 %v1893, %v1995
        %v2026 = vadd.f32 %v1894, %v1997
        %v2027 = vadd.f32 %v1895, %v1999
        %v2028 = vadd.f32 %v1896, %v2001
        %v2029 = vadd.f32 %v1897, %v2005
        %v2030 = vadd.f32 %v1898, %v2007
        %v2031 = vadd.f32 %v1899, %v2009
        %v2032 = vadd.f32 %v1900, %v2011
        %v2033 = vadd.f32 %v1901, %v2015
        %v2034 = vadd.f32 %v1902, %v2017
        %v2035 = vld [vmem:[%s384 + $0x48] sm:$0xff]
        %v2036 = vld [vmem:[%s384 + $0x50] sm:$0xff]
        %v2037 = vld [vmem:[%s384 + $0x58] sm:$0xff]
        %v2038 = vld [vmem:[%s384 + $0x60] sm:$0xff]
        %v2039 = vld [vmem:[%s384 + $0x68] sm:$0xff]
        %v2040 = vld [vmem:[%s384 + $0x70] sm:$0xff]
        %v2041 = vld [vmem:[%s384 + $0x78] sm:$0xff]
        %v2042 = vpack.c.bf16 %v2036, %v2035
        %v2043 = vpack.c.bf16 %v2038, %v2037
        %v2044 = vpack.c.bf16 %v2040, %v2039
        %v2045 = vpack.c.bf16 %v2041, %v2041
        %v2046 = vld [vmem:[%s1 + $0x80] sm:$0xff]
        %v2047 = vld [vmem:[%s1 + $0x88] sm:$0xff]
        %v2048 = vld [vmem:[%s1 + $0x90] sm:$0xff]
        %v2049 = vld [vmem:[%s1 + $0x98] sm:$0xff]
        %v2054 = vunpack.c.l.b16 %v2046
        %v2055 = vunpack.c.h.b16 %v2046
        %v2056 = vunpack.c.l.b16 %v2047
        %v2057 = vunpack.c.h.b16 %v2047
        %v2058 = vunpack.c.l.b16 %v2048
        %v2059 = vunpack.c.h.b16 %v2048
        %v2060 = vunpack.c.l.b16 %v2049
        %v2061 = vunpack.c.h.b16 %v2049
        %v2062 = vpack.c.b16 %v2056, %v2054
        %v2063 = vpack.c.b16 %v2057, %v2055
        %v2064 = vpack.c.b16 %v2060, %v2058
        %v2065 = vpack.c.b16 %v2061, %v2059
        %v2071 = vsel %vm436, %v2042, 0
        %v2074 = vsel %vm436, %v2043, 0
        %v2077 = vsel %vm436, %v2044, 0
        %v2080 = vsel %vm436, %v2045, 0
        %2082 = vmatprep.subr.bf16.mxu0 0
        %2083 = vmatpush1.bf16.msra.mxu0 0
        %2084 = vmatprep.subr.bf16.mxu0 0
        %2085 = vmatpush1.bf16.msra.mxu0 0
        %2086 = vmatprep.subr.bf16.mxu0 0
        %2087 = vmatpush1.bf16.msra.mxu0 0
        %2088 = vmatprep.subr.bf16.mxu0 0
        %2089 = vmatpush1.bf16.msra.mxu0 0
        %2090 = vmatprep.subr.bf16.mxu0 0
        %2091 = vmatpush1.bf16.msra.mxu0 0
        %2092 = vmatprep.subr.bf16.mxu0 0
        %2093 = vmatpush1.bf16.msra.mxu0 0
        %2094 = vmatprep.subr.bf16.mxu0 %v2065
        %2095 = vmatpush1.bf16.msra.mxu0 %v2064
        %2096 = vmatprep.subr.bf16.mxu0 %v2063
        %2097 = vmatpush1.bf16.msra.mxu0 %v2062
        %2098 = vmatprep.subr.bf16.mxu0 0
        %2099 = vmatpush2.bf16.msra.mxu0 0
        %2100 = vmatprep.subr.bf16.mxu0 0
        %2101 = vmatpush2.bf16.msra.mxu0 0
        %2102 = vmatprep.subr.bf16.mxu0 0
        %2103 = vmatpush2.bf16.msra.mxu0 0
        %2104 = vmatprep.subr.bf16.mxu0 0
        %2105 = vmatpush2.bf16.msra.mxu0 0
        %2106 = vmatprep.subr.bf16.mxu0 0
        %2107 = vmatpush2.bf16.msra.mxu0 0
        %2108 = vmatprep.subr.bf16.mxu0 0
        %2109 = vmatpush2.bf16.msra.mxu0 0
        %2110 = vmatprep.subr.bf16.mxu0 0
        %2111 = vmatpush2.bf16.msra.mxu0 0
        %2112 = vmatprep.subr.bf16.mxu0 0
        %2113 = vmatpush2.bf16.msra.mxu0 0
        %2114 = vmatprep.mubr.bf16.mxu0 0
        %2115 = vmatmul.mubr.bf16.gmra.mxu0 %v2071
        %v2116 = vpop.f32.mrf.mxu0
        %v2117 = vadd.f32 0.0, %v2116
        %v2118 = vpop.f32.mrf.mxu0
        %v2119 = vadd.f32 0.0, %v2118
        %v2120 = vpop.f32.mrf.mxu0
        %v2121 = vadd.f32 0.0, %v2120
        %v2122 = vpop.f32.mrf.mxu0
        %v2123 = vadd.f32 0.0, %v2122
        %2124 = vmatprep.mubr.bf16.mxu0 0
        %2125 = vmatmul.mubr.bf16.gmra.mxu0 %v2074
        %v2126 = vpop.f32.mrf.mxu0
        %v2127 = vadd.f32 0.0, %v2126
        %v2128 = vpop.f32.mrf.mxu0
        %v2129 = vadd.f32 0.0, %v2128
        %v2130 = vpop.f32.mrf.mxu0
        %v2131 = vadd.f32 0.0, %v2130
        %v2132 = vpop.f32.mrf.mxu0
        %v2133 = vadd.f32 0.0, %v2132
        %2134 = vmatprep.mubr.bf16.mxu0 0
        %2135 = vmatmul.mubr.bf16.gmra.mxu0 %v2077
        %v2136 = vpop.f32.mrf.mxu0
        %v2137 = vadd.f32 0.0, %v2136
        %v2138 = vpop.f32.mrf.mxu0
        %v2139 = vadd.f32 0.0, %v2138
        %v2140 = vpop.f32.mrf.mxu0
        %v2141 = vadd.f32 0.0, %v2140
        %v2142 = vpop.f32.mrf.mxu0
        %v2143 = vadd.f32 0.0, %v2142
        %2144 = vmatprep.mubr.bf16.mxu0 0
        %2145 = vmatmul.mubr.bf16.gmra.mxu0 %v2080
        %v2146 = vpop.f32.mrf.mxu0
        %v2147 = vadd.f32 0.0, %v2146
        %v2148 = vpop.f32.mrf.mxu0
        %v2149 = vadd.f32 0.0, %v2148
        %v2150 = vpop.f32.mrf.mxu0
        %v2151 = vpop.f32.mrf.mxu0
        %2152 = vdwg.mxu0
        %v2153 = vadd.f32 %v2021, %v2117
        %v2154 = vadd.f32 %v2022, %v2119
        %v2155 = vadd.f32 %v2023, %v2121
        %v2156 = vadd.f32 %v2024, %v2123
        %v2157 = vadd.f32 %v2025, %v2127
        %v2158 = vadd.f32 %v2026, %v2129
        %v2159 = vadd.f32 %v2027, %v2131
        %v2160 = vadd.f32 %v2028, %v2133
        %v2161 = vadd.f32 %v2029, %v2137
        %v2162 = vadd.f32 %v2030, %v2139
        %v2163 = vadd.f32 %v2031, %v2141
        %v2164 = vadd.f32 %v2032, %v2143
        %v2165 = vadd.f32 %v2033, %v2147
        %v2166 = vadd.f32 %v2034, %v2149
        %v2167 = vld [vmem:[%s2] sm:$0x3]
        %v2169 = vlaneseq
        %v2170 = vshrl.u32 %v2169, 7
        %v2171 = vsub.s32 0, %v2170
        %v2172 = vrot.slane %v2167, %v2171
        %v2173 = vlaneseq
        %v2174 = vshrl.u32 %v2173, 7
        %v2175 = vsub.s32 1, %v2174
        %v2176 = vrot.slane %v2167, %v2175
        %v2179 = vadd.f32 %v2153, %v2172
        %v2180 = vadd.f32 %v2154, %v2176
        %v2181 = vadd.f32 %v2155, %v2172
        %v2182 = vadd.f32 %v2156, %v2176
        %v2183 = vadd.f32 %v2157, %v2172
        %v2184 = vadd.f32 %v2158, %v2176
        %v2185 = vadd.f32 %v2159, %v2172
        %v2186 = vadd.f32 %v2160, %v2176
        %v2187 = vadd.f32 %v2161, %v2172
        %v2188 = vadd.f32 %v2162, %v2176
        %v2189 = vadd.f32 %v2163, %v2172
        %v2190 = vadd.f32 %v2164, %v2176
        %v2191 = vadd.f32 %v2165, %v2172
        %v2192 = vadd.f32 %v2166, %v2176
        %v2193 = vmax.f32 %v2179, 0.0
        %v2194 = vmax.f32 %v2180, 0.0
        %v2195 = vmax.f32 %v2181, 0.0
        %v2196 = vmax.f32 %v2182, 0.0
        %v2197 = vmax.f32 %v2183, 0.0
        %v2198 = vmax.f32 %v2184, 0.0
        %v2199 = vmax.f32 %v2185, 0.0
        %v2200 = vmax.f32 %v2186, 0.0
        %v2201 = vmax.f32 %v2187, 0.0
        %v2202 = vmax.f32 %v2188, 0.0
        %v2203 = vmax.f32 %v2189, 0.0
        %v2204 = vmax.f32 %v2190, 0.0
        %v2205 = vmax.f32 %v2191, 0.0
        %v2206 = vmax.f32 %v2192, 0.0
        %2207 = vmatprep.subr.bf16.mxu0 0
        %2208 = vmatpush1.bf16.msra.mxu0 0
        %2209 = vmatprep.subr.bf16.mxu0 0
        %2210 = vmatpush1.bf16.msra.mxu0 0
        %2211 = vmatprep.subr.bf16.mxu0 0
        %2212 = vmatpush1.bf16.msra.mxu0 0
        %2213 = vmatprep.subr.bf16.mxu0 0
        %2214 = vmatpush1.bf16.msra.mxu0 0
        %2215 = vmatprep.subr.bf16.mxu0 0
        %2216 = vmatpush1.bf16.msra.mxu0 0
        %2217 = vmatprep.subr.bf16.mxu0 0
        %2218 = vmatpush1.bf16.msra.mxu0 0
        %2219 = vmatprep.subr.bf16.mxu0 %v1580
        %2220 = vmatpush1.bf16.msra.mxu0 %v1579
        %2221 = vmatprep.subr.bf16.mxu0 %v1578
        %2222 = vmatpush1.bf16.msra.mxu0 %v1577
        %2223 = vmatprep.subr.bf16.mxu0 0
        %2224 = vmatpush2.bf16.msra.mxu0 0
        %2225 = vmatprep.subr.bf16.mxu0 0
        %2226 = vmatpush2.bf16.msra.mxu0 0
        %2227 = vmatprep.subr.bf16.mxu0 0
        %2228 = vmatpush2.bf16.msra.mxu0 0
        %2229 = vmatprep.subr.bf16.mxu0 0
        %2230 = vmatpush2.bf16.msra.mxu0 0
        %2231 = vmatprep.subr.bf16.mxu0 0
        %2232 = vmatpush2.bf16.msra.mxu0 0
        %2233 = vmatprep.subr.bf16.mxu0 0
        %2234 = vmatpush2.bf16.msra.mxu0 0
        %2235 = vmatprep.subr.bf16.mxu0 0
        %2236 = vmatpush2.bf16.msra.mxu0 0
        %2237 = vmatprep.subr.bf16.mxu0 0
        %2238 = vmatpush2.bf16.msra.mxu0 0
        %2239 = vmatprep.mubr.bf16.mxu0 0
        %2240 = vmatmul.mubr.bf16.gmra.mxu0 %v1807
        %v2241 = vpop.f32.mrf.mxu0
        %v2242 = vadd.f32 0.0, %v2241
        %v2243 = vpop.f32.mrf.mxu0
        %v2244 = vadd.f32 0.0, %v2243
        %v2245 = vpop.f32.mrf.mxu0
        %v2246 = vadd.f32 0.0, %v2245
        %v2247 = vpop.f32.mrf.mxu0
        %v2248 = vadd.f32 0.0, %v2247
        %2249 = vmatprep.mubr.bf16.mxu0 0
        %2250 = vmatmul.mubr.bf16.gmra.mxu0 %v1810
        %v2251 = vpop.f32.mrf.mxu0
        %v2252 = vadd.f32 0.0, %v2251
        %v2253 = vpop.f32.mrf.mxu0
        %v2254 = vadd.f32 0.0, %v2253
        %v2255 = vpop.f32.mrf.mxu0
        %v2256 = vadd.f32 0.0, %v2255
        %v2257 = vpop.f32.mrf.mxu0
        %v2258 = vadd.f32 0.0, %v2257
        %2259 = vmatprep.mubr.bf16.mxu0 0
        %2260 = vmatmul.mubr.bf16.gmra.mxu0 %v1813
        %v2261 = vpop.f32.mrf.mxu0
        %v2262 = vadd.f32 0.0, %v2261
        %v2263 = vpop.f32.mrf.mxu0
        %v2264 = vadd.f32 0.0, %v2263
        %v2265 = vpop.f32.mrf.mxu0
        %v2266 = vadd.f32 0.0, %v2265
        %v2267 = vpop.f32.mrf.mxu0
        %v2268 = vadd.f32 0.0, %v2267
        %2269 = vmatprep.mubr.bf16.mxu0 0
        %2270 = vmatmul.mubr.bf16.gmra.mxu0 %v1816
        %v2271 = vpop.f32.mrf.mxu0
        %v2272 = vadd.f32 0.0, %v2271
        %v2273 = vpop.f32.mrf.mxu0
        %v2274 = vadd.f32 0.0, %v2273
        %v2275 = vpop.f32.mrf.mxu0
        %v2276 = vpop.f32.mrf.mxu0
        %2277 = vdwg.mxu0
        %2278 = vmatprep.subr.bf16.mxu0 0
        %2279 = vmatpush1.bf16.msra.mxu0 0
        %2280 = vmatprep.subr.bf16.mxu0 0
        %2281 = vmatpush1.bf16.msra.mxu0 0
        %2282 = vmatprep.subr.bf16.mxu0 0
        %2283 = vmatpush1.bf16.msra.mxu0 0
        %2284 = vmatprep.subr.bf16.mxu0 0
        %2285 = vmatpush1.bf16.msra.mxu0 0
        %2286 = vmatprep.subr.bf16.mxu0 0
        %2287 = vmatpush1.bf16.msra.mxu0 0
        %2288 = vmatprep.subr.bf16.mxu0 0
        %2289 = vmatpush1.bf16.msra.mxu0 0
        %2290 = vmatprep.subr.bf16.mxu0 %v1683
        %2291 = vmatpush1.bf16.msra.mxu0 %v1682
        %2292 = vmatprep.subr.bf16.mxu0 %v1681
        %2293 = vmatpush1.bf16.msra.mxu0 %v1680
        %2294 = vmatprep.subr.bf16.mxu0 0
        %2295 = vmatpush2.bf16.msra.mxu0 0
        %2296 = vmatprep.subr.bf16.mxu0 0
        %2297 = vmatpush2.bf16.msra.mxu0 0
        %2298 = vmatprep.subr.bf16.mxu0 0
        %2299 = vmatpush2.bf16.msra.mxu0 0
        %2300 = vmatprep.subr.bf16.mxu0 0
        %2301 = vmatpush2.bf16.msra.mxu0 0
        %2302 = vmatprep.subr.bf16.mxu0 0
        %2303 = vmatpush2.bf16.msra.mxu0 0
        %2304 = vmatprep.subr.bf16.mxu0 0
        %2305 = vmatpush2.bf16.msra.mxu0 0
        %2306 = vmatprep.subr.bf16.mxu0 0
        %2307 = vmatpush2.bf16.msra.mxu0 0
        %2308 = vmatprep.subr.bf16.mxu0 0
        %2309 = vmatpush2.bf16.msra.mxu0 0
        %2310 = vmatprep.mubr.bf16.mxu0 0
        %2311 = vmatmul.mubr.bf16.gmra.mxu0 %v1586
        %v2312 = vpop.f32.mrf.mxu0
        %v2313 = vadd.f32 %v2242, %v2312
        %v2314 = vpop.f32.mrf.mxu0
        %v2315 = vadd.f32 %v2244, %v2314
        %v2316 = vpop.f32.mrf.mxu0
        %v2317 = vadd.f32 %v2246, %v2316
        %v2318 = vpop.f32.mrf.mxu0
        %v2319 = vadd.f32 %v2248, %v2318
        %2320 = vmatprep.mubr.bf16.mxu0 0
        %2321 = vmatmul.mubr.bf16.gmra.mxu0 %v1589
        %v2322 = vpop.f32.mrf.mxu0
        %v2323 = vadd.f32 %v2252, %v2322
        %v2324 = vpop.f32.mrf.mxu0
        %v2325 = vadd.f32 %v2254, %v2324
        %v2326 = vpop.f32.mrf.mxu0
        %v2327 = vadd.f32 %v2256, %v2326
        %v2328 = vpop.f32.mrf.mxu0
        %v2329 = vadd.f32 %v2258, %v2328
        %2330 = vmatprep.mubr.bf16.mxu0 0
        %2331 = vmatmul.mubr.bf16.gmra.mxu0 %v1592
        %v2332 = vpop.f32.mrf.mxu0
        %v2333 = vadd.f32 %v2262, %v2332
        %v2334 = vpop.f32.mrf.mxu0
        %v2335 = vadd.f32 %v2264, %v2334
        %v2336 = vpop.f32.mrf.mxu0
        %v2337 = vadd.f32 %v2266, %v2336
        %v2338 = vpop.f32.mrf.mxu0
        %v2339 = vadd.f32 %v2268, %v2338
        %2340 = vmatprep.mubr.bf16.mxu0 0
        %2341 = vmatmul.mubr.bf16.gmra.mxu0 %v1595
        %v2342 = vpop.f32.mrf.mxu0
        %v2343 = vadd.f32 %v2272, %v2342
        %v2344 = vpop.f32.mrf.mxu0
        %v2345 = vadd.f32 %v2274, %v2344
        %v2346 = vpop.f32.mrf.mxu0
        %v2347 = vpop.f32.mrf.mxu0
        %2348 = vdwg.mxu0
        %2349 = vmatprep.subr.bf16.mxu0 0
        %2350 = vmatpush1.bf16.msra.mxu0 0
        %2351 = vmatprep.subr.bf16.mxu0 0
        %2352 = vmatpush1.bf16.msra.mxu0 0
        %2353 = vmatprep.subr.bf16.mxu0 0
        %2354 = vmatpush1.bf16.msra.mxu0 0
        %2355 = vmatprep.subr.bf16.mxu0 0
        %2356 = vmatpush1.bf16.msra.mxu0 0
        %2357 = vmatprep.subr.bf16.mxu0 0
        %2358 = vmatpush1.bf16.msra.mxu0 0
        %2359 = vmatprep.subr.bf16.mxu0 0
        %2360 = vmatpush1.bf16.msra.mxu0 0
        %2361 = vmatprep.subr.bf16.mxu0 %v1801
        %2362 = vmatpush1.bf16.msra.mxu0 %v1800
        %2363 = vmatprep.subr.bf16.mxu0 %v1799
        %2364 = vmatpush1.bf16.msra.mxu0 %v1798
        %2365 = vmatprep.subr.bf16.mxu0 0
        %2366 = vmatpush2.bf16.msra.mxu0 0
        %2367 = vmatprep.subr.bf16.mxu0 0
        %2368 = vmatpush2.bf16.msra.mxu0 0
        %2369 = vmatprep.subr.bf16.mxu0 0
        %2370 = vmatpush2.bf16.msra.mxu0 0
        %2371 = vmatprep.subr.bf16.mxu0 0
        %2372 = vmatpush2.bf16.msra.mxu0 0
        %2373 = vmatprep.subr.bf16.mxu0 0
        %2374 = vmatpush2.bf16.msra.mxu0 0
        %2375 = vmatprep.subr.bf16.mxu0 0
        %2376 = vmatpush2.bf16.msra.mxu0 0
        %2377 = vmatprep.subr.bf16.mxu0 0
        %2378 = vmatpush2.bf16.msra.mxu0 0
        %2379 = vmatprep.subr.bf16.mxu0 0
        %2380 = vmatpush2.bf16.msra.mxu0 0
        %2381 = vmatprep.mubr.bf16.mxu0 0
        %2382 = vmatmul.mubr.bf16.gmra.mxu0 %v1939
        %v2383 = vpop.f32.mrf.mxu0
        %v2384 = vadd.f32 0.0, %v2383
        %v2385 = vpop.f32.mrf.mxu0
        %v2386 = vadd.f32 0.0, %v2385
        %v2387 = vpop.f32.mrf.mxu0
        %v2388 = vadd.f32 0.0, %v2387
        %v2389 = vpop.f32.mrf.mxu0
        %v2390 = vadd.f32 0.0, %v2389
        %2391 = vmatprep.mubr.bf16.mxu0 0
        %2392 = vmatmul.mubr.bf16.gmra.mxu0 %v1942
        %v2393 = vpop.f32.mrf.mxu0
        %v2394 = vadd.f32 0.0, %v2393
        %v2395 = vpop.f32.mrf.mxu0
        %v2396 = vadd.f32 0.0, %v2395
        %v2397 = vpop.f32.mrf.mxu0
        %v2398 = vadd.f32 0.0, %v2397
        %v2399 = vpop.f32.mrf.mxu0
        %v2400 = vadd.f32 0.0, %v2399
        %2401 = vmatprep.mubr.bf16.mxu0 0
        %2402 = vmatmul.mubr.bf16.gmra.mxu0 %v1945
        %v2403 = vpop.f32.mrf.mxu0
        %v2404 = vadd.f32 0.0, %v2403
        %v2405 = vpop.f32.mrf.mxu0
        %v2406 = vadd.f32 0.0, %v2405
        %v2407 = vpop.f32.mrf.mxu0
        %v2408 = vadd.f32 0.0, %v2407
        %v2409 = vpop.f32.mrf.mxu0
        %v2410 = vadd.f32 0.0, %v2409
        %2411 = vmatprep.mubr.bf16.mxu0 0
        %2412 = vmatmul.mubr.bf16.gmra.mxu0 %v1948
        %v2413 = vpop.f32.mrf.mxu0
        %v2414 = vadd.f32 0.0, %v2413
        %v2415 = vpop.f32.mrf.mxu0
        %v2416 = vadd.f32 0.0, %v2415
        %v2417 = vpop.f32.mrf.mxu0
        %v2418 = vpop.f32.mrf.mxu0
        %2419 = vdwg.mxu0
        %v2420 = vadd.f32 %v2313, %v2384
        %v2421 = vadd.f32 %v2315, %v2386
        %v2422 = vadd.f32 %v2317, %v2388
        %v2423 = vadd.f32 %v2319, %v2390
        %v2424 = vadd.f32 %v2323, %v2394
        %v2425 = vadd.f32 %v2325, %v2396
        %v2426 = vadd.f32 %v2327, %v2398
        %v2427 = vadd.f32 %v2329, %v2400
        %v2428 = vadd.f32 %v2333, %v2404
        %v2429 = vadd.f32 %v2335, %v2406
        %v2430 = vadd.f32 %v2337, %v2408
        %v2431 = vadd.f32 %v2339, %v2410
        %v2432 = vadd.f32 %v2343, %v2414
        %v2433 = vadd.f32 %v2345, %v2416
        %2434 = vmatprep.subr.bf16.mxu0 0
        %2435 = vmatpush1.bf16.msra.mxu0 0
        %2436 = vmatprep.subr.bf16.mxu0 0
        %2437 = vmatpush1.bf16.msra.mxu0 0
        %2438 = vmatprep.subr.bf16.mxu0 0
        %2439 = vmatpush1.bf16.msra.mxu0 0
        %2440 = vmatprep.subr.bf16.mxu0 0
        %2441 = vmatpush1.bf16.msra.mxu0 0
        %2442 = vmatprep.subr.bf16.mxu0 0
        %2443 = vmatpush1.bf16.msra.mxu0 0
        %2444 = vmatprep.subr.bf16.mxu0 0
        %2445 = vmatpush1.bf16.msra.mxu0 0
        %2446 = vmatprep.subr.bf16.mxu0 %v1933
        %2447 = vmatpush1.bf16.msra.mxu0 %v1932
        %2448 = vmatprep.subr.bf16.mxu0 %v1931
        %2449 = vmatpush1.bf16.msra.mxu0 %v1930
        %2450 = vmatprep.subr.bf16.mxu0 0
        %2451 = vmatpush2.bf16.msra.mxu0 0
        %2452 = vmatprep.subr.bf16.mxu0 0
        %2453 = vmatpush2.bf16.msra.mxu0 0
        %2454 = vmatprep.subr.bf16.mxu0 0
        %2455 = vmatpush2.bf16.msra.mxu0 0
        %2456 = vmatprep.subr.bf16.mxu0 0
        %2457 = vmatpush2.bf16.msra.mxu0 0
        %2458 = vmatprep.subr.bf16.mxu0 0
        %2459 = vmatpush2.bf16.msra.mxu0 0
        %2460 = vmatprep.subr.bf16.mxu0 0
        %2461 = vmatpush2.bf16.msra.mxu0 0
        %2462 = vmatprep.subr.bf16.mxu0 0
        %2463 = vmatpush2.bf16.msra.mxu0 0
        %2464 = vmatprep.subr.bf16.mxu0 0
        %2465 = vmatpush2.bf16.msra.mxu0 0
        %2466 = vmatprep.mubr.bf16.mxu0 0
        %2467 = vmatmul.mubr.bf16.gmra.mxu0 %v2071
        %v2468 = vpop.f32.mrf.mxu0
        %v2469 = vadd.f32 0.0, %v2468
        %v2470 = vpop.f32.mrf.mxu0
        %v2471 = vadd.f32 0.0, %v2470
        %v2472 = vpop.f32.mrf.mxu0
        %v2473 = vadd.f32 0.0, %v2472
        %v2474 = vpop.f32.mrf.mxu0
        %v2475 = vadd.f32 0.0, %v2474
        %2476 = vmatprep.mubr.bf16.mxu0 0
        %2477 = vmatmul.mubr.bf16.gmra.mxu0 %v2074
        %v2478 = vpop.f32.mrf.mxu0
        %v2479 = vadd.f32 0.0, %v2478
        %v2480 = vpop.f32.mrf.mxu0
        %v2481 = vadd.f32 0.0, %v2480
        %v2482 = vpop.f32.mrf.mxu0
        %v2483 = vadd.f32 0.0, %v2482
        %v2484 = vpop.f32.mrf.mxu0
        %v2485 = vadd.f32 0.0, %v2484
        %2486 = vmatprep.mubr.bf16.mxu0 0
        %2487 = vmatmul.mubr.bf16.gmra.mxu0 %v2077
        %v2488 = vpop.f32.mrf.mxu0
        %v2489 = vadd.f32 0.0, %v2488
        %v2490 = vpop.f32.mrf.mxu0
        %v2491 = vadd.f32 0.0, %v2490
        %v2492 = vpop.f32.mrf.mxu0
        %v2493 = vadd.f32 0.0, %v2492
        %v2494 = vpop.f32.mrf.mxu0
        %v2495 = vadd.f32 0.0, %v2494
        %2496 = vmatprep.mubr.bf16.mxu0 0
        %2497 = vmatmul.mubr.bf16.gmra.mxu0 %v2080
        %v2498 = vpop.f32.mrf.mxu0
        %v2499 = vadd.f32 0.0, %v2498
        %v2500 = vpop.f32.mrf.mxu0
        %v2501 = vadd.f32 0.0, %v2500
        %v2502 = vpop.f32.mrf.mxu0
        %v2503 = vpop.f32.mrf.mxu0
        %2504 = vdwg.mxu0
        %v2505 = vadd.f32 %v2420, %v2469
        %v2506 = vadd.f32 %v2421, %v2471
        %v2507 = vadd.f32 %v2422, %v2473
        %v2508 = vadd.f32 %v2423, %v2475
        %v2509 = vadd.f32 %v2424, %v2479
        %v2510 = vadd.f32 %v2425, %v2481
        %v2511 = vadd.f32 %v2426, %v2483
        %v2512 = vadd.f32 %v2427, %v2485
        %v2513 = vadd.f32 %v2428, %v2489
        %v2514 = vadd.f32 %v2429, %v2491
        %v2515 = vadd.f32 %v2430, %v2493
        %v2516 = vadd.f32 %v2431, %v2495
        %v2517 = vadd.f32 %v2432, %v2499
        %v2518 = vadd.f32 %v2433, %v2501
        %v2519 = vld [vmem:[%s384 + $0xc8] sm:$0xff]
        %v2520 = vld [vmem:[%s384 + $0xd0] sm:$0xff]
        %v2521 = vld [vmem:[%s384 + $0xd8] sm:$0xff]
        %v2522 = vld [vmem:[%s384 + $0xe0] sm:$0xff]
        %v2523 = vld [vmem:[%s384 + $0xe8] sm:$0xff]
        %v2524 = vld [vmem:[%s384 + $0xf0] sm:$0xff]
        %v2525 = vld [vmem:[%s384 + $0xf8] sm:$0xff]
        %v2526 = vpack.c.bf16 %v2520, %v2519
        %v2527 = vpack.c.bf16 %v2522, %v2521
        %v2528 = vpack.c.bf16 %v2524, %v2523
        %v2529 = vpack.c.bf16 %v2525, %v2525
        %v2531 = vsel %vm436, %v2526, 0
        %v2534 = vsel %vm436, %v2527, 0
        %v2537 = vsel %vm436, %v2528, 0
        %v2540 = vsel %vm436, %v2529, 0
        %2542 = vmatprep.subr.bf16.mxu0 0
        %2543 = vmatpush1.bf16.msra.mxu0 0
        %2544 = vmatprep.subr.bf16.mxu0 0
        %2545 = vmatpush1.bf16.msra.mxu0 0
        %2546 = vmatprep.subr.bf16.mxu0 0
        %2547 = vmatpush1.bf16.msra.mxu0 0
        %2548 = vmatprep.subr.bf16.mxu0 0
        %2549 = vmatpush1.bf16.msra.mxu0 0
        %2550 = vmatprep.subr.bf16.mxu0 0
        %2551 = vmatpush1.bf16.msra.mxu0 0
        %2552 = vmatprep.subr.bf16.mxu0 0
        %2553 = vmatpush1.bf16.msra.mxu0 0
        %2554 = vmatprep.subr.bf16.mxu0 %v2065
        %2555 = vmatpush1.bf16.msra.mxu0 %v2064
        %2556 = vmatprep.subr.bf16.mxu0 %v2063
        %2557 = vmatpush1.bf16.msra.mxu0 %v2062
        %2558 = vmatprep.subr.bf16.mxu0 0
        %2559 = vmatpush2.bf16.msra.mxu0 0
        %2560 = vmatprep.subr.bf16.mxu0 0
        %2561 = vmatpush2.bf16.msra.mxu0 0
        %2562 = vmatprep.subr.bf16.mxu0 0
        %2563 = vmatpush2.bf16.msra.mxu0 0
        %2564 = vmatprep.subr.bf16.mxu0 0
        %2565 = vmatpush2.bf16.msra.mxu0 0
        %2566 = vmatprep.subr.bf16.mxu0 0
        %2567 = vmatpush2.bf16.msra.mxu0 0
        %2568 = vmatprep.subr.bf16.mxu0 0
        %2569 = vmatpush2.bf16.msra.mxu0 0
        %2570 = vmatprep.subr.bf16.mxu0 0
        %2571 = vmatpush2.bf16.msra.mxu0 0
        %2572 = vmatprep.subr.bf16.mxu0 0
        %2573 = vmatpush2.bf16.msra.mxu0 0
        %2574 = vmatprep.mubr.bf16.mxu0 0
        %2575 = vmatmul.mubr.bf16.gmra.mxu0 %v2531
        %v2576 = vpop.f32.mrf.mxu0
        %v2577 = vadd.f32 0.0, %v2576
        %v2578 = vpop.f32.mrf.mxu0
        %v2579 = vadd.f32 0.0, %v2578
        %v2580 = vpop.f32.mrf.mxu0
        %v2581 = vadd.f32 0.0, %v2580
        %v2582 = vpop.f32.mrf.mxu0
        %v2583 = vadd.f32 0.0, %v2582
        %2584 = vmatprep.mubr.bf16.mxu0 0
        %2585 = vmatmul.mubr.bf16.gmra.mxu0 %v2534
        %v2586 = vpop.f32.mrf.mxu0
        %v2587 = vadd.f32 0.0, %v2586
        %v2588 = vpop.f32.mrf.mxu0
        %v2589 = vadd.f32 0.0, %v2588
        %v2590 = vpop.f32.mrf.mxu0
        %v2591 = vadd.f32 0.0, %v2590
        %v2592 = vpop.f32.mrf.mxu0
        %v2593 = vadd.f32 0.0, %v2592
        %2594 = vmatprep.mubr.bf16.mxu0 0
        %2595 = vmatmul.mubr.bf16.gmra.mxu0 %v2537
        %v2596 = vpop.f32.mrf.mxu0
        %v2597 = vadd.f32 0.0, %v2596
        %v2598 = vpop.f32.mrf.mxu0
        %v2599 = vadd.f32 0.0, %v2598
        %v2600 = vpop.f32.mrf.mxu0
        %v2601 = vadd.f32 0.0, %v2600
        %v2602 = vpop.f32.mrf.mxu0
        %v2603 = vadd.f32 0.0, %v2602
        %2604 = vmatprep.mubr.bf16.mxu0 0
        %2605 = vmatmul.mubr.bf16.gmra.mxu0 %v2540
        %v2606 = vpop.f32.mrf.mxu0
        %v2607 = vadd.f32 0.0, %v2606
        %v2608 = vpop.f32.mrf.mxu0
        %v2609 = vadd.f32 0.0, %v2608
        %v2610 = vpop.f32.mrf.mxu0
        %v2611 = vpop.f32.mrf.mxu0
        %2612 = vdwg.mxu0
        %v2613 = vadd.f32 %v2505, %v2577
        %v2614 = vadd.f32 %v2506, %v2579
        %v2615 = vadd.f32 %v2507, %v2581
        %v2616 = vadd.f32 %v2508, %v2583
        %v2617 = vadd.f32 %v2509, %v2587
        %v2618 = vadd.f32 %v2510, %v2589
        %v2619 = vadd.f32 %v2511, %v2591
        %v2620 = vadd.f32 %v2512, %v2593
        %v2621 = vadd.f32 %v2513, %v2597
        %v2622 = vadd.f32 %v2514, %v2599
        %v2623 = vadd.f32 %v2515, %v2601
        %v2624 = vadd.f32 %v2516, %v2603
        %v2625 = vadd.f32 %v2517, %v2607
        %v2626 = vadd.f32 %v2518, %v2609
        %v2627 = vadd.f32 %v2613, %v2172
        %v2628 = vadd.f32 %v2614, %v2176
        %v2629 = vadd.f32 %v2615, %v2172
        %v2630 = vadd.f32 %v2616, %v2176
        %v2631 = vadd.f32 %v2617, %v2172
        %v2632 = vadd.f32 %v2618, %v2176
        %v2633 = vadd.f32 %v2619, %v2172
        %v2634 = vadd.f32 %v2620, %v2176
        %v2635 = vadd.f32 %v2621, %v2172
        %v2636 = vadd.f32 %v2622, %v2176
        %v2637 = vadd.f32 %v2623, %v2172
        %v2638 = vadd.f32 %v2624, %v2176
        %v2639 = vadd.f32 %v2625, %v2172
        %v2640 = vadd.f32 %v2626, %v2176
        %v2641 = vmax.f32 %v2627, 0.0
        %v2642 = vmax.f32 %v2628, 0.0
        %v2643 = vmax.f32 %v2629, 0.0
        %v2644 = vmax.f32 %v2630, 0.0
        %v2645 = vmax.f32 %v2631, 0.0
        %v2646 = vmax.f32 %v2632, 0.0
        %v2647 = vmax.f32 %v2633, 0.0
        %v2648 = vmax.f32 %v2634, 0.0
        %v2649 = vmax.f32 %v2635, 0.0
        %v2650 = vmax.f32 %v2636, 0.0
        %v2651 = vmax.f32 %v2637, 0.0
        %v2652 = vmax.f32 %v2638, 0.0
        %v2653 = vmax.f32 %v2639, 0.0
        %v2654 = vmax.f32 %v2640, 0.0
        %v2655 = vmax.f32 %v2193, %v2641
        %v2656 = vmax.f32 %v2194, %v2642
        %v2657 = vmax.f32 %v2195, %v2643
        %v2658 = vmax.f32 %v2196, %v2644
        %v2659 = vmax.f32 %v2197, %v2645
        %v2660 = vmax.f32 %v2198, %v2646
        %v2661 = vmax.f32 %v2199, %v2647
        %v2662 = vmax.f32 %v2200, %v2648
        %v2663 = vmax.f32 %v2201, %v2649
        %v2664 = vmax.f32 %v2202, %v2650
        %v2665 = vmax.f32 %v2203, %v2651
        %v2666 = vmax.f32 %v2204, %v2652
        %v2667 = vmax.f32 %v2205, %v2653
        %v2668 = vmax.f32 %v2206, %v2654
        %v2669 = vmax.f32 %v2655, %v2656
        %v2670 = vmax.f32 %v2657, %v2658
        %v2671 = vmax.f32 %v2659, %v2660
        %v2672 = vmax.f32 %v2661, %v2662
        %v2673 = vmax.f32 %v2663, %v2664
        %v2674 = vmax.f32 %v2665, %v2666
        %v2675 = vmax.f32 %v2667, %v2668
        %2676 = vst [vmem:[#allocation2 + $0x38] sm:$0xff] %v2669
        %2677 = vst [vmem:[#allocation2 + $0x40] sm:$0xff] %v2670
        %2678 = vst [vmem:[#allocation2 + $0x48] sm:$0xff] %v2671
        %2679 = vst [vmem:[#allocation2 + $0x50] sm:$0xff] %v2672
        %2680 = vst [vmem:[#allocation2 + $0x58] sm:$0xff] %v2673
        %2681 = vst [vmem:[#allocation2 + $0x60] sm:$0xff] %v2674
        %2682 = vst [vmem:[#allocation2 + $0x68] sm:$0xff] %v2675
        %v2683 = vld [vmem:[#allocation2] sm:$0xff]
        %v2684 = vld [vmem:[#allocation2 + $0x10] sm:$0xff]
        %v2685 = vld [vmem:[#allocation2 + $0x20] sm:$0xff]
        %v2686 = vld [vmem:[#allocation2 + $0x30] sm:$0xff]
        %v2687 = vld [vmem:[#allocation2 + $0x40] sm:$0xff]
        %v2688 = vpack.c.bf16 %v2684, %v2683
        %v2689 = vpack.c.bf16 %v2686, %v2685
        %v2690 = vpack.c.bf16 %v2687, %v2687
        %v2691 = vld [vmem:[%s3] sm:$0xff]
        %v2692 = vld [vmem:[%s3 + $0x8] sm:$0xff]
        %v2693 = vld [vmem:[%s3 + $0x10] sm:$0xff]
        %v2694 = vld [vmem:[%s3 + $0x18] sm:$0xff]
        %v2695 = vld [vmem:[%s3 + $0x20] sm:$0xff]
        %v2696 = vld [vmem:[%s3 + $0x28] sm:$0xff]
        %v2697 = vld [vmem:[%s3 + $0x30] sm:$0xff]
        %v2698 = vld [vmem:[%s3 + $0x38] sm:$0xff]
        %v2699 = vld [vmem:[%s3 + $0x40] sm:$0xff]
        %v2700 = vld [vmem:[%s3 + $0x48] sm:$0xff]
        %v2701 = vld [vmem:[%s3 + $0x50] sm:$0xff]
        %v2702 = vld [vmem:[%s3 + $0x58] sm:$0xff]
        %v2703 = vld [vmem:[%s3 + $0x60] sm:$0xff]
        %v2704 = vld [vmem:[%s3 + $0x68] sm:$0xff]
        %v2705 = vld [vmem:[%s3 + $0x70] sm:$0xff]
        %v2706 = vld [vmem:[%s3 + $0x78] sm:$0xff]
        %v2707 = vld [vmem:[#allocation2 + $0x8] sm:$0xff]
        %v2708 = vld [vmem:[#allocation2 + $0x18] sm:$0xff]
        %v2709 = vld [vmem:[#allocation2 + $0x28] sm:$0xff]
        %v2710 = vld [vmem:[#allocation2 + $0x38] sm:$0xff]
        %v2711 = vld [vmem:[#allocation2 + $0x48] sm:$0xff]
        %v2712 = vpack.c.bf16 %v2708, %v2707
        %v2713 = vpack.c.bf16 %v2710, %v2709
        %v2714 = vpack.c.bf16 %v2711, %v2711
        %v2715 = vld [vmem:[%s3 + $0x80] sm:$0xff]
        %v2716 = vld [vmem:[%s3 + $0x88] sm:$0xff]
        %v2717 = vld [vmem:[%s3 + $0x90] sm:$0xff]
        %v2718 = vld [vmem:[%s3 + $0x98] sm:$0xff]
        %v2719 = vld [vmem:[%s3 + $0xa0] sm:$0xff]
        %v2720 = vld [vmem:[%s3 + $0xa8] sm:$0xff]
        %v2721 = vld [vmem:[%s3 + $0xb0] sm:$0xff]
        %v2722 = vld [vmem:[%s3 + $0xb8] sm:$0xff]
        %v2723 = vld [vmem:[%s3 + $0xc0] sm:$0xff]
        %v2724 = vld [vmem:[%s3 + $0xc8] sm:$0xff]
        %v2725 = vld [vmem:[%s3 + $0xd0] sm:$0xff]
        %v2726 = vld [vmem:[%s3 + $0xd8] sm:$0xff]
        %v2727 = vld [vmem:[%s3 + $0xe0] sm:$0xff]
        %v2728 = vld [vmem:[%s3 + $0xe8] sm:$0xff]
        %v2729 = vld [vmem:[%s3 + $0xf0] sm:$0xff]
        %v2730 = vld [vmem:[%s3 + $0xf8] sm:$0xff]
        %v2747 = vunpack.c.l.b16 %v2715
        %v2748 = vunpack.c.h.b16 %v2715
        %v2749 = vunpack.c.l.b16 %v2716
        %v2750 = vunpack.c.h.b16 %v2716
        %v2751 = vunpack.c.l.b16 %v2717
        %v2752 = vunpack.c.h.b16 %v2717
        %v2753 = vunpack.c.l.b16 %v2718
        %v2754 = vunpack.c.h.b16 %v2718
        %v2755 = vunpack.c.l.b16 %v2719
        %v2756 = vunpack.c.h.b16 %v2719
        %v2757 = vunpack.c.l.b16 %v2720
        %v2758 = vunpack.c.h.b16 %v2720
        %v2759 = vunpack.c.l.b16 %v2721
        %v2760 = vunpack.c.h.b16 %v2721
        %v2761 = vunpack.c.l.b16 %v2722
        %v2762 = vunpack.c.h.b16 %v2722
        %v2763 = vunpack.c.l.b16 %v2723
        %v2764 = vunpack.c.h.b16 %v2723
        %v2765 = vunpack.c.l.b16 %v2724
        %v2766 = vunpack.c.h.b16 %v2724
        %v2767 = vunpack.c.l.b16 %v2725
        %v2768 = vunpack.c.h.b16 %v2725
        %v2769 = vunpack.c.l.b16 %v2726
        %v2770 = vunpack.c.h.b16 %v2726
        %v2771 = vunpack.c.l.b16 %v2727
        %v2772 = vunpack.c.h.b16 %v2727
        %v2773 = vunpack.c.l.b16 %v2728
        %v2774 = vunpack.c.h.b16 %v2728
        %v2775 = vunpack.c.l.b16 %v2729
        %v2776 = vunpack.c.h.b16 %v2729
        %v2777 = vunpack.c.l.b16 %v2730
        %v2778 = vunpack.c.h.b16 %v2730
        %v2779 = vpack.c.b16 %v2749, %v2747
        %v2780 = vpack.c.b16 %v2750, %v2748
        %v2781 = vpack.c.b16 %v2753, %v2751
        %v2782 = vpack.c.b16 %v2754, %v2752
        %v2783 = vpack.c.b16 %v2757, %v2755
        %v2784 = vpack.c.b16 %v2758, %v2756
        %v2785 = vpack.c.b16 %v2761, %v2759
        %v2786 = vpack.c.b16 %v2762, %v2760
        %v2787 = vpack.c.b16 %v2765, %v2763
        %v2788 = vpack.c.b16 %v2766, %v2764
        %v2789 = vpack.c.b16 %v2769, %v2767
        %v2790 = vpack.c.b16 %v2770, %v2768
        %v2791 = vpack.c.b16 %v2773, %v2771
        %v2792 = vpack.c.b16 %v2774, %v2772
        %v2793 = vpack.c.b16 %v2777, %v2775
        %v2794 = vpack.c.b16 %v2778, %v2776
        %2811 = vmatprep.subr.bf16.mxu0 %v2794
        %2812 = vmatpush1.bf16.msra.mxu0 %v2793
        %2813 = vmatprep.subr.bf16.mxu0 %v2792
        %2814 = vmatpush1.bf16.msra.mxu0 %v2791
        %2815 = vmatprep.subr.bf16.mxu0 %v2790
        %2816 = vmatpush1.bf16.msra.mxu0 %v2789
        %2817 = vmatprep.subr.bf16.mxu0 %v2788
        %2818 = vmatpush1.bf16.msra.mxu0 %v2787
        %2819 = vmatprep.subr.bf16.mxu0 %v2786
        %2820 = vmatpush1.bf16.msra.mxu0 %v2785
        %2821 = vmatprep.subr.bf16.mxu0 %v2784
        %2822 = vmatpush1.bf16.msra.mxu0 %v2783
        %2823 = vmatprep.subr.bf16.mxu0 %v2782
        %2824 = vmatpush1.bf16.msra.mxu0 %v2781
        %2825 = vmatprep.subr.bf16.mxu0 %v2780
        %2826 = vmatpush1.bf16.msra.mxu0 %v2779
        %2827 = vmatprep.subr.bf16.mxu0 0
        %2828 = vmatpush2.bf16.msra.mxu0 0
        %2829 = vmatprep.subr.bf16.mxu0 0
        %2830 = vmatpush2.bf16.msra.mxu0 0
        %2831 = vmatprep.subr.bf16.mxu0 0
        %2832 = vmatpush2.bf16.msra.mxu0 0
        %2833 = vmatprep.subr.bf16.mxu0 0
        %2834 = vmatpush2.bf16.msra.mxu0 0
        %2835 = vmatprep.subr.bf16.mxu0 0
        %2836 = vmatpush2.bf16.msra.mxu0 0
        %2837 = vmatprep.subr.bf16.mxu0 0
        %2838 = vmatpush2.bf16.msra.mxu0 0
        %2839 = vmatprep.subr.bf16.mxu0 0
        %2840 = vmatpush2.bf16.msra.mxu0 0
        %2841 = vmatprep.subr.bf16.mxu0 0
        %2842 = vmatpush2.bf16.msra.mxu0 0
        %2843 = vmatprep.mubr.bf16.mxu0 0
        %2844 = vmatmul.mubr.bf16.gmra.mxu0 %v2712
        %v2845 = vpop.f32.mrf.mxu0
        %v2846 = vadd.f32 0.0, %v2845
        %v2847 = vpop.f32.mrf.mxu0
        %v2848 = vadd.f32 0.0, %v2847
        %v2849 = vpop.f32.mrf.mxu0
        %v2850 = vadd.f32 0.0, %v2849
        %v2851 = vpop.f32.mrf.mxu0
        %v2852 = vadd.f32 0.0, %v2851
        %2853 = vmatprep.mubr.bf16.mxu0 0
        %2854 = vmatmul.mubr.bf16.gmra.mxu0 %v2713
        %v2855 = vpop.f32.mrf.mxu0
        %v2856 = vadd.f32 0.0, %v2855
        %v2857 = vpop.f32.mrf.mxu0
        %v2858 = vadd.f32 0.0, %v2857
        %v2859 = vpop.f32.mrf.mxu0
        %v2860 = vadd.f32 0.0, %v2859
        %v2861 = vpop.f32.mrf.mxu0
        %v2862 = vadd.f32 0.0, %v2861
        %2863 = vmatprep.mubr.bf16.mxu0 0
        %2864 = vmatmul.mubr.bf16.gmra.mxu0 %v2714
        %v2865 = vpop.f32.mrf.mxu0
        %v2866 = vadd.f32 0.0, %v2865
        %v2867 = vpop.f32.mrf.mxu0
        %v2868 = vadd.f32 0.0, %v2867
        %v2869 = vpop.f32.mrf.mxu0
        %v2870 = vpop.f32.mrf.mxu0
        %2871 = vdwg.mxu0
        %v2888 = vunpack.c.l.b16 %v2691
        %v2889 = vunpack.c.h.b16 %v2691
        %v2890 = vunpack.c.l.b16 %v2692
        %v2891 = vunpack.c.h.b16 %v2692
        %v2892 = vunpack.c.l.b16 %v2693
        %v2893 = vunpack.c.h.b16 %v2693
        %v2894 = vunpack.c.l.b16 %v2694
        %v2895 = vunpack.c.h.b16 %v2694
        %v2896 = vunpack.c.l.b16 %v2695
        %v2897 = vunpack.c.h.b16 %v2695
        %v2898 = vunpack.c.l.b16 %v2696
        %v2899 = vunpack.c.h.b16 %v2696
        %v2900 = vunpack.c.l.b16 %v2697
        %v2901 = vunpack.c.h.b16 %v2697
        %v2902 = vunpack.c.l.b16 %v2698
        %v2903 = vunpack.c.h.b16 %v2698
        %v2904 = vunpack.c.l.b16 %v2699
        %v2905 = vunpack.c.h.b16 %v2699
        %v2906 = vunpack.c.l.b16 %v2700
        %v2907 = vunpack.c.h.b16 %v2700
        %v2908 = vunpack.c.l.b16 %v2701
        %v2909 = vunpack.c.h.b16 %v2701
        %v2910 = vunpack.c.l.b16 %v2702
        %v2911 = vunpack.c.h.b16 %v2702
        %v2912 = vunpack.c.l.b16 %v2703
        %v2913 = vunpack.c.h.b16 %v2703
        %v2914 = vunpack.c.l.b16 %v2704
        %v2915 = vunpack.c.h.b16 %v2704
        %v2916 = vunpack.c.l.b16 %v2705
        %v2917 = vunpack.c.h.b16 %v2705
        %v2918 = vunpack.c.l.b16 %v2706
        %v2919 = vunpack.c.h.b16 %v2706
        %v2920 = vpack.c.b16 %v2890, %v2888
        %v2921 = vpack.c.b16 %v2891, %v2889
        %v2922 = vpack.c.b16 %v2894, %v2892
        %v2923 = vpack.c.b16 %v2895, %v2893
        %v2924 = vpack.c.b16 %v2898, %v2896
        %v2925 = vpack.c.b16 %v2899, %v2897
        %v2926 = vpack.c.b16 %v2902, %v2900
        %v2927 = vpack.c.b16 %v2903, %v2901
        %v2928 = vpack.c.b16 %v2906, %v2904
        %v2929 = vpack.c.b16 %v2907, %v2905
        %v2930 = vpack.c.b16 %v2910, %v2908
        %v2931 = vpack.c.b16 %v2911, %v2909
        %v2932 = vpack.c.b16 %v2914, %v2912
        %v2933 = vpack.c.b16 %v2915, %v2913
        %v2934 = vpack.c.b16 %v2918, %v2916
        %v2935 = vpack.c.b16 %v2919, %v2917
        %2952 = vmatprep.subr.bf16.mxu0 %v2935
        %2953 = vmatpush1.bf16.msra.mxu0 %v2934
        %2954 = vmatprep.subr.bf16.mxu0 %v2933
        %2955 = vmatpush1.bf16.msra.mxu0 %v2932
        %2956 = vmatprep.subr.bf16.mxu0 %v2931
        %2957 = vmatpush1.bf16.msra.mxu0 %v2930
        %2958 = vmatprep.subr.bf16.mxu0 %v2929
        %2959 = vmatpush1.bf16.msra.mxu0 %v2928
        %2960 = vmatprep.subr.bf16.mxu0 %v2927
        %2961 = vmatpush1.bf16.msra.mxu0 %v2926
        %2962 = vmatprep.subr.bf16.mxu0 %v2925
        %2963 = vmatpush1.bf16.msra.mxu0 %v2924
        %2964 = vmatprep.subr.bf16.mxu0 %v2923
        %2965 = vmatpush1.bf16.msra.mxu0 %v2922
        %2966 = vmatprep.subr.bf16.mxu0 %v2921
        %2967 = vmatpush1.bf16.msra.mxu0 %v2920
        %2968 = vmatprep.subr.bf16.mxu0 0
        %2969 = vmatpush2.bf16.msra.mxu0 0
        %2970 = vmatprep.subr.bf16.mxu0 0
        %2971 = vmatpush2.bf16.msra.mxu0 0
        %2972 = vmatprep.subr.bf16.mxu0 0
        %2973 = vmatpush2.bf16.msra.mxu0 0
        %2974 = vmatprep.subr.bf16.mxu0 0
        %2975 = vmatpush2.bf16.msra.mxu0 0
        %2976 = vmatprep.subr.bf16.mxu0 0
        %2977 = vmatpush2.bf16.msra.mxu0 0
        %2978 = vmatprep.subr.bf16.mxu0 0
        %2979 = vmatpush2.bf16.msra.mxu0 0
        %2980 = vmatprep.subr.bf16.mxu0 0
        %2981 = vmatpush2.bf16.msra.mxu0 0
        %2982 = vmatprep.subr.bf16.mxu0 0
        %2983 = vmatpush2.bf16.msra.mxu0 0
        %2984 = vmatprep.mubr.bf16.mxu0 0
        %2985 = vmatmul.mubr.bf16.gmra.mxu0 %v2688
        %v2986 = vpop.f32.mrf.mxu0
        %v2987 = vadd.f32 %v2846, %v2986
        %v2988 = vpop.f32.mrf.mxu0
        %v2989 = vadd.f32 %v2848, %v2988
        %v2990 = vpop.f32.mrf.mxu0
        %v2991 = vadd.f32 %v2850, %v2990
        %v2992 = vpop.f32.mrf.mxu0
        %v2993 = vadd.f32 %v2852, %v2992
        %2994 = vmatprep.mubr.bf16.mxu0 0
        %2995 = vmatmul.mubr.bf16.gmra.mxu0 %v2689
        %v2996 = vpop.f32.mrf.mxu0
        %v2997 = vadd.f32 %v2856, %v2996
        %v2998 = vpop.f32.mrf.mxu0
        %v2999 = vadd.f32 %v2858, %v2998
        %v3000 = vpop.f32.mrf.mxu0
        %v3001 = vadd.f32 %v2860, %v3000
        %v3002 = vpop.f32.mrf.mxu0
        %v3003 = vadd.f32 %v2862, %v3002
        %3004 = vmatprep.mubr.bf16.mxu0 0
        %3005 = vmatmul.mubr.bf16.gmra.mxu0 %v2690
        %v3006 = vpop.f32.mrf.mxu0
        %v3007 = vadd.f32 %v2866, %v3006
        %v3008 = vpop.f32.mrf.mxu0
        %v3009 = vadd.f32 %v2868, %v3008
        %v3010 = vpop.f32.mrf.mxu0
        %v3011 = vpop.f32.mrf.mxu0
        %3012 = vdwg.mxu0
        %v3013 = vld [vmem:[#allocation2 + $0x50] sm:$0xff]
        %v3014 = vpack.c.bf16 %v2685, %v2684
        %v3015 = vpack.c.bf16 %v2687, %v2686
        %v3016 = vpack.c.bf16 %v3013, %v3013
        %v3017 = vld [vmem:[%s3 + $0x100] sm:$0xff]
        %v3018 = vld [vmem:[%s3 + $0x108] sm:$0xff]
        %v3019 = vld [vmem:[%s3 + $0x110] sm:$0xff]
        %v3020 = vld [vmem:[%s3 + $0x118] sm:$0xff]
        %v3021 = vld [vmem:[%s3 + $0x120] sm:$0xff]
        %v3022 = vld [vmem:[%s3 + $0x128] sm:$0xff]
        %v3023 = vld [vmem:[%s3 + $0x130] sm:$0xff]
        %v3024 = vld [vmem:[%s3 + $0x138] sm:$0xff]
        %v3025 = vld [vmem:[%s3 + $0x140] sm:$0xff]
        %v3026 = vld [vmem:[%s3 + $0x148] sm:$0xff]
        %v3027 = vld [vmem:[%s3 + $0x150] sm:$0xff]
        %v3028 = vld [vmem:[%s3 + $0x158] sm:$0xff]
        %v3029 = vld [vmem:[%s3 + $0x160] sm:$0xff]
        %v3030 = vld [vmem:[%s3 + $0x168] sm:$0xff]
        %v3031 = vld [vmem:[%s3 + $0x170] sm:$0xff]
        %v3032 = vld [vmem:[%s3 + $0x178] sm:$0xff]
        %v3049 = vunpack.c.l.b16 %v3017
        %v3050 = vunpack.c.h.b16 %v3017
        %v3051 = vunpack.c.l.b16 %v3018
        %v3052 = vunpack.c.h.b16 %v3018
        %v3053 = vunpack.c.l.b16 %v3019
        %v3054 = vunpack.c.h.b16 %v3019
        %v3055 = vunpack.c.l.b16 %v3020
        %v3056 = vunpack.c.h.b16 %v3020
        %v3057 = vunpack.c.l.b16 %v3021
        %v3058 = vunpack.c.h.b16 %v3021
        %v3059 = vunpack.c.l.b16 %v3022
        %v3060 = vunpack.c.h.b16 %v3022
        %v3061 = vunpack.c.l.b16 %v3023
        %v3062 = vunpack.c.h.b16 %v3023
        %v3063 = vunpack.c.l.b16 %v3024
        %v3064 = vunpack.c.h.b16 %v3024
        %v3065 = vunpack.c.l.b16 %v3025
        %v3066 = vunpack.c.h.b16 %v3025
        %v3067 = vunpack.c.l.b16 %v3026
        %v3068 = vunpack.c.h.b16 %v3026
        %v3069 = vunpack.c.l.b16 %v3027
        %v3070 = vunpack.c.h.b16 %v3027
        %v3071 = vunpack.c.l.b16 %v3028
        %v3072 = vunpack.c.h.b16 %v3028
        %v3073 = vunpack.c.l.b16 %v3029
        %v3074 = vunpack.c.h.b16 %v3029
        %v3075 = vunpack.c.l.b16 %v3030
        %v3076 = vunpack.c.h.b16 %v3030
        %v3077 = vunpack.c.l.b16 %v3031
        %v3078 = vunpack.c.h.b16 %v3031
        %v3079 = vunpack.c.l.b16 %v3032
        %v3080 = vunpack.c.h.b16 %v3032
        %v3081 = vpack.c.b16 %v3051, %v3049
        %v3082 = vpack.c.b16 %v3052, %v3050
        %v3083 = vpack.c.b16 %v3055, %v3053
        %v3084 = vpack.c.b16 %v3056, %v3054
        %v3085 = vpack.c.b16 %v3059, %v3057
        %v3086 = vpack.c.b16 %v3060, %v3058
        %v3087 = vpack.c.b16 %v3063, %v3061
        %v3088 = vpack.c.b16 %v3064, %v3062
        %v3089 = vpack.c.b16 %v3067, %v3065
        %v3090 = vpack.c.b16 %v3068, %v3066
        %v3091 = vpack.c.b16 %v3071, %v3069
        %v3092 = vpack.c.b16 %v3072, %v3070
        %v3093 = vpack.c.b16 %v3075, %v3073
        %v3094 = vpack.c.b16 %v3076, %v3074
        %v3095 = vpack.c.b16 %v3079, %v3077
        %v3096 = vpack.c.b16 %v3080, %v3078
        %3113 = vmatprep.subr.bf16.mxu0 %v3096
        %3114 = vmatpush1.bf16.msra.mxu0 %v3095
        %3115 = vmatprep.subr.bf16.mxu0 %v3094
        %3116 = vmatpush1.bf16.msra.mxu0 %v3093
        %3117 = vmatprep.subr.bf16.mxu0 %v3092
        %3118 = vmatpush1.bf16.msra.mxu0 %v3091
        %3119 = vmatprep.subr.bf16.mxu0 %v3090
        %3120 = vmatpush1.bf16.msra.mxu0 %v3089
        %3121 = vmatprep.subr.bf16.mxu0 %v3088
        %3122 = vmatpush1.bf16.msra.mxu0 %v3087
        %3123 = vmatprep.subr.bf16.mxu0 %v3086
        %3124 = vmatpush1.bf16.msra.mxu0 %v3085
        %3125 = vmatprep.subr.bf16.mxu0 %v3084
        %3126 = vmatpush1.bf16.msra.mxu0 %v3083
        %3127 = vmatprep.subr.bf16.mxu0 %v3082
        %3128 = vmatpush1.bf16.msra.mxu0 %v3081
        %3129 = vmatprep.subr.bf16.mxu0 0
        %3130 = vmatpush2.bf16.msra.mxu0 0
        %3131 = vmatprep.subr.bf16.mxu0 0
        %3132 = vmatpush2.bf16.msra.mxu0 0
        %3133 = vmatprep.subr.bf16.mxu0 0
        %3134 = vmatpush2.bf16.msra.mxu0 0
        %3135 = vmatprep.subr.bf16.mxu0 0
        %3136 = vmatpush2.bf16.msra.mxu0 0
        %3137 = vmatprep.subr.bf16.mxu0 0
        %3138 = vmatpush2.bf16.msra.mxu0 0
        %3139 = vmatprep.subr.bf16.mxu0 0
        %3140 = vmatpush2.bf16.msra.mxu0 0
        %3141 = vmatprep.subr.bf16.mxu0 0
        %3142 = vmatpush2.bf16.msra.mxu0 0
        %3143 = vmatprep.subr.bf16.mxu0 0
        %3144 = vmatpush2.bf16.msra.mxu0 0
        %3145 = vmatprep.mubr.bf16.mxu0 0
        %3146 = vmatmul.mubr.bf16.gmra.mxu0 %v3014
        %v3147 = vpop.f32.mrf.mxu0
        %v3148 = vadd.f32 0.0, %v3147
        %v3149 = vpop.f32.mrf.mxu0
        %v3150 = vadd.f32 0.0, %v3149
        %v3151 = vpop.f32.mrf.mxu0
        %v3152 = vadd.f32 0.0, %v3151
        %v3153 = vpop.f32.mrf.mxu0
        %v3154 = vadd.f32 0.0, %v3153
        %3155 = vmatprep.mubr.bf16.mxu0 0
        %3156 = vmatmul.mubr.bf16.gmra.mxu0 %v3015
        %v3157 = vpop.f32.mrf.mxu0
        %v3158 = vadd.f32 0.0, %v3157
        %v3159 = vpop.f32.mrf.mxu0
        %v3160 = vadd.f32 0.0, %v3159
        %v3161 = vpop.f32.mrf.mxu0
        %v3162 = vadd.f32 0.0, %v3161
        %v3163 = vpop.f32.mrf.mxu0
        %v3164 = vadd.f32 0.0, %v3163
        %3165 = vmatprep.mubr.bf16.mxu0 0
        %3166 = vmatmul.mubr.bf16.gmra.mxu0 %v3016
        %v3167 = vpop.f32.mrf.mxu0
        %v3168 = vadd.f32 0.0, %v3167
        %v3169 = vpop.f32.mrf.mxu0
        %v3170 = vadd.f32 0.0, %v3169
        %v3171 = vpop.f32.mrf.mxu0
        %v3172 = vpop.f32.mrf.mxu0
        %3173 = vdwg.mxu0
        %v3174 = vadd.f32 %v2987, %v3148
        %v3175 = vadd.f32 %v2989, %v3150
        %v3176 = vadd.f32 %v2991, %v3152
        %v3177 = vadd.f32 %v2993, %v3154
        %v3178 = vadd.f32 %v2997, %v3158
        %v3179 = vadd.f32 %v2999, %v3160
        %v3180 = vadd.f32 %v3001, %v3162
        %v3181 = vadd.f32 %v3003, %v3164
        %v3182 = vadd.f32 %v3007, %v3168
        %v3183 = vadd.f32 %v3009, %v3170
        %v3184 = vld [vmem:[#allocation2 + $0x58] sm:$0xff]
        %v3185 = vpack.c.bf16 %v2709, %v2708
        %v3186 = vpack.c.bf16 %v2711, %v2710
        %v3187 = vpack.c.bf16 %v3184, %v3184
        %v3188 = vld [vmem:[%s3 + $0x180] sm:$0xff]
        %v3189 = vld [vmem:[%s3 + $0x188] sm:$0xff]
        %v3190 = vld [vmem:[%s3 + $0x190] sm:$0xff]
        %v3191 = vld [vmem:[%s3 + $0x198] sm:$0xff]
        %v3192 = vld [vmem:[%s3 + $0x1a0] sm:$0xff]
        %v3193 = vld [vmem:[%s3 + $0x1a8] sm:$0xff]
        %v3194 = vld [vmem:[%s3 + $0x1b0] sm:$0xff]
        %v3195 = vld [vmem:[%s3 + $0x1b8] sm:$0xff]
        %v3196 = vld [vmem:[%s3 + $0x1c0] sm:$0xff]
        %v3197 = vld [vmem:[%s3 + $0x1c8] sm:$0xff]
        %v3198 = vld [vmem:[%s3 + $0x1d0] sm:$0xff]
        %v3199 = vld [vmem:[%s3 + $0x1d8] sm:$0xff]
        %v3200 = vld [vmem:[%s3 + $0x1e0] sm:$0xff]
        %v3201 = vld [vmem:[%s3 + $0x1e8] sm:$0xff]
        %v3202 = vld [vmem:[%s3 + $0x1f0] sm:$0xff]
        %v3203 = vld [vmem:[%s3 + $0x1f8] sm:$0xff]
        %v3220 = vunpack.c.l.b16 %v3188
        %v3221 = vunpack.c.h.b16 %v3188
        %v3222 = vunpack.c.l.b16 %v3189
        %v3223 = vunpack.c.h.b16 %v3189
        %v3224 = vunpack.c.l.b16 %v3190
        %v3225 = vunpack.c.h.b16 %v3190
        %v3226 = vunpack.c.l.b16 %v3191
        %v3227 = vunpack.c.h.b16 %v3191
        %v3228 = vunpack.c.l.b16 %v3192
        %v3229 = vunpack.c.h.b16 %v3192
        %v3230 = vunpack.c.l.b16 %v3193
        %v3231 = vunpack.c.h.b16 %v3193
        %v3232 = vunpack.c.l.b16 %v3194
        %v3233 = vunpack.c.h.b16 %v3194
        %v3234 = vunpack.c.l.b16 %v3195
        %v3235 = vunpack.c.h.b16 %v3195
        %v3236 = vunpack.c.l.b16 %v3196
        %v3237 = vunpack.c.h.b16 %v3196
        %v3238 = vunpack.c.l.b16 %v3197
        %v3239 = vunpack.c.h.b16 %v3197
        %v3240 = vunpack.c.l.b16 %v3198
        %v3241 = vunpack.c.h.b16 %v3198
        %v3242 = vunpack.c.l.b16 %v3199
        %v3243 = vunpack.c.h.b16 %v3199
        %v3244 = vunpack.c.l.b16 %v3200
        %v3245 = vunpack.c.h.b16 %v3200
        %v3246 = vunpack.c.l.b16 %v3201
        %v3247 = vunpack.c.h.b16 %v3201
        %v3248 = vunpack.c.l.b16 %v3202
        %v3249 = vunpack.c.h.b16 %v3202
        %v3250 = vunpack.c.l.b16 %v3203
        %v3251 = vunpack.c.h.b16 %v3203
        %v3252 = vpack.c.b16 %v3222, %v3220
        %v3253 = vpack.c.b16 %v3223, %v3221
        %v3254 = vpack.c.b16 %v3226, %v3224
        %v3255 = vpack.c.b16 %v3227, %v3225
        %v3256 = vpack.c.b16 %v3230, %v3228
        %v3257 = vpack.c.b16 %v3231, %v3229
        %v3258 = vpack.c.b16 %v3234, %v3232
        %v3259 = vpack.c.b16 %v3235, %v3233
        %v3260 = vpack.c.b16 %v3238, %v3236
        %v3261 = vpack.c.b16 %v3239, %v3237
        %v3262 = vpack.c.b16 %v3242, %v3240
        %v3263 = vpack.c.b16 %v3243, %v3241
        %v3264 = vpack.c.b16 %v3246, %v3244
        %v3265 = vpack.c.b16 %v3247, %v3245
        %v3266 = vpack.c.b16 %v3250, %v3248
        %v3267 = vpack.c.b16 %v3251, %v3249
        %3284 = vmatprep.subr.bf16.mxu0 %v3267
        %3285 = vmatpush1.bf16.msra.mxu0 %v3266
        %3286 = vmatprep.subr.bf16.mxu0 %v3265
        %3287 = vmatpush1.bf16.msra.mxu0 %v3264
        %3288 = vmatprep.subr.bf16.mxu0 %v3263
        %3289 = vmatpush1.bf16.msra.mxu0 %v3262
        %3290 = vmatprep.subr.bf16.mxu0 %v3261
        %3291 = vmatpush1.bf16.msra.mxu0 %v3260
        %3292 = vmatprep.subr.bf16.mxu0 %v3259
        %3293 = vmatpush1.bf16.msra.mxu0 %v3258
        %3294 = vmatprep.subr.bf16.mxu0 %v3257
        %3295 = vmatpush1.bf16.msra.mxu0 %v3256
        %3296 = vmatprep.subr.bf16.mxu0 %v3255
        %3297 = vmatpush1.bf16.msra.mxu0 %v3254
        %3298 = vmatprep.subr.bf16.mxu0 %v3253
        %3299 = vmatpush1.bf16.msra.mxu0 %v3252
        %3300 = vmatprep.subr.bf16.mxu0 0
        %3301 = vmatpush2.bf16.msra.mxu0 0
        %3302 = vmatprep.subr.bf16.mxu0 0
        %3303 = vmatpush2.bf16.msra.mxu0 0
        %3304 = vmatprep.subr.bf16.mxu0 0
        %3305 = vmatpush2.bf16.msra.mxu0 0
        %3306 = vmatprep.subr.bf16.mxu0 0
        %3307 = vmatpush2.bf16.msra.mxu0 0
        %3308 = vmatprep.subr.bf16.mxu0 0
        %3309 = vmatpush2.bf16.msra.mxu0 0
        %3310 = vmatprep.subr.bf16.mxu0 0
        %3311 = vmatpush2.bf16.msra.mxu0 0
        %3312 = vmatprep.subr.bf16.mxu0 0
        %3313 = vmatpush2.bf16.msra.mxu0 0
        %3314 = vmatprep.subr.bf16.mxu0 0
        %3315 = vmatpush2.bf16.msra.mxu0 0
        %3316 = vmatprep.mubr.bf16.mxu0 0
        %3317 = vmatmul.mubr.bf16.gmra.mxu0 %v3185
        %v3318 = vpop.f32.mrf.mxu0
        %v3319 = vadd.f32 0.0, %v3318
        %v3320 = vpop.f32.mrf.mxu0
        %v3321 = vadd.f32 0.0, %v3320
        %v3322 = vpop.f32.mrf.mxu0
        %v3323 = vadd.f32 0.0, %v3322
        %v3324 = vpop.f32.mrf.mxu0
        %v3325 = vadd.f32 0.0, %v3324
        %3326 = vmatprep.mubr.bf16.mxu0 0
        %3327 = vmatmul.mubr.bf16.gmra.mxu0 %v3186
        %v3328 = vpop.f32.mrf.mxu0
        %v3329 = vadd.f32 0.0, %v3328
        %v3330 = vpop.f32.mrf.mxu0
        %v3331 = vadd.f32 0.0, %v3330
        %v3332 = vpop.f32.mrf.mxu0
        %v3333 = vadd.f32 0.0, %v3332
        %v3334 = vpop.f32.mrf.mxu0
        %v3335 = vadd.f32 0.0, %v3334
        %3336 = vmatprep.mubr.bf16.mxu0 0
        %3337 = vmatmul.mubr.bf16.gmra.mxu0 %v3187
        %v3338 = vpop.f32.mrf.mxu0
        %v3339 = vadd.f32 0.0, %v3338
        %v3340 = vpop.f32.mrf.mxu0
        %v3341 = vadd.f32 0.0, %v3340
        %v3342 = vpop.f32.mrf.mxu0
        %v3343 = vpop.f32.mrf.mxu0
        %3344 = vdwg.mxu0
        %v3345 = vadd.f32 %v3174, %v3319
        %v3346 = vadd.f32 %v3175, %v3321
        %v3347 = vadd.f32 %v3176, %v3323
        %v3348 = vadd.f32 %v3177, %v3325
        %v3349 = vadd.f32 %v3178, %v3329
        %v3350 = vadd.f32 %v3179, %v3331
        %v3351 = vadd.f32 %v3180, %v3333
        %v3352 = vadd.f32 %v3181, %v3335
        %v3353 = vadd.f32 %v3182, %v3339
        %v3354 = vadd.f32 %v3183, %v3341
        %v3355 = vld [vmem:[#allocation2 + $0x60] sm:$0xff]
        %v3356 = vpack.c.bf16 %v3013, %v2687
        %v3357 = vpack.c.bf16 %v3355, %v3355
        %v3358 = vld [vmem:[%s3 + $0x200] sm:$0xff]
        %v3359 = vld [vmem:[%s3 + $0x208] sm:$0xff]
        %v3360 = vld [vmem:[%s3 + $0x210] sm:$0xff]
        %v3361 = vld [vmem:[%s3 + $0x218] sm:$0xff]
        %v3362 = vld [vmem:[%s3 + $0x220] sm:$0xff]
        %v3363 = vld [vmem:[%s3 + $0x228] sm:$0xff]
        %v3364 = vld [vmem:[%s3 + $0x230] sm:$0xff]
        %v3365 = vld [vmem:[%s3 + $0x238] sm:$0xff]
        %v3366 = vld [vmem:[%s3 + $0x240] sm:$0xff]
        %v3367 = vld [vmem:[%s3 + $0x248] sm:$0xff]
        %v3368 = vld [vmem:[%s3 + $0x250] sm:$0xff]
        %v3369 = vld [vmem:[%s3 + $0x258] sm:$0xff]
        %v3370 = vld [vmem:[%s3 + $0x260] sm:$0xff]
        %v3371 = vld [vmem:[%s3 + $0x268] sm:$0xff]
        %v3372 = vld [vmem:[%s3 + $0x270] sm:$0xff]
        %v3373 = vld [vmem:[%s3 + $0x278] sm:$0xff]
        %v3390 = vunpack.c.l.b16 %v3358
        %v3391 = vunpack.c.h.b16 %v3358
        %v3392 = vunpack.c.l.b16 %v3359
        %v3393 = vunpack.c.h.b16 %v3359
        %v3394 = vunpack.c.l.b16 %v3360
        %v3395 = vunpack.c.h.b16 %v3360
        %v3396 = vunpack.c.l.b16 %v3361
        %v3397 = vunpack.c.h.b16 %v3361
        %v3398 = vunpack.c.l.b16 %v3362
        %v3399 = vunpack.c.h.b16 %v3362
        %v3400 = vunpack.c.l.b16 %v3363
        %v3401 = vunpack.c.h.b16 %v3363
        %v3402 = vunpack.c.l.b16 %v3364
        %v3403 = vunpack.c.h.b16 %v3364
        %v3404 = vunpack.c.l.b16 %v3365
        %v3405 = vunpack.c.h.b16 %v3365
        %v3406 = vunpack.c.l.b16 %v3366
        %v3407 = vunpack.c.h.b16 %v3366
        %v3408 = vunpack.c.l.b16 %v3367
        %v3409 = vunpack.c.h.b16 %v3367
        %v3410 = vunpack.c.l.b16 %v3368
        %v3411 = vunpack.c.h.b16 %v3368
        %v3412 = vunpack.c.l.b16 %v3369
        %v3413 = vunpack.c.h.b16 %v3369
        %v3414 = vunpack.c.l.b16 %v3370
        %v3415 = vunpack.c.h.b16 %v3370
        %v3416 = vunpack.c.l.b16 %v3371
        %v3417 = vunpack.c.h.b16 %v3371
        %v3418 = vunpack.c.l.b16 %v3372
        %v3419 = vunpack.c.h.b16 %v3372
        %v3420 = vunpack.c.l.b16 %v3373
        %v3421 = vunpack.c.h.b16 %v3373
        %v3422 = vpack.c.b16 %v3392, %v3390
        %v3423 = vpack.c.b16 %v3393, %v3391
        %v3424 = vpack.c.b16 %v3396, %v3394
        %v3425 = vpack.c.b16 %v3397, %v3395
        %v3426 = vpack.c.b16 %v3400, %v3398
        %v3427 = vpack.c.b16 %v3401, %v3399
        %v3428 = vpack.c.b16 %v3404, %v3402
        %v3429 = vpack.c.b16 %v3405, %v3403
        %v3430 = vpack.c.b16 %v3408, %v3406
        %v3431 = vpack.c.b16 %v3409, %v3407
        %v3432 = vpack.c.b16 %v3412, %v3410
        %v3433 = vpack.c.b16 %v3413, %v3411
        %v3434 = vpack.c.b16 %v3416, %v3414
        %v3435 = vpack.c.b16 %v3417, %v3415
        %v3436 = vpack.c.b16 %v3420, %v3418
        %v3437 = vpack.c.b16 %v3421, %v3419
        %3454 = vmatprep.subr.bf16.mxu0 %v3437
        %3455 = vmatpush1.bf16.msra.mxu0 %v3436
        %3456 = vmatprep.subr.bf16.mxu0 %v3435
        %3457 = vmatpush1.bf16.msra.mxu0 %v3434
        %3458 = vmatprep.subr.bf16.mxu0 %v3433
        %3459 = vmatpush1.bf16.msra.mxu0 %v3432
        %3460 = vmatprep.subr.bf16.mxu0 %v3431
        %3461 = vmatpush1.bf16.msra.mxu0 %v3430
        %3462 = vmatprep.subr.bf16.mxu0 %v3429
        %3463 = vmatpush1.bf16.msra.mxu0 %v3428
        %3464 = vmatprep.subr.bf16.mxu0 %v3427
        %3465 = vmatpush1.bf16.msra.mxu0 %v3426
        %3466 = vmatprep.subr.bf16.mxu0 %v3425
        %3467 = vmatpush1.bf16.msra.mxu0 %v3424
        %3468 = vmatprep.subr.bf16.mxu0 %v3423
        %3469 = vmatpush1.bf16.msra.mxu0 %v3422
        %3470 = vmatprep.subr.bf16.mxu0 0
        %3471 = vmatpush2.bf16.msra.mxu0 0
        %3472 = vmatprep.subr.bf16.mxu0 0
        %3473 = vmatpush2.bf16.msra.mxu0 0
        %3474 = vmatprep.subr.bf16.mxu0 0
        %3475 = vmatpush2.bf16.msra.mxu0 0
        %3476 = vmatprep.subr.bf16.mxu0 0
        %3477 = vmatpush2.bf16.msra.mxu0 0
        %3478 = vmatprep.subr.bf16.mxu0 0
        %3479 = vmatpush2.bf16.msra.mxu0 0
        %3480 = vmatprep.subr.bf16.mxu0 0
        %3481 = vmatpush2.bf16.msra.mxu0 0
        %3482 = vmatprep.subr.bf16.mxu0 0
        %3483 = vmatpush2.bf16.msra.mxu0 0
        %3484 = vmatprep.subr.bf16.mxu0 0
        %3485 = vmatpush2.bf16.msra.mxu0 0
        %3486 = vmatprep.mubr.bf16.mxu0 0
        %3487 = vmatmul.mubr.bf16.gmra.mxu0 %v2689
        %v3488 = vpop.f32.mrf.mxu0
        %v3489 = vadd.f32 0.0, %v3488
        %v3490 = vpop.f32.mrf.mxu0
        %v3491 = vadd.f32 0.0, %v3490
        %v3492 = vpop.f32.mrf.mxu0
        %v3493 = vadd.f32 0.0, %v3492
        %v3494 = vpop.f32.mrf.mxu0
        %v3495 = vadd.f32 0.0, %v3494
        %3496 = vmatprep.mubr.bf16.mxu0 0
        %3497 = vmatmul.mubr.bf16.gmra.mxu0 %v3356
        %v3498 = vpop.f32.mrf.mxu0
        %v3499 = vadd.f32 0.0, %v3498
        %v3500 = vpop.f32.mrf.mxu0
        %v3501 = vadd.f32 0.0, %v3500
        %v3502 = vpop.f32.mrf.mxu0
        %v3503 = vadd.f32 0.0, %v3502
        %v3504 = vpop.f32.mrf.mxu0
        %v3505 = vadd.f32 0.0, %v3504
        %3506 = vmatprep.mubr.bf16.mxu0 0
        %3507 = vmatmul.mubr.bf16.gmra.mxu0 %v3357
        %v3508 = vpop.f32.mrf.mxu0
        %v3509 = vadd.f32 0.0, %v3508
        %v3510 = vpop.f32.mrf.mxu0
        %v3511 = vadd.f32 0.0, %v3510
        %v3512 = vpop.f32.mrf.mxu0
        %v3513 = vpop.f32.mrf.mxu0
        %3514 = vdwg.mxu0
        %v3515 = vadd.f32 %v3345, %v3489
        %v3516 = vadd.f32 %v3346, %v3491
        %v3517 = vadd.f32 %v3347, %v3493
        %v3518 = vadd.f32 %v3348, %v3495
        %v3519 = vadd.f32 %v3349, %v3499
        %v3520 = vadd.f32 %v3350, %v3501
        %v3521 = vadd.f32 %v3351, %v3503
        %v3522 = vadd.f32 %v3352, %v3505
        %v3523 = vadd.f32 %v3353, %v3509
        %v3524 = vadd.f32 %v3354, %v3511
        %v3525 = vld [vmem:[%s4] sm:$0x3]
        %v3527 = vlaneseq
        %v3528 = vshrl.u32 %v3527, 7
        %v3529 = vsub.s32 0, %v3528
        %v3530 = vrot.slane %v3525, %v3529
        %v3531 = vlaneseq
        %v3532 = vshrl.u32 %v3531, 7
        %v3533 = vsub.s32 1, %v3532
        %v3534 = vrot.slane %v3525, %v3533
        %v3537 = vadd.f32 %v3515, %v3530
        %v3538 = vadd.f32 %v3516, %v3534
        %v3539 = vadd.f32 %v3517, %v3530
        %v3540 = vadd.f32 %v3518, %v3534
        %v3541 = vadd.f32 %v3519, %v3530
        %v3542 = vadd.f32 %v3520, %v3534
        %v3543 = vadd.f32 %v3521, %v3530
        %v3544 = vadd.f32 %v3522, %v3534
        %v3545 = vadd.f32 %v3523, %v3530
        %v3546 = vadd.f32 %v3524, %v3534
        %v3547 = vmax.f32 %v3537, 0.0
        %v3548 = vmax.f32 %v3538, 0.0
        %v3549 = vmax.f32 %v3539, 0.0
        %v3550 = vmax.f32 %v3540, 0.0
        %v3551 = vmax.f32 %v3541, 0.0
        %v3552 = vmax.f32 %v3542, 0.0
        %v3553 = vmax.f32 %v3543, 0.0
        %v3554 = vmax.f32 %v3544, 0.0
        %v3555 = vmax.f32 %v3545, 0.0
        %v3556 = vmax.f32 %v3546, 0.0
        %3557 = vmatprep.subr.bf16.mxu0 %v2794
        %3558 = vmatpush1.bf16.msra.mxu0 %v2793
        %3559 = vmatprep.subr.bf16.mxu0 %v2792
        %3560 = vmatpush1.bf16.msra.mxu0 %v2791
        %3561 = vmatprep.subr.bf16.mxu0 %v2790
        %3562 = vmatpush1.bf16.msra.mxu0 %v2789
        %3563 = vmatprep.subr.bf16.mxu0 %v2788
        %3564 = vmatpush1.bf16.msra.mxu0 %v2787
        %3565 = vmatprep.subr.bf16.mxu0 %v2786
        %3566 = vmatpush1.bf16.msra.mxu0 %v2785
        %3567 = vmatprep.subr.bf16.mxu0 %v2784
        %3568 = vmatpush1.bf16.msra.mxu0 %v2783
        %3569 = vmatprep.subr.bf16.mxu0 %v2782
        %3570 = vmatpush1.bf16.msra.mxu0 %v2781
        %3571 = vmatprep.subr.bf16.mxu0 %v2780
        %3572 = vmatpush1.bf16.msra.mxu0 %v2779
        %3573 = vmatprep.subr.bf16.mxu0 0
        %3574 = vmatpush2.bf16.msra.mxu0 0
        %3575 = vmatprep.subr.bf16.mxu0 0
        %3576 = vmatpush2.bf16.msra.mxu0 0
        %3577 = vmatprep.subr.bf16.mxu0 0
        %3578 = vmatpush2.bf16.msra.mxu0 0
        %3579 = vmatprep.subr.bf16.mxu0 0
        %3580 = vmatpush2.bf16.msra.mxu0 0
        %3581 = vmatprep.subr.bf16.mxu0 0
        %3582 = vmatpush2.bf16.msra.mxu0 0
        %3583 = vmatprep.subr.bf16.mxu0 0
        %3584 = vmatpush2.bf16.msra.mxu0 0
        %3585 = vmatprep.subr.bf16.mxu0 0
        %3586 = vmatpush2.bf16.msra.mxu0 0
        %3587 = vmatprep.subr.bf16.mxu0 0
        %3588 = vmatpush2.bf16.msra.mxu0 0
        %3589 = vmatprep.mubr.bf16.mxu0 0
        %3590 = vmatmul.mubr.bf16.gmra.mxu0 %v3014
        %v3591 = vpop.f32.mrf.mxu0
        %v3592 = vadd.f32 0.0, %v3591
        %v3593 = vpop.f32.mrf.mxu0
        %v3594 = vadd.f32 0.0, %v3593
        %v3595 = vpop.f32.mrf.mxu0
        %v3596 = vadd.f32 0.0, %v3595
        %v3597 = vpop.f32.mrf.mxu0
        %v3598 = vadd.f32 0.0, %v3597
        %3599 = vmatprep.mubr.bf16.mxu0 0
        %3600 = vmatmul.mubr.bf16.gmra.mxu0 %v3015
        %v3601 = vpop.f32.mrf.mxu0
        %v3602 = vadd.f32 0.0, %v3601
        %v3603 = vpop.f32.mrf.mxu0
        %v3604 = vadd.f32 0.0, %v3603
        %v3605 = vpop.f32.mrf.mxu0
        %v3606 = vadd.f32 0.0, %v3605
        %v3607 = vpop.f32.mrf.mxu0
        %v3608 = vadd.f32 0.0, %v3607
        %3609 = vmatprep.mubr.bf16.mxu0 0
        %3610 = vmatmul.mubr.bf16.gmra.mxu0 %v3016
        %v3611 = vpop.f32.mrf.mxu0
        %v3612 = vadd.f32 0.0, %v3611
        %v3613 = vpop.f32.mrf.mxu0
        %v3614 = vadd.f32 0.0, %v3613
        %v3615 = vpop.f32.mrf.mxu0
        %v3616 = vpop.f32.mrf.mxu0
        %3617 = vdwg.mxu0
        %3618 = vmatprep.subr.bf16.mxu0 %v2935
        %3619 = vmatpush1.bf16.msra.mxu0 %v2934
        %3620 = vmatprep.subr.bf16.mxu0 %v2933
        %3621 = vmatpush1.bf16.msra.mxu0 %v2932
        %3622 = vmatprep.subr.bf16.mxu0 %v2931
        %3623 = vmatpush1.bf16.msra.mxu0 %v2930
        %3624 = vmatprep.subr.bf16.mxu0 %v2929
        %3625 = vmatpush1.bf16.msra.mxu0 %v2928
        %3626 = vmatprep.subr.bf16.mxu0 %v2927
        %3627 = vmatpush1.bf16.msra.mxu0 %v2926
        %3628 = vmatprep.subr.bf16.mxu0 %v2925
        %3629 = vmatpush1.bf16.msra.mxu0 %v2924
        %3630 = vmatprep.subr.bf16.mxu0 %v2923
        %3631 = vmatpush1.bf16.msra.mxu0 %v2922
        %3632 = vmatprep.subr.bf16.mxu0 %v2921
        %3633 = vmatpush1.bf16.msra.mxu0 %v2920
        %3634 = vmatprep.subr.bf16.mxu0 0
        %3635 = vmatpush2.bf16.msra.mxu0 0
        %3636 = vmatprep.subr.bf16.mxu0 0
        %3637 = vmatpush2.bf16.msra.mxu0 0
        %3638 = vmatprep.subr.bf16.mxu0 0
        %3639 = vmatpush2.bf16.msra.mxu0 0
        %3640 = vmatprep.subr.bf16.mxu0 0
        %3641 = vmatpush2.bf16.msra.mxu0 0
        %3642 = vmatprep.subr.bf16.mxu0 0
        %3643 = vmatpush2.bf16.msra.mxu0 0
        %3644 = vmatprep.subr.bf16.mxu0 0
        %3645 = vmatpush2.bf16.msra.mxu0 0
        %3646 = vmatprep.subr.bf16.mxu0 0
        %3647 = vmatpush2.bf16.msra.mxu0 0
        %3648 = vmatprep.subr.bf16.mxu0 0
        %3649 = vmatpush2.bf16.msra.mxu0 0
        %3650 = vmatprep.mubr.bf16.mxu0 0
        %3651 = vmatmul.mubr.bf16.gmra.mxu0 %v2712
        %v3652 = vpop.f32.mrf.mxu0
        %v3653 = vadd.f32 %v3592, %v3652
        %v3654 = vpop.f32.mrf.mxu0
        %v3655 = vadd.f32 %v3594, %v3654
        %v3656 = vpop.f32.mrf.mxu0
        %v3657 = vadd.f32 %v3596, %v3656
        %v3658 = vpop.f32.mrf.mxu0
        %v3659 = vadd.f32 %v3598, %v3658
        %3660 = vmatprep.mubr.bf16.mxu0 0
        %3661 = vmatmul.mubr.bf16.gmra.mxu0 %v2713
        %v3662 = vpop.f32.mrf.mxu0
        %v3663 = vadd.f32 %v3602, %v3662
        %v3664 = vpop.f32.mrf.mxu0
        %v3665 = vadd.f32 %v3604, %v3664
        %v3666 = vpop.f32.mrf.mxu0
        %v3667 = vadd.f32 %v3606, %v3666
        %v3668 = vpop.f32.mrf.mxu0
        %v3669 = vadd.f32 %v3608, %v3668
        %3670 = vmatprep.mubr.bf16.mxu0 0
        %3671 = vmatmul.mubr.bf16.gmra.mxu0 %v2714
        %v3672 = vpop.f32.mrf.mxu0
        %v3673 = vadd.f32 %v3612, %v3672
        %v3674 = vpop.f32.mrf.mxu0
        %v3675 = vadd.f32 %v3614, %v3674
        %v3676 = vpop.f32.mrf.mxu0
        %v3677 = vpop.f32.mrf.mxu0
        %3678 = vdwg.mxu0
        %3679 = vmatprep.subr.bf16.mxu0 %v3096
        %3680 = vmatpush1.bf16.msra.mxu0 %v3095
        %3681 = vmatprep.subr.bf16.mxu0 %v3094
        %3682 = vmatpush1.bf16.msra.mxu0 %v3093
        %3683 = vmatprep.subr.bf16.mxu0 %v3092
        %3684 = vmatpush1.bf16.msra.mxu0 %v3091
        %3685 = vmatprep.subr.bf16.mxu0 %v3090
        %3686 = vmatpush1.bf16.msra.mxu0 %v3089
        %3687 = vmatprep.subr.bf16.mxu0 %v3088
        %3688 = vmatpush1.bf16.msra.mxu0 %v3087
        %3689 = vmatprep.subr.bf16.mxu0 %v3086
        %3690 = vmatpush1.bf16.msra.mxu0 %v3085
        %3691 = vmatprep.subr.bf16.mxu0 %v3084
        %3692 = vmatpush1.bf16.msra.mxu0 %v3083
        %3693 = vmatprep.subr.bf16.mxu0 %v3082
        %3694 = vmatpush1.bf16.msra.mxu0 %v3081
        %3695 = vmatprep.subr.bf16.mxu0 0
        %3696 = vmatpush2.bf16.msra.mxu0 0
        %3697 = vmatprep.subr.bf16.mxu0 0
        %3698 = vmatpush2.bf16.msra.mxu0 0
        %3699 = vmatprep.subr.bf16.mxu0 0
        %3700 = vmatpush2.bf16.msra.mxu0 0
        %3701 = vmatprep.subr.bf16.mxu0 0
        %3702 = vmatpush2.bf16.msra.mxu0 0
        %3703 = vmatprep.subr.bf16.mxu0 0
        %3704 = vmatpush2.bf16.msra.mxu0 0
        %3705 = vmatprep.subr.bf16.mxu0 0
        %3706 = vmatpush2.bf16.msra.mxu0 0
        %3707 = vmatprep.subr.bf16.mxu0 0
        %3708 = vmatpush2.bf16.msra.mxu0 0
        %3709 = vmatprep.subr.bf16.mxu0 0
        %3710 = vmatpush2.bf16.msra.mxu0 0
        %3711 = vmatprep.mubr.bf16.mxu0 0
        %3712 = vmatmul.mubr.bf16.gmra.mxu0 %v3185
        %v3713 = vpop.f32.mrf.mxu0
        %v3714 = vadd.f32 0.0, %v3713
        %v3715 = vpop.f32.mrf.mxu0
        %v3716 = vadd.f32 0.0, %v3715
        %v3717 = vpop.f32.mrf.mxu0
        %v3718 = vadd.f32 0.0, %v3717
        %v3719 = vpop.f32.mrf.mxu0
        %v3720 = vadd.f32 0.0, %v3719
        %3721 = vmatprep.mubr.bf16.mxu0 0
        %3722 = vmatmul.mubr.bf16.gmra.mxu0 %v3186
        %v3723 = vpop.f32.mrf.mxu0
        %v3724 = vadd.f32 0.0, %v3723
        %v3725 = vpop.f32.mrf.mxu0
        %v3726 = vadd.f32 0.0, %v3725
        %v3727 = vpop.f32.mrf.mxu0
        %v3728 = vadd.f32 0.0, %v3727
        %v3729 = vpop.f32.mrf.mxu0
        %v3730 = vadd.f32 0.0, %v3729
        %3731 = vmatprep.mubr.bf16.mxu0 0
        %3732 = vmatmul.mubr.bf16.gmra.mxu0 %v3187
        %v3733 = vpop.f32.mrf.mxu0
        %v3734 = vadd.f32 0.0, %v3733
        %v3735 = vpop.f32.mrf.mxu0
        %v3736 = vadd.f32 0.0, %v3735
        %v3737 = vpop.f32.mrf.mxu0
        %v3738 = vpop.f32.mrf.mxu0
        %3739 = vdwg.mxu0
        %v3740 = vadd.f32 %v3653, %v3714
        %v3741 = vadd.f32 %v3655, %v3716
        %v3742 = vadd.f32 %v3657, %v3718
        %v3743 = vadd.f32 %v3659, %v3720
        %v3744 = vadd.f32 %v3663, %v3724
        %v3745 = vadd.f32 %v3665, %v3726
        %v3746 = vadd.f32 %v3667, %v3728
        %v3747 = vadd.f32 %v3669, %v3730
        %v3748 = vadd.f32 %v3673, %v3734
        %v3749 = vadd.f32 %v3675, %v3736
        %3750 = vmatprep.subr.bf16.mxu0 %v3267
        %3751 = vmatpush1.bf16.msra.mxu0 %v3266
        %3752 = vmatprep.subr.bf16.mxu0 %v3265
        %3753 = vmatpush1.bf16.msra.mxu0 %v3264
        %3754 = vmatprep.subr.bf16.mxu0 %v3263
        %3755 = vmatpush1.bf16.msra.mxu0 %v3262
        %3756 = vmatprep.subr.bf16.mxu0 %v3261
        %3757 = vmatpush1.bf16.msra.mxu0 %v3260
        %3758 = vmatprep.subr.bf16.mxu0 %v3259
        %3759 = vmatpush1.bf16.msra.mxu0 %v3258
        %3760 = vmatprep.subr.bf16.mxu0 %v3257
        %3761 = vmatpush1.bf16.msra.mxu0 %v3256
        %3762 = vmatprep.subr.bf16.mxu0 %v3255
        %3763 = vmatpush1.bf16.msra.mxu0 %v3254
        %3764 = vmatprep.subr.bf16.mxu0 %v3253
        %3765 = vmatpush1.bf16.msra.mxu0 %v3252
        %3766 = vmatprep.subr.bf16.mxu0 0
        %3767 = vmatpush2.bf16.msra.mxu0 0
        %3768 = vmatprep.subr.bf16.mxu0 0
        %3769 = vmatpush2.bf16.msra.mxu0 0
        %3770 = vmatprep.subr.bf16.mxu0 0
        %3771 = vmatpush2.bf16.msra.mxu0 0
        %3772 = vmatprep.subr.bf16.mxu0 0
        %3773 = vmatpush2.bf16.msra.mxu0 0
        %3774 = vmatprep.subr.bf16.mxu0 0
        %3775 = vmatpush2.bf16.msra.mxu0 0
        %3776 = vmatprep.subr.bf16.mxu0 0
        %3777 = vmatpush2.bf16.msra.mxu0 0
        %3778 = vmatprep.subr.bf16.mxu0 0
        %3779 = vmatpush2.bf16.msra.mxu0 0
        %3780 = vmatprep.subr.bf16.mxu0 0
        %3781 = vmatpush2.bf16.msra.mxu0 0
        %3782 = vmatprep.mubr.bf16.mxu0 0
        %3783 = vmatmul.mubr.bf16.gmra.mxu0 %v2689
        %v3784 = vpop.f32.mrf.mxu0
        %v3785 = vadd.f32 0.0, %v3784
        %v3786 = vpop.f32.mrf.mxu0
        %v3787 = vadd.f32 0.0, %v3786
        %v3788 = vpop.f32.mrf.mxu0
        %v3789 = vadd.f32 0.0, %v3788
        %v3790 = vpop.f32.mrf.mxu0
        %v3791 = vadd.f32 0.0, %v3790
        %3792 = vmatprep.mubr.bf16.mxu0 0
        %3793 = vmatmul.mubr.bf16.gmra.mxu0 %v3356
        %v3794 = vpop.f32.mrf.mxu0
        %v3795 = vadd.f32 0.0, %v3794
        %v3796 = vpop.f32.mrf.mxu0
        %v3797 = vadd.f32 0.0, %v3796
        %v3798 = vpop.f32.mrf.mxu0
        %v3799 = vadd.f32 0.0, %v3798
        %v3800 = vpop.f32.mrf.mxu0
        %v3801 = vadd.f32 0.0, %v3800
        %3802 = vmatprep.mubr.bf16.mxu0 0
        %3803 = vmatmul.mubr.bf16.gmra.mxu0 %v3357
        %v3804 = vpop.f32.mrf.mxu0
        %v3805 = vadd.f32 0.0, %v3804
        %v3806 = vpop.f32.mrf.mxu0
        %v3807 = vadd.f32 0.0, %v3806
        %v3808 = vpop.f32.mrf.mxu0
        %v3809 = vpop.f32.mrf.mxu0
        %3810 = vdwg.mxu0
        %v3811 = vadd.f32 %v3740, %v3785
        %v3812 = vadd.f32 %v3741, %v3787
        %v3813 = vadd.f32 %v3742, %v3789
        %v3814 = vadd.f32 %v3743, %v3791
        %v3815 = vadd.f32 %v3744, %v3795
        %v3816 = vadd.f32 %v3745, %v3797
        %v3817 = vadd.f32 %v3746, %v3799
        %v3818 = vadd.f32 %v3747, %v3801
        %v3819 = vadd.f32 %v3748, %v3805
        %v3820 = vadd.f32 %v3749, %v3807
        %v3821 = vld [vmem:[#allocation2 + $0x68] sm:$0xff]
        %v3822 = vpack.c.bf16 %v3184, %v2711
        %v3823 = vpack.c.bf16 %v3821, %v3821
        %3824 = vmatprep.subr.bf16.mxu0 %v3437
        %3825 = vmatpush1.bf16.msra.mxu0 %v3436
        %3826 = vmatprep.subr.bf16.mxu0 %v3435
        %3827 = vmatpush1.bf16.msra.mxu0 %v3434
        %3828 = vmatprep.subr.bf16.mxu0 %v3433
        %3829 = vmatpush1.bf16.msra.mxu0 %v3432
        %3830 = vmatprep.subr.bf16.mxu0 %v3431
        %3831 = vmatpush1.bf16.msra.mxu0 %v3430
        %3832 = vmatprep.subr.bf16.mxu0 %v3429
        %3833 = vmatpush1.bf16.msra.mxu0 %v3428
        %3834 = vmatprep.subr.bf16.mxu0 %v3427
        %3835 = vmatpush1.bf16.msra.mxu0 %v3426
        %3836 = vmatprep.subr.bf16.mxu0 %v3425
        %3837 = vmatpush1.bf16.msra.mxu0 %v3424
        %3838 = vmatprep.subr.bf16.mxu0 %v3423
        %3839 = vmatpush1.bf16.msra.mxu0 %v3422
        %3840 = vmatprep.subr.bf16.mxu0 0
        %3841 = vmatpush2.bf16.msra.mxu0 0
        %3842 = vmatprep.subr.bf16.mxu0 0
        %3843 = vmatpush2.bf16.msra.mxu0 0
        %3844 = vmatprep.subr.bf16.mxu0 0
        %3845 = vmatpush2.bf16.msra.mxu0 0
        %3846 = vmatprep.subr.bf16.mxu0 0
        %3847 = vmatpush2.bf16.msra.mxu0 0
        %3848 = vmatprep.subr.bf16.mxu0 0
        %3849 = vmatpush2.bf16.msra.mxu0 0
        %3850 = vmatprep.subr.bf16.mxu0 0
        %3851 = vmatpush2.bf16.msra.mxu0 0
        %3852 = vmatprep.subr.bf16.mxu0 0
        %3853 = vmatpush2.bf16.msra.mxu0 0
        %3854 = vmatprep.subr.bf16.mxu0 0
        %3855 = vmatpush2.bf16.msra.mxu0 0
        %3856 = vmatprep.mubr.bf16.mxu0 0
        %3857 = vmatmul.mubr.bf16.gmra.mxu0 %v2713
        %v3858 = vpop.f32.mrf.mxu0
        %v3859 = vadd.f32 0.0, %v3858
        %v3860 = vpop.f32.mrf.mxu0
        %v3861 = vadd.f32 0.0, %v3860
        %v3862 = vpop.f32.mrf.mxu0
        %v3863 = vadd.f32 0.0, %v3862
        %v3864 = vpop.f32.mrf.mxu0
        %v3865 = vadd.f32 0.0, %v3864
        %3866 = vmatprep.mubr.bf16.mxu0 0
        %3867 = vmatmul.mubr.bf16.gmra.mxu0 %v3822
        %v3868 = vpop.f32.mrf.mxu0
        %v3869 = vadd.f32 0.0, %v3868
        %v3870 = vpop.f32.mrf.mxu0
        %v3871 = vadd.f32 0.0, %v3870
        %v3872 = vpop.f32.mrf.mxu0
        %v3873 = vadd.f32 0.0, %v3872
        %v3874 = vpop.f32.mrf.mxu0
        %v3875 = vadd.f32 0.0, %v3874
        %3876 = vmatprep.mubr.bf16.mxu0 0
        %3877 = vmatmul.mubr.bf16.gmra.mxu0 %v3823
        %v3878 = vpop.f32.mrf.mxu0
        %v3879 = vadd.f32 0.0, %v3878
        %v3880 = vpop.f32.mrf.mxu0
        %v3881 = vadd.f32 0.0, %v3880
        %v3882 = vpop.f32.mrf.mxu0
        %v3883 = vpop.f32.mrf.mxu0
        %3884 = vdwg.mxu0
        %v3885 = vadd.f32 %v3811, %v3859
        %v3886 = vadd.f32 %v3812, %v3861
        %v3887 = vadd.f32 %v3813, %v3863
        %v3888 = vadd.f32 %v3814, %v3865
        %v3889 = vadd.f32 %v3815, %v3869
        %v3890 = vadd.f32 %v3816, %v3871
        %v3891 = vadd.f32 %v3817, %v3873
        %v3892 = vadd.f32 %v3818, %v3875
        %v3893 = vadd.f32 %v3819, %v3879
        %v3894 = vadd.f32 %v3820, %v3881
        %v3895 = vadd.f32 %v3885, %v3530
        %v3896 = vadd.f32 %v3886, %v3534
        %v3897 = vadd.f32 %v3887, %v3530
        %v3898 = vadd.f32 %v3888, %v3534
        %v3899 = vadd.f32 %v3889, %v3530
        %v3900 = vadd.f32 %v3890, %v3534
        %v3901 = vadd.f32 %v3891, %v3530
        %v3902 = vadd.f32 %v3892, %v3534
        %v3903 = vadd.f32 %v3893, %v3530
        %v3904 = vadd.f32 %v3894, %v3534
        %v3905 = vmax.f32 %v3895, 0.0
        %v3906 = vmax.f32 %v3896, 0.0
        %v3907 = vmax.f32 %v3897, 0.0
        %v3908 = vmax.f32 %v3898, 0.0
        %v3909 = vmax.f32 %v3899, 0.0
        %v3910 = vmax.f32 %v3900, 0.0
        %v3911 = vmax.f32 %v3901, 0.0
        %v3912 = vmax.f32 %v3902, 0.0
        %v3913 = vmax.f32 %v3903, 0.0
        %v3914 = vmax.f32 %v3904, 0.0
        %v3915 = vmax.f32 %v3547, %v3905
        %v3916 = vmax.f32 %v3548, %v3906
        %v3917 = vmax.f32 %v3549, %v3907
        %v3918 = vmax.f32 %v3550, %v3908
        %v3919 = vmax.f32 %v3551, %v3909
        %v3920 = vmax.f32 %v3552, %v3910
        %v3921 = vmax.f32 %v3553, %v3911
        %v3922 = vmax.f32 %v3554, %v3912
        %v3923 = vmax.f32 %v3555, %v3913
        %v3924 = vmax.f32 %v3556, %v3914
        %v3925 = vmax.f32 %v3915, %v3916
        %v3926 = vmax.f32 %v3917, %v3918
        %v3927 = vmax.f32 %v3919, %v3920
        %v3928 = vmax.f32 %v3921, %v3922
        %v3929 = vmax.f32 %v3923, %v3924
        %v3930 = vpack.c.bf16 %v3925, %v3925
        %v3931 = vld [vmem:[%s5] sm:$0xf]
        %v3932 = vld [vmem:[%s5 + $0x4] sm:$0xf]
        %v3933 = vld [vmem:[%s5 + $0x8] sm:$0xf]
        %v3934 = vld [vmem:[%s5 + $0xc] sm:$0xf]
        %v3935 = vld [vmem:[%s5 + $0x10] sm:$0xf]
        %v3936 = vld [vmem:[%s5 + $0x14] sm:$0xf]
        %v3937 = vld [vmem:[%s5 + $0x18] sm:$0xf]
        %v3938 = vld [vmem:[%s5 + $0x1c] sm:$0xf]
        %v3939 = vld [vmem:[%s5 + $0x20] sm:$0xf]
        %v3940 = vld [vmem:[%s5 + $0x24] sm:$0xf]
        %v3941 = vld [vmem:[%s5 + $0x28] sm:$0xf]
        %v3942 = vld [vmem:[%s5 + $0x2c] sm:$0xf]
        %v3943 = vld [vmem:[%s5 + $0x30] sm:$0xf]
        %v3944 = vld [vmem:[%s5 + $0x34] sm:$0xf]
        %v3945 = vld [vmem:[%s5 + $0x38] sm:$0xf]
        %v3946 = vld [vmem:[%s5 + $0x3c] sm:$0xf]
        %v3947 = vpack.c.bf16 %v3926, %v3926
        %v3948 = vld [vmem:[%s5 + $0x40] sm:$0xf]
        %v3949 = vld [vmem:[%s5 + $0x44] sm:$0xf]
        %v3950 = vld [vmem:[%s5 + $0x48] sm:$0xf]
        %v3951 = vld [vmem:[%s5 + $0x4c] sm:$0xf]
        %v3952 = vld [vmem:[%s5 + $0x50] sm:$0xf]
        %v3953 = vld [vmem:[%s5 + $0x54] sm:$0xf]
        %v3954 = vld [vmem:[%s5 + $0x58] sm:$0xf]
        %v3955 = vld [vmem:[%s5 + $0x5c] sm:$0xf]
        %v3956 = vld [vmem:[%s5 + $0x60] sm:$0xf]
        %v3957 = vld [vmem:[%s5 + $0x64] sm:$0xf]
        %v3958 = vld [vmem:[%s5 + $0x68] sm:$0xf]
        %v3959 = vld [vmem:[%s5 + $0x6c] sm:$0xf]
        %v3960 = vld [vmem:[%s5 + $0x70] sm:$0xf]
        %v3961 = vld [vmem:[%s5 + $0x74] sm:$0xf]
        %v3962 = vld [vmem:[%s5 + $0x78] sm:$0xf]
        %v3963 = vld [vmem:[%s5 + $0x7c] sm:$0xf]
        %v3980 = vunpack.c.l.b16 %v3948
        %v3981 = vunpack.c.l.b16 %v3949
        %v3982 = vunpack.c.l.b16 %v3950
        %v3983 = vunpack.c.l.b16 %v3951
        %v3984 = vunpack.c.l.b16 %v3952
        %v3985 = vunpack.c.l.b16 %v3953
        %v3986 = vunpack.c.l.b16 %v3954
        %v3987 = vunpack.c.l.b16 %v3955
        %v3988 = vunpack.c.l.b16 %v3956
        %v3989 = vunpack.c.l.b16 %v3957
        %v3990 = vunpack.c.l.b16 %v3958
        %v3991 = vunpack.c.l.b16 %v3959
        %v3992 = vunpack.c.l.b16 %v3960
        %v3993 = vunpack.c.l.b16 %v3961
        %v3994 = vunpack.c.l.b16 %v3962
        %v3995 = vunpack.c.l.b16 %v3963
        %v3996 = vpack.c.b16 %v3981, %v3980
        %v3997 = vpack.c.b16 %v3983, %v3982
        %v3998 = vpack.c.b16 %v3985, %v3984
        %v3999 = vpack.c.b16 %v3987, %v3986
        %v4000 = vpack.c.b16 %v3989, %v3988
        %v4001 = vpack.c.b16 %v3991, %v3990
        %v4002 = vpack.c.b16 %v3993, %v3992
        %v4003 = vpack.c.b16 %v3995, %v3994
        %4012 = vmatprep.subr.bf16.mxu0 0
        %4013 = vmatpush1.bf16.msra.mxu0 %v4003
        %4014 = vmatprep.subr.bf16.mxu0 0
        %4015 = vmatpush1.bf16.msra.mxu0 %v4002
        %4016 = vmatprep.subr.bf16.mxu0 0
        %4017 = vmatpush1.bf16.msra.mxu0 %v4001
        %4018 = vmatprep.subr.bf16.mxu0 0
        %4019 = vmatpush1.bf16.msra.mxu0 %v4000
        %4020 = vmatprep.subr.bf16.mxu0 0
        %4021 = vmatpush1.bf16.msra.mxu0 %v3999
        %4022 = vmatprep.subr.bf16.mxu0 0
        %4023 = vmatpush1.bf16.msra.mxu0 %v3998
        %4024 = vmatprep.subr.bf16.mxu0 0
        %4025 = vmatpush1.bf16.msra.mxu0 %v3997
        %4026 = vmatprep.subr.bf16.mxu0 0
        %4027 = vmatpush1.bf16.msra.mxu0 %v3996
        %4028 = vmatprep.subr.bf16.mxu0 0
        %4029 = vmatpush2.bf16.msra.mxu0 0
        %4030 = vmatprep.subr.bf16.mxu0 0
        %4031 = vmatpush2.bf16.msra.mxu0 0
        %4032 = vmatprep.subr.bf16.mxu0 0
        %4033 = vmatpush2.bf16.msra.mxu0 0
        %4034 = vmatprep.subr.bf16.mxu0 0
        %4035 = vmatpush2.bf16.msra.mxu0 0
        %4036 = vmatprep.subr.bf16.mxu0 0
        %4037 = vmatpush2.bf16.msra.mxu0 0
        %4038 = vmatprep.subr.bf16.mxu0 0
        %4039 = vmatpush2.bf16.msra.mxu0 0
        %4040 = vmatprep.subr.bf16.mxu0 0
        %4041 = vmatpush2.bf16.msra.mxu0 0
        %4042 = vmatprep.subr.bf16.mxu0 0
        %4043 = vmatpush2.bf16.msra.mxu0 0
        %4044 = vmatprep.mubr.bf16.mxu0 0
        %4045 = vmatmul.mubr.bf16.gmra.mxu0 %v3947
        %v4046 = vpop.f32.mrf.mxu0
        %v4047 = vadd.f32 0.0, %v4046
        %v4048 = vpop.f32.mrf.mxu0
        %v4049 = vpop.f32.mrf.mxu0
        %v4050 = vpop.f32.mrf.mxu0
        %4051 = vdwg.mxu0
        %v4068 = vunpack.c.l.b16 %v3931
        %v4069 = vunpack.c.l.b16 %v3932
        %v4070 = vunpack.c.l.b16 %v3933
        %v4071 = vunpack.c.l.b16 %v3934
        %v4072 = vunpack.c.l.b16 %v3935
        %v4073 = vunpack.c.l.b16 %v3936
        %v4074 = vunpack.c.l.b16 %v3937
        %v4075 = vunpack.c.l.b16 %v3938
        %v4076 = vunpack.c.l.b16 %v3939
        %v4077 = vunpack.c.l.b16 %v3940
        %v4078 = vunpack.c.l.b16 %v3941
        %v4079 = vunpack.c.l.b16 %v3942
        %v4080 = vunpack.c.l.b16 %v3943
        %v4081 = vunpack.c.l.b16 %v3944
        %v4082 = vunpack.c.l.b16 %v3945
        %v4083 = vunpack.c.l.b16 %v3946
        %v4084 = vpack.c.b16 %v4069, %v4068
        %v4085 = vpack.c.b16 %v4071, %v4070
        %v4086 = vpack.c.b16 %v4073, %v4072
        %v4087 = vpack.c.b16 %v4075, %v4074
        %v4088 = vpack.c.b16 %v4077, %v4076
        %v4089 = vpack.c.b16 %v4079, %v4078
        %v4090 = vpack.c.b16 %v4081, %v4080
        %v4091 = vpack.c.b16 %v4083, %v4082
        %4100 = vmatprep.subr.bf16.mxu0 0
        %4101 = vmatpush1.bf16.msra.mxu0 %v4091
        %4102 = vmatprep.subr.bf16.mxu0 0
        %4103 = vmatpush1.bf16.msra.mxu0 %v4090
        %4104 = vmatprep.subr.bf16.mxu0 0
        %4105 = vmatpush1.bf16.msra.mxu0 %v4089
        %4106 = vmatprep.subr.bf16.mxu0 0
        %4107 = vmatpush1.bf16.msra.mxu0 %v4088
        %4108 = vmatprep.subr.bf16.mxu0 0
        %4109 = vmatpush1.bf16.msra.mxu0 %v4087
        %4110 = vmatprep.subr.bf16.mxu0 0
        %4111 = vmatpush1.bf16.msra.mxu0 %v4086
        %4112 = vmatprep.subr.bf16.mxu0 0
        %4113 = vmatpush1.bf16.msra.mxu0 %v4085
        %4114 = vmatprep.subr.bf16.mxu0 0
        %4115 = vmatpush1.bf16.msra.mxu0 %v4084
        %4116 = vmatprep.subr.bf16.mxu0 0
        %4117 = vmatpush2.bf16.msra.mxu0 0
        %4118 = vmatprep.subr.bf16.mxu0 0
        %4119 = vmatpush2.bf16.msra.mxu0 0
        %4120 = vmatprep.subr.bf16.mxu0 0
        %4121 = vmatpush2.bf16.msra.mxu0 0
        %4122 = vmatprep.subr.bf16.mxu0 0
        %4123 = vmatpush2.bf16.msra.mxu0 0
        %4124 = vmatprep.subr.bf16.mxu0 0
        %4125 = vmatpush2.bf16.msra.mxu0 0
        %4126 = vmatprep.subr.bf16.mxu0 0
        %4127 = vmatpush2.bf16.msra.mxu0 0
        %4128 = vmatprep.subr.bf16.mxu0 0
        %4129 = vmatpush2.bf16.msra.mxu0 0
        %4130 = vmatprep.subr.bf16.mxu0 0
        %4131 = vmatpush2.bf16.msra.mxu0 0
        %4132 = vmatprep.mubr.bf16.mxu0 0
        %4133 = vmatmul.mubr.bf16.gmra.mxu0 %v3930
        %v4134 = vpop.f32.mrf.mxu0
        %v4135 = vadd.f32 %v4047, %v4134
        %v4136 = vpop.f32.mrf.mxu0
        %v4137 = vpop.f32.mrf.mxu0
        %v4138 = vpop.f32.mrf.mxu0
        %4139 = vdwg.mxu0
        %v4140 = vpack.c.bf16 %v3927, %v3927
        %v4141 = vld [vmem:[%s5 + $0x80] sm:$0xf]
        %v4142 = vld [vmem:[%s5 + $0x84] sm:$0xf]
        %v4143 = vld [vmem:[%s5 + $0x88] sm:$0xf]
        %v4144 = vld [vmem:[%s5 + $0x8c] sm:$0xf]
        %v4145 = vld [vmem:[%s5 + $0x90] sm:$0xf]
        %v4146 = vld [vmem:[%s5 + $0x94] sm:$0xf]
        %v4147 = vld [vmem:[%s5 + $0x98] sm:$0xf]
        %v4148 = vld [vmem:[%s5 + $0x9c] sm:$0xf]
        %v4149 = vld [vmem:[%s5 + $0xa0] sm:$0xf]
        %v4150 = vld [vmem:[%s5 + $0xa4] sm:$0xf]
        %v4151 = vld [vmem:[%s5 + $0xa8] sm:$0xf]
        %v4152 = vld [vmem:[%s5 + $0xac] sm:$0xf]
        %v4153 = vld [vmem:[%s5 + $0xb0] sm:$0xf]
        %v4154 = vld [vmem:[%s5 + $0xb4] sm:$0xf]
        %v4155 = vld [vmem:[%s5 + $0xb8] sm:$0xf]
        %v4156 = vld [vmem:[%s5 + $0xbc] sm:$0xf]
        %v4173 = vunpack.c.l.b16 %v4141
        %v4174 = vunpack.c.l.b16 %v4142
        %v4175 = vunpack.c.l.b16 %v4143
        %v4176 = vunpack.c.l.b16 %v4144
        %v4177 = vunpack.c.l.b16 %v4145
        %v4178 = vunpack.c.l.b16 %v4146
        %v4179 = vunpack.c.l.b16 %v4147
        %v4180 = vunpack.c.l.b16 %v4148
        %v4181 = vunpack.c.l.b16 %v4149
        %v4182 = vunpack.c.l.b16 %v4150
        %v4183 = vunpack.c.l.b16 %v4151
        %v4184 = vunpack.c.l.b16 %v4152
        %v4185 = vunpack.c.l.b16 %v4153
        %v4186 = vunpack.c.l.b16 %v4154
        %v4187 = vunpack.c.l.b16 %v4155
        %v4188 = vunpack.c.l.b16 %v4156
        %v4189 = vpack.c.b16 %v4174, %v4173
        %v4190 = vpack.c.b16 %v4176, %v4175
        %v4191 = vpack.c.b16 %v4178, %v4177
        %v4192 = vpack.c.b16 %v4180, %v4179
        %v4193 = vpack.c.b16 %v4182, %v4181
        %v4194 = vpack.c.b16 %v4184, %v4183
        %v4195 = vpack.c.b16 %v4186, %v4185
        %v4196 = vpack.c.b16 %v4188, %v4187
        %4205 = vmatprep.subr.bf16.mxu0 0
        %4206 = vmatpush1.bf16.msra.mxu0 %v4196
        %4207 = vmatprep.subr.bf16.mxu0 0
        %4208 = vmatpush1.bf16.msra.mxu0 %v4195
        %4209 = vmatprep.subr.bf16.mxu0 0
        %4210 = vmatpush1.bf16.msra.mxu0 %v4194
        %4211 = vmatprep.subr.bf16.mxu0 0
        %4212 = vmatpush1.bf16.msra.mxu0 %v4193
        %4213 = vmatprep.subr.bf16.mxu0 0
        %4214 = vmatpush1.bf16.msra.mxu0 %v4192
        %4215 = vmatprep.subr.bf16.mxu0 0
        %4216 = vmatpush1.bf16.msra.mxu0 %v4191
        %4217 = vmatprep.subr.bf16.mxu0 0
        %4218 = vmatpush1.bf16.msra.mxu0 %v4190
        %4219 = vmatprep.subr.bf16.mxu0 0
        %4220 = vmatpush1.bf16.msra.mxu0 %v4189
        %4221 = vmatprep.subr.bf16.mxu0 0
        %4222 = vmatpush2.bf16.msra.mxu0 0
        %4223 = vmatprep.subr.bf16.mxu0 0
        %4224 = vmatpush2.bf16.msra.mxu0 0
        %4225 = vmatprep.subr.bf16.mxu0 0
        %4226 = vmatpush2.bf16.msra.mxu0 0
        %4227 = vmatprep.subr.bf16.mxu0 0
        %4228 = vmatpush2.bf16.msra.mxu0 0
        %4229 = vmatprep.subr.bf16.mxu0 0
        %4230 = vmatpush2.bf16.msra.mxu0 0
        %4231 = vmatprep.subr.bf16.mxu0 0
        %4232 = vmatpush2.bf16.msra.mxu0 0
        %4233 = vmatprep.subr.bf16.mxu0 0
        %4234 = vmatpush2.bf16.msra.mxu0 0
        %4235 = vmatprep.subr.bf16.mxu0 0
        %4236 = vmatpush2.bf16.msra.mxu0 0
        %4237 = vmatprep.mubr.bf16.mxu0 0
        %4238 = vmatmul.mubr.bf16.gmra.mxu0 %v4140
        %v4239 = vpop.f32.mrf.mxu0
        %v4240 = vadd.f32 0.0, %v4239
        %v4241 = vpop.f32.mrf.mxu0
        %v4242 = vpop.f32.mrf.mxu0
        %v4243 = vpop.f32.mrf.mxu0
        %4244 = vdwg.mxu0
        %v4245 = vadd.f32 %v4135, %v4240
        %v4246 = vpack.c.bf16 %v3928, %v3928
        %v4247 = vld [vmem:[%s5 + $0xc0] sm:$0xf]
        %v4248 = vld [vmem:[%s5 + $0xc4] sm:$0xf]
        %v4249 = vld [vmem:[%s5 + $0xc8] sm:$0xf]
        %v4250 = vld [vmem:[%s5 + $0xcc] sm:$0xf]
        %v4251 = vld [vmem:[%s5 + $0xd0] sm:$0xf]
        %v4252 = vld [vmem:[%s5 + $0xd4] sm:$0xf]
        %v4253 = vld [vmem:[%s5 + $0xd8] sm:$0xf]
        %v4254 = vld [vmem:[%s5 + $0xdc] sm:$0xf]
        %v4255 = vld [vmem:[%s5 + $0xe0] sm:$0xf]
        %v4256 = vld [vmem:[%s5 + $0xe4] sm:$0xf]
        %v4257 = vld [vmem:[%s5 + $0xe8] sm:$0xf]
        %v4258 = vld [vmem:[%s5 + $0xec] sm:$0xf]
        %v4259 = vld [vmem:[%s5 + $0xf0] sm:$0xf]
        %v4260 = vld [vmem:[%s5 + $0xf4] sm:$0xf]
        %v4261 = vld [vmem:[%s5 + $0xf8] sm:$0xf]
        %v4262 = vld [vmem:[%s5 + $0xfc] sm:$0xf]
        %v4279 = vunpack.c.l.b16 %v4247
        %v4280 = vunpack.c.l.b16 %v4248
        %v4281 = vunpack.c.l.b16 %v4249
        %v4282 = vunpack.c.l.b16 %v4250
        %v4283 = vunpack.c.l.b16 %v4251
        %v4284 = vunpack.c.l.b16 %v4252
        %v4285 = vunpack.c.l.b16 %v4253
        %v4286 = vunpack.c.l.b16 %v4254
        %v4287 = vunpack.c.l.b16 %v4255
        %v4288 = vunpack.c.l.b16 %v4256
        %v4289 = vunpack.c.l.b16 %v4257
        %v4290 = vunpack.c.l.b16 %v4258
        %v4291 = vunpack.c.l.b16 %v4259
        %v4292 = vunpack.c.l.b16 %v4260
        %v4293 = vunpack.c.l.b16 %v4261
        %v4294 = vunpack.c.l.b16 %v4262
        %v4295 = vpack.c.b16 %v4280, %v4279
        %v4296 = vpack.c.b16 %v4282, %v4281
        %v4297 = vpack.c.b16 %v4284, %v4283
        %v4298 = vpack.c.b16 %v4286, %v4285
        %v4299 = vpack.c.b16 %v4288, %v4287
        %v4300 = vpack.c.b16 %v4290, %v4289
        %v4301 = vpack.c.b16 %v4292, %v4291
        %v4302 = vpack.c.b16 %v4294, %v4293
        %4311 = vmatprep.subr.bf16.mxu0 0
        %4312 = vmatpush1.bf16.msra.mxu0 %v4302
        %4313 = vmatprep.subr.bf16.mxu0 0
        %4314 = vmatpush1.bf16.msra.mxu0 %v4301
        %4315 = vmatprep.subr.bf16.mxu0 0
        %4316 = vmatpush1.bf16.msra.mxu0 %v4300
        %4317 = vmatprep.subr.bf16.mxu0 0
        %4318 = vmatpush1.bf16.msra.mxu0 %v4299
        %4319 = vmatprep.subr.bf16.mxu0 0
        %4320 = vmatpush1.bf16.msra.mxu0 %v4298
        %4321 = vmatprep.subr.bf16.mxu0 0
        %4322 = vmatpush1.bf16.msra.mxu0 %v4297
        %4323 = vmatprep.subr.bf16.mxu0 0
        %4324 = vmatpush1.bf16.msra.mxu0 %v4296
        %4325 = vmatprep.subr.bf16.mxu0 0
        %4326 = vmatpush1.bf16.msra.mxu0 %v4295
        %4327 = vmatprep.subr.bf16.mxu0 0
        %4328 = vmatpush2.bf16.msra.mxu0 0
        %4329 = vmatprep.subr.bf16.mxu0 0
        %4330 = vmatpush2.bf16.msra.mxu0 0
        %4331 = vmatprep.subr.bf16.mxu0 0
        %4332 = vmatpush2.bf16.msra.mxu0 0
        %4333 = vmatprep.subr.bf16.mxu0 0
        %4334 = vmatpush2.bf16.msra.mxu0 0
        %4335 = vmatprep.subr.bf16.mxu0 0
        %4336 = vmatpush2.bf16.msra.mxu0 0
        %4337 = vmatprep.subr.bf16.mxu0 0
        %4338 = vmatpush2.bf16.msra.mxu0 0
        %4339 = vmatprep.subr.bf16.mxu0 0
        %4340 = vmatpush2.bf16.msra.mxu0 0
        %4341 = vmatprep.subr.bf16.mxu0 0
        %4342 = vmatpush2.bf16.msra.mxu0 0
        %4343 = vmatprep.mubr.bf16.mxu0 0
        %4344 = vmatmul.mubr.bf16.gmra.mxu0 %v4246
        %v4345 = vpop.f32.mrf.mxu0
        %v4346 = vadd.f32 0.0, %v4345
        %v4347 = vpop.f32.mrf.mxu0
        %v4348 = vpop.f32.mrf.mxu0
        %v4349 = vpop.f32.mrf.mxu0
        %4350 = vdwg.mxu0
        %v4351 = vadd.f32 %v4245, %v4346
        %v4352 = vpack.c.bf16 %v3929, %v3929
        %v4353 = vld [vmem:[%s5 + $0x100] sm:$0xf]
        %v4354 = vld [vmem:[%s5 + $0x104] sm:$0xf]
        %v4355 = vld [vmem:[%s5 + $0x108] sm:$0xf]
        %v4356 = vld [vmem:[%s5 + $0x10c] sm:$0xf]
        %v4357 = vld [vmem:[%s5 + $0x110] sm:$0xf]
        %v4358 = vld [vmem:[%s5 + $0x114] sm:$0xf]
        %v4359 = vld [vmem:[%s5 + $0x118] sm:$0xf]
        %v4360 = vld [vmem:[%s5 + $0x11c] sm:$0xf]
        %v4361 = vld [vmem:[%s5 + $0x120] sm:$0xf]
        %v4362 = vld [vmem:[%s5 + $0x124] sm:$0xf]
        %v4363 = vld [vmem:[%s5 + $0x128] sm:$0xf]
        %v4364 = vld [vmem:[%s5 + $0x12c] sm:$0xf]
        %v4365 = vld [vmem:[%s5 + $0x130] sm:$0xf]
        %v4366 = vld [vmem:[%s5 + $0x134] sm:$0xf]
        %v4367 = vld [vmem:[%s5 + $0x138] sm:$0xf]
        %v4368 = vld [vmem:[%s5 + $0x13c] sm:$0xf]
        %v4385 = vunpack.c.l.b16 %v4353
        %v4386 = vunpack.c.l.b16 %v4354
        %v4387 = vunpack.c.l.b16 %v4355
        %v4388 = vunpack.c.l.b16 %v4356
        %v4389 = vunpack.c.l.b16 %v4357
        %v4390 = vunpack.c.l.b16 %v4358
        %v4391 = vunpack.c.l.b16 %v4359
        %v4392 = vunpack.c.l.b16 %v4360
        %v4393 = vunpack.c.l.b16 %v4361
        %v4394 = vunpack.c.l.b16 %v4362
        %v4395 = vunpack.c.l.b16 %v4363
        %v4396 = vunpack.c.l.b16 %v4364
        %v4397 = vunpack.c.l.b16 %v4365
        %v4398 = vunpack.c.l.b16 %v4366
        %v4399 = vunpack.c.l.b16 %v4367
        %v4400 = vunpack.c.l.b16 %v4368
        %v4401 = vpack.c.b16 %v4386, %v4385
        %v4402 = vpack.c.b16 %v4388, %v4387
        %v4403 = vpack.c.b16 %v4390, %v4389
        %v4404 = vpack.c.b16 %v4392, %v4391
        %v4405 = vpack.c.b16 %v4394, %v4393
        %v4406 = vpack.c.b16 %v4396, %v4395
        %v4407 = vpack.c.b16 %v4398, %v4397
        %v4408 = vpack.c.b16 %v4400, %v4399
        %4417 = vmatprep.subr.bf16.mxu0 0
        %4418 = vmatpush1.bf16.msra.mxu0 %v4408
        %4419 = vmatprep.subr.bf16.mxu0 0
        %4420 = vmatpush1.bf16.msra.mxu0 %v4407
        %4421 = vmatprep.subr.bf16.mxu0 0
        %4422 = vmatpush1.bf16.msra.mxu0 %v4406
        %4423 = vmatprep.subr.bf16.mxu0 0
        %4424 = vmatpush1.bf16.msra.mxu0 %v4405
        %4425 = vmatprep.subr.bf16.mxu0 0
        %4426 = vmatpush1.bf16.msra.mxu0 %v4404
        %4427 = vmatprep.subr.bf16.mxu0 0
        %4428 = vmatpush1.bf16.msra.mxu0 %v4403
        %4429 = vmatprep.subr.bf16.mxu0 0
        %4430 = vmatpush1.bf16.msra.mxu0 %v4402
        %4431 = vmatprep.subr.bf16.mxu0 0
        %4432 = vmatpush1.bf16.msra.mxu0 %v4401
        %4433 = vmatprep.subr.bf16.mxu0 0
        %4434 = vmatpush2.bf16.msra.mxu0 0
        %4435 = vmatprep.subr.bf16.mxu0 0
        %4436 = vmatpush2.bf16.msra.mxu0 0
        %4437 = vmatprep.subr.bf16.mxu0 0
        %4438 = vmatpush2.bf16.msra.mxu0 0
        %4439 = vmatprep.subr.bf16.mxu0 0
        %4440 = vmatpush2.bf16.msra.mxu0 0
        %4441 = vmatprep.subr.bf16.mxu0 0
        %4442 = vmatpush2.bf16.msra.mxu0 0
        %4443 = vmatprep.subr.bf16.mxu0 0
        %4444 = vmatpush2.bf16.msra.mxu0 0
        %4445 = vmatprep.subr.bf16.mxu0 0
        %4446 = vmatpush2.bf16.msra.mxu0 0
        %4447 = vmatprep.subr.bf16.mxu0 0
        %4448 = vmatpush2.bf16.msra.mxu0 0
        %4449 = vmatprep.mubr.bf16.mxu0 0
        %4450 = vmatmul.mubr.bf16.gmra.mxu0 %v4352
        %v4451 = vpop.f32.mrf.mxu0
        %v4452 = vadd.f32 0.0, %v4451
        %v4453 = vpop.f32.mrf.mxu0
        %v4454 = vpop.f32.mrf.mxu0
        %v4455 = vpop.f32.mrf.mxu0
        %4456 = vdwg.mxu0
        %v4457 = vadd.f32 %v4351, %v4452
        %v4458 = vld [vmem:[%s6] sm:$0x1]
        %v4460 = vlaneseq
        %v4461 = vshrl.u32 %v4460, 7
        %v4462 = vsub.s32 0, %v4461
        %v4463 = vrot.slane %v4458, %v4462
        %v4465 = vadd.f32 %v4457, %v4463
        %v4466 = vmax.f32 %v4465, 0.0
        %v4467 = vpack.c.bf16 %v4466, %v4466
        %v4468 = vld [vmem:[%s7] sm:$0xf]
        %v4469 = vld [vmem:[%s7 + $0x4] sm:$0xf]
        %v4470 = vld [vmem:[%s7 + $0x8] sm:$0xf]
        %v4471 = vld [vmem:[%s7 + $0xc] sm:$0xf]
        %v4472 = vld [vmem:[%s7 + $0x10] sm:$0xf]
        %v4473 = vld [vmem:[%s7 + $0x14] sm:$0xf]
        %v4474 = vld [vmem:[%s7 + $0x18] sm:$0xf]
        %v4475 = vld [vmem:[%s7 + $0x1c] sm:$0xf]
        %v4476 = vld [vmem:[%s7 + $0x20] sm:$0xf]
        %v4477 = vld [vmem:[%s7 + $0x24] sm:$0xf]
        %v4478 = vld [vmem:[%s7 + $0x28] sm:$0xf]
        %v4479 = vld [vmem:[%s7 + $0x2c] sm:$0xf]
        %v4480 = vld [vmem:[%s7 + $0x30] sm:$0xf]
        %v4481 = vld [vmem:[%s7 + $0x34] sm:$0xf]
        %v4482 = vld [vmem:[%s7 + $0x38] sm:$0xf]
        %v4483 = vld [vmem:[%s7 + $0x3c] sm:$0xf]
        %v4484 = vld [vmem:[%s8] sm:$0x1]
        %v4486 = vlaneseq
        %v4487 = vshrl.u32 %v4486, 7
        %v4488 = vsub.s32 0, %v4487
        %v4489 = vrot.slane %v4484, %v4488
        %v4507 = vunpack.c.l.b16 %v4468
        %v4508 = vunpack.c.l.b16 %v4469
        %v4509 = vunpack.c.l.b16 %v4470
        %v4510 = vunpack.c.l.b16 %v4471
        %v4511 = vunpack.c.l.b16 %v4472
        %v4512 = vunpack.c.l.b16 %v4473
        %v4513 = vunpack.c.l.b16 %v4474
        %v4514 = vunpack.c.l.b16 %v4475
        %v4515 = vunpack.c.l.b16 %v4476
        %v4516 = vunpack.c.l.b16 %v4477
        %v4517 = vunpack.c.l.b16 %v4478
        %v4518 = vunpack.c.l.b16 %v4479
        %v4519 = vunpack.c.l.b16 %v4480
        %v4520 = vunpack.c.l.b16 %v4481
        %v4521 = vunpack.c.l.b16 %v4482
        %v4522 = vunpack.c.l.b16 %v4483
        %v4523 = vpack.c.b16 %v4508, %v4507
        %v4524 = vpack.c.b16 %v4510, %v4509
        %v4525 = vpack.c.b16 %v4512, %v4511
        %v4526 = vpack.c.b16 %v4514, %v4513
        %v4527 = vpack.c.b16 %v4516, %v4515
        %v4528 = vpack.c.b16 %v4518, %v4517
        %v4529 = vpack.c.b16 %v4520, %v4519
        %v4530 = vpack.c.b16 %v4522, %v4521
        %4539 = vmatprep.subr.bf16.mxu0 0
        %4540 = vmatpush1.bf16.msra.mxu0 %v4530
        %4541 = vmatprep.subr.bf16.mxu0 0
        %4542 = vmatpush1.bf16.msra.mxu0 %v4529
        %4543 = vmatprep.subr.bf16.mxu0 0
        %4544 = vmatpush1.bf16.msra.mxu0 %v4528
        %4545 = vmatprep.subr.bf16.mxu0 0
        %4546 = vmatpush1.bf16.msra.mxu0 %v4527
        %4547 = vmatprep.subr.bf16.mxu0 0
        %4548 = vmatpush1.bf16.msra.mxu0 %v4526
        %4549 = vmatprep.subr.bf16.mxu0 0
        %4550 = vmatpush1.bf16.msra.mxu0 %v4525
        %4551 = vmatprep.subr.bf16.mxu0 0
        %4552 = vmatpush1.bf16.msra.mxu0 %v4524
        %4553 = vmatprep.subr.bf16.mxu0 0
        %4554 = vmatpush1.bf16.msra.mxu0 %v4523
        %4555 = vmatprep.subr.bf16.mxu0 0
        %4556 = vmatpush2.bf16.msra.mxu0 0
        %4557 = vmatprep.subr.bf16.mxu0 0
        %4558 = vmatpush2.bf16.msra.mxu0 0
        %4559 = vmatprep.subr.bf16.mxu0 0
        %4560 = vmatpush2.bf16.msra.mxu0 0
        %4561 = vmatprep.subr.bf16.mxu0 0
        %4562 = vmatpush2.bf16.msra.mxu0 0
        %4563 = vmatprep.subr.bf16.mxu0 0
        %4564 = vmatpush2.bf16.msra.mxu0 0
        %4565 = vmatprep.subr.bf16.mxu0 0
        %4566 = vmatpush2.bf16.msra.mxu0 0
        %4567 = vmatprep.subr.bf16.mxu0 0
        %4568 = vmatpush2.bf16.msra.mxu0 0
        %4569 = vmatprep.subr.bf16.mxu0 0
        %4570 = vmatpush2.bf16.msra.mxu0 0
        %4571 = vmatprep.mubr.bf16.mxu0 0
        %4572 = vmatmul.mubr.bf16.gmra.mxu0 %v4467
        %v4573 = vpop.f32.mrf.mxu0
        %v4574 = vadd.f32 %v4489, %v4573
        %v4575 = vpop.f32.mrf.mxu0
        %v4576 = vpop.f32.mrf.mxu0
        %v4577 = vpop.f32.mrf.mxu0
        %4578 = vdwg.mxu0
        %v4579 = vmax.f32 %v4574, 0.0
        %v4580 = vpack.c.bf16 %v4579, %v4579
        %v4581 = vld [vmem:[%s9] sm:$0xf]
        %v4582 = vld [vmem:[%s9 + $0x4] sm:$0xf]
        %v4583 = vld [vmem:[%s9 + $0x8] sm:$0xf]
        %v4584 = vld [vmem:[%s9 + $0xc] sm:$0xf]
        %v4585 = vld [vmem:[%s9 + $0x10] sm:$0xf]
        %v4586 = vld [vmem:[%s9 + $0x14] sm:$0xf]
        %v4587 = vld [vmem:[%s9 + $0x18] sm:$0xf]
        %v4588 = vld [vmem:[%s9 + $0x1c] sm:$0xf]
        %v4589 = vld [vmem:[%s9 + $0x20] sm:$0xf]
        %v4590 = vld [vmem:[%s9 + $0x24] sm:$0xf]
        %v4591 = vld [vmem:[%s9 + $0x28] sm:$0xf]
        %v4592 = vld [vmem:[%s9 + $0x2c] sm:$0xf]
        %v4593 = vld [vmem:[%s9 + $0x30] sm:$0xf]
        %v4594 = vld [vmem:[%s9 + $0x34] sm:$0xf]
        %v4595 = vld [vmem:[%s9 + $0x38] sm:$0xf]
        %v4596 = vld [vmem:[%s9 + $0x3c] sm:$0xf]
        %v4597 = vld [vmem:[%s10] sm:$0x1]
        %v4599 = vlaneseq
        %v4600 = vshrl.u32 %v4599, 7
        %v4601 = vsub.s32 0, %v4600
        %v4602 = vrot.slane %v4597, %v4601
        %v4620 = vunpack.c.l.b16 %v4581
        %v4621 = vunpack.c.l.b16 %v4582
        %v4622 = vunpack.c.l.b16 %v4583
        %v4623 = vunpack.c.l.b16 %v4584
        %v4624 = vunpack.c.l.b16 %v4585
        %v4625 = vunpack.c.l.b16 %v4586
        %v4626 = vunpack.c.l.b16 %v4587
        %v4627 = vunpack.c.l.b16 %v4588
        %v4628 = vunpack.c.l.b16 %v4589
        %v4629 = vunpack.c.l.b16 %v4590
        %v4630 = vunpack.c.l.b16 %v4591
        %v4631 = vunpack.c.l.b16 %v4592
        %v4632 = vunpack.c.l.b16 %v4593
        %v4633 = vunpack.c.l.b16 %v4594
        %v4634 = vunpack.c.l.b16 %v4595
        %v4635 = vunpack.c.l.b16 %v4596
        %v4636 = vpack.c.b16 %v4621, %v4620
        %v4637 = vpack.c.b16 %v4623, %v4622
        %v4638 = vpack.c.b16 %v4625, %v4624
        %v4639 = vpack.c.b16 %v4627, %v4626
        %v4640 = vpack.c.b16 %v4629, %v4628
        %v4641 = vpack.c.b16 %v4631, %v4630
        %v4642 = vpack.c.b16 %v4633, %v4632
        %v4643 = vpack.c.b16 %v4635, %v4634
        %4652 = vmatprep.subr.bf16.mxu0 0
        %4653 = vmatpush1.bf16.msra.mxu0 %v4643
        %4654 = vmatprep.subr.bf16.mxu0 0
        %4655 = vmatpush1.bf16.msra.mxu0 %v4642
        %4656 = vmatprep.subr.bf16.mxu0 0
        %4657 = vmatpush1.bf16.msra.mxu0 %v4641
        %4658 = vmatprep.subr.bf16.mxu0 0
        %4659 = vmatpush1.bf16.msra.mxu0 %v4640
        %4660 = vmatprep.subr.bf16.mxu0 0
        %4661 = vmatpush1.bf16.msra.mxu0 %v4639
        %4662 = vmatprep.subr.bf16.mxu0 0
        %4663 = vmatpush1.bf16.msra.mxu0 %v4638
        %4664 = vmatprep.subr.bf16.mxu0 0
        %4665 = vmatpush1.bf16.msra.mxu0 %v4637
        %4666 = vmatprep.subr.bf16.mxu0 0
        %4667 = vmatpush1.bf16.msra.mxu0 %v4636
        %4668 = vmatprep.subr.bf16.mxu0 0
        %4669 = vmatpush2.bf16.msra.mxu0 0
        %4670 = vmatprep.subr.bf16.mxu0 0
        %4671 = vmatpush2.bf16.msra.mxu0 0
        %4672 = vmatprep.subr.bf16.mxu0 0
        %4673 = vmatpush2.bf16.msra.mxu0 0
        %4674 = vmatprep.subr.bf16.mxu0 0
        %4675 = vmatpush2.bf16.msra.mxu0 0
        %4676 = vmatprep.subr.bf16.mxu0 0
        %4677 = vmatpush2.bf16.msra.mxu0 0
        %4678 = vmatprep.subr.bf16.mxu0 0
        %4679 = vmatpush2.bf16.msra.mxu0 0
        %4680 = vmatprep.subr.bf16.mxu0 0
        %4681 = vmatpush2.bf16.msra.mxu0 0
        %4682 = vmatprep.subr.bf16.mxu0 0
        %4683 = vmatpush2.bf16.msra.mxu0 0
        %4684 = vmatprep.mubr.bf16.mxu0 0
        %4685 = vmatmul.mubr.bf16.gmra.mxu0 %v4580
        %v4686 = vpop.f32.mrf.mxu0
        %v4687 = vadd.f32 %v4602, %v4686
        %v4688 = vpop.f32.mrf.mxu0
        %v4689 = vpop.f32.mrf.mxu0
        %v4690 = vpop.f32.mrf.mxu0
        %4691 = vdwg.mxu0
        %4692 = vst [vmem:[%s379] sm:$0xff] %v4687
        %s4693 = sand.u32 %s269, 1
        %s4694 = scalar_lea.sflag [#allocation4], %s4693
        %s4695 = sand.u32 %s269, 1
        %s4696 = smul.addr %s4695, 8
        %s4697 = scalar_lea.vmem [#allocation3], %s4696
        // Predicated region
        $region65: #{net_forward.1} parent=63 // pred_check
          %p4698 = pneg %p279
        $region66: #{net_forward.1} parent=63 // pred_check_branch
          %4700 = sbr.rel (%p4698) target = $region68
        $region67: #{net_forward.1} parent=63 // pred_region
          %s4702 = ssub.s32 128, 128
          %4703 = vsyncadd %s4694, %s4702
          %s4704 = smul.addr %s25, 128
          %s4705 = scalar_lea.hbm %s11, %s4704
          %s4707 = sshll.u32 %s4697, 4
          %s4708 = int_to_ptr.vmem [resolvable:$true] %s4707
          %4710 = dma.vmem_to_hbm [thread:$0]  %s4708, 128, %s4705, %s4694
        $region68: #{net_forward.1} parent=63 // pred_fallthru
          _
      $region64: #{net_forward.1} parent=5 // pred_fallthru
        _
      %p4711 = scmp.le.s32.totalorder 2, %s20
      // Predicated region
      $region69: #{net_forward.1} parent=5 // pred_check
        %p4712 = pneg %p4711
      $region70: #{net_forward.1} parent=5 // pred_check_branch
        %4714 = sbr.rel (%p4712) target = $region72
      $region71: #{net_forward.1} parent=5 // pred_region
        %s4715 = ssub.s32 %s20, 2
        // Predicated region
        $region73: #{net_forward.1} parent=71 // pred_check
          %p4716 = pneg %p285
        $region74: #{net_forward.1} parent=71 // pred_check_branch
          %4718 = sbr.rel (%p4716) target = $region76
        $region75: #{net_forward.1} parent=71 // pred_region
          %s4719 = sand.u32 %s270, 1
          %s4720 = scalar_lea.sflag [#allocation4], %s4719
          %s4721 = sand.u32 %s270, 1
          %s4722 = smul.addr %s4721, 8
          %s4723 = scalar_lea.vmem [#allocation3], %s4722
          %4724 = dma.done %s4720, 128
        $region76: #{net_forward.1} parent=71 // pred_fallthru
          _
      $region72: #{net_forward.1} parent=5 // pred_fallthru
        _
    $region6: #{net_forward.1} parent=1 // loop_footer
      %s24 = sadd.s32 1, %s20
    $region7: #{net_forward.1} parent=1 // loop_footer_branch
      %19 = sbr.rel target = $region3
    $region8: #{net_forward.1} parent=1 // loop_exit
      _
    %4725 = vsyncpa [#allocation4], 1
    %s4726 = scalar_lea.sflag [#allocation4], 1
    %4727 = vsyncpa %s4726, 1

</llo_original>
